<compile_context>
chip_gen: v7x
topology: tpu7x:2x2x1
jax: 0.10.0
libtpu: 0.0.40
codegen_flags: <defaults>
</compile_context>

<pallas_src>
import math
from functools import partial

import jax
import jax.numpy as jnp
from jax import lax
from jax.experimental import pallas as pl
from jax.experimental.pallas import tpu as pltpu


# ----------------------------------------------------------------------------
# Config (matches the PyTorch module at small scale)
# ----------------------------------------------------------------------------
class Config:
    n_embed = 32
    n_head = 2
    n_ctx = 16
    n_vocab = 64
    n_layer = 2
    is_diff = True          # Differential Transformer path


def lambda_init_fn(layer):
    return 0.8 - 0.6 * math.exp(-0.3 * (layer - 1))


# ----------------------------------------------------------------------------
# Fused forward kernel:
#   [RMSNorm -> c_attn -> RoPE -> differential attention -> c_proj -> residual
#    -> RMSNorm -> gated FFN -> residual] x n_layer -> tied lm_head
# grid = () single shot; all operands are full-array VMEM blocks.
# ----------------------------------------------------------------------------
def _fused_forward_kernel(lam_ref, x_ref, cos_ref, sn_ref, sp_ref,
                          wattn_ref, wproj_ref, w1_ref, wg_ref, w2_ref, wlm_ref,
                          out_ref, *, B, T, C, nH, hd, n_layer, lam_inits):
    eps = jnp.float32(1e-5)
    inv_C = jnp.float32(1.0 / C)
    inv_2hd = jnp.float32(1.0 / (2 * hd))
    M = B * T
    G = 2 * nH * B            # batched-attention leading dim (component*head*batch)

    x = x_ref[...]            # (M, C) residual stream, f32

    # Per-position RoPE tables (T, 2C) -> replicate over batch in-kernel (M, 2C).
    # The q half already carries the 1/sqrt(hd) attention scale (folded on host).
    cs = jnp.concatenate([cos_ref[...]] * B, axis=0)
    sn = jnp.concatenate([sn_ref[...]] * B, axis=0)
    sp = jnp.concatenate([sp_ref[...]] * B, axis=0)
    zcol = jnp.zeros((M, 1), jnp.float32)

    # Causal mask built in-kernel at the batched-score shape (no (M,M) DMA).
    row_id = lax.broadcasted_iota(jnp.int32, (G, T, T), 1)
    col_id = lax.broadcasted_iota(jnp.int32, (G, T, T), 2)
    causal = col_id <= row_id

    def rmsnorm(v, inv_n):
        ms = jnp.sum(v * v, axis=-1, keepdims=True) * inv_n
        return v * lax.rsqrt(ms + eps)

    def rope_qk(u):
        # Interleaved-pair rotation:  out[c] = u[c]*cos[c] + u[c+1]*sn[c] + u[c-1]*sp[c]
        # (pair-swap via lane slice+concat; sn/sp are zero-masked so head / array
        #  boundaries never leak).  No MXU work.
        u_next = jnp.concatenate([u[:, 1:], zcol], axis=1)
        u_prev = jnp.concatenate([zcol, u[:, :-1]], axis=1)
        return u * cs + u_next * sn + u_prev * sp

    for l in range(n_layer):                         # static unroll (n_layer = 2)
        lam = lam_ref[l]                             # scalar from SMEM
        one_minus_li = jnp.float32(1.0 - lam_inits[l])

        # ---------------- differential attention sub-block ----------------
        h = rmsnorm(x, inv_C)
        qkv = jnp.dot(h, wattn_ref[l], preferred_element_type=jnp.float32)  # (M, 3C)
        qk = rope_qk(qkv[:, :2 * C])                 # roped q|k, q half pre-scaled
        q = qk[:, :C]
        k = qk[:, C:]
        v = qkv[:, 2 * C:]

        q3 = q.reshape(B, T, C)
        k3 = k.reshape(B, T, C)
        v3 = v.reshape(B, T, C)

        # Head-batched layout: leading axis = (component, head, batch); built with
        # leading-axis concats so all 2*nH score / PV matmuls fuse into one einsum.
        q_cat = jnp.concatenate(
            [q3[:, :, i * hd:(i + 1) * hd] for i in range(2 * nH)], axis=0)
        k_cat = jnp.concatenate(
            [k3[:, :, i * hd:(i + 1) * hd] for i in range(2 * nH)], axis=0)
        v_cat = jnp.concatenate(
            [v3[:, :, (i % nH) * 2 * hd:((i % nH) + 1) * 2 * hd]
             for i in range(2 * nH)], axis=0)

        s = jnp.einsum('bqd,bkd->bqk', q_cat, k_cat,
                       preferred_element_type=jnp.float32)      # (G, T, T)
        s = jnp.where(causal, s, jnp.float32(-1e30))
        m = jnp.max(s, axis=-1, keepdims=True)
        p = jnp.exp(s - m)
        p = p * pl.reciprocal(jnp.sum(p, axis=-1, keepdims=True), approx=True)
        a = jnp.einsum('bqk,bkd->bqd', p, v_cat,
                       preferred_element_type=jnp.float32)      # (G, T, 2hd)

        a1 = a[:nH * B]                              # component 1, all heads
        a2 = a[nH * B:]                              # component 2, all heads
        d = a1 - lam * a2                            # (nH*B, T, 2hd)
        d = rmsnorm(d, inv_2hd) * one_minus_li       # RMSNorm(2hd) * (1 - lambda_init)

        # Per-head output projection accumulated into the residual (no lane concat).
        wproj_l = wproj_ref[l]                       # (C, C)
        proj = None
        for hix in range(nH):
            d_h = d[hix * B:(hix + 1) * B].reshape(M, 2 * hd)
            contrib = jnp.dot(d_h, wproj_l[hix * 2 * hd:(hix + 1) * 2 * hd, :],
                              preferred_element_type=jnp.float32)
            proj = contrib if proj is None else proj + contrib
        x = x + proj

        # ------------------------ gated FFN sub-block ----------------------
        h2 = rmsnorm(x, inv_C)
        h1 = jnp.dot(h2, w1_ref[l], preferred_element_type=jnp.float32)
        g = jnp.dot(h2, wg_ref[l], preferred_element_type=jnp.float32)
        ff = jnp.dot(h1 * (g * jax.nn.sigmoid(g)), w2_ref[l],
                     preferred_element_type=jnp.float32)
        x = x + ff

    # tied lm_head (pre-transposed, vocab zero-padded to 128 lanes -> lane-dense store)
    out_ref[...] = jnp.dot(x, wlm_ref[...], preferred_element_type=jnp.float32)


# ----------------------------------------------------------------------------
# Plain-JAX glue: RoPE tables, lambda scalars, embedding gather
# ----------------------------------------------------------------------------
def _rope_tables(T, nH, hd, scale, base=10000.0):
    """Interleaved-pair RoPE tables for the flat (rows, 2C) q|k slab.

    rope(u)[c] = u[c]*cos[c] + u[c+1]*sin_next[c] + u[c-1]*sin_prev[c]
    The q half (first C columns) additionally carries the 1/sqrt(hd) scale.
    """
    half = hd // 2
    theta = 1.0 / (base ** (jnp.arange(half, dtype=jnp.float32) * 2.0 / hd))
    ang = jnp.arange(T, dtype=jnp.float32)[:, None] * theta[None, :]      # (T, half)
    cos_h = jnp.repeat(jnp.cos(ang), 2, axis=-1)                          # (T, hd)
    sin_h = jnp.repeat(jnp.sin(ang), 2, axis=-1)
    even = (jnp.arange(hd) % 2 == 0)
    sn_h = jnp.where(even, -sin_h, 0.0)     # multiplies u[c+1]
    sp_h = jnp.where(even, 0.0, sin_h)      # multiplies u[c-1]

    def expand(t):
        per_c = jnp.tile(t, (1, 2 * nH))                      # (T, C)
        return jnp.concatenate([jnp.float32(scale) * per_c, per_c], axis=1)  # (T, 2C)

    return expand(cos_h), expand(sn_h), expand(sp_h)


def trans_model_forward(tokens, params, cfg):
    B, T = tokens.shape
    assert T <= cfg.n_ctx, "Context length exceeds model's maximum context length"
    C = cfg.n_embed
    nH = cfg.n_head
    hd = C // nH // 2
    L = cfg.n_layer
    V = cfg.n_vocab
    M = B * T
    Hp = params["w1p"].shape[-1]          # lane-padded FFN hidden (128)
    Vp = params["wte_tp"].shape[-1]       # lane-padded vocab (128)

    # embedding gather (glue), RoPE tables, per-layer lambda scalars
    x = jnp.take(params["wte"], tokens.reshape(-1), axis=0)              # (M, C)
    cos, sn, sp = _rope_tables(T, nH, hd, 1.0 / math.sqrt(hd))           # (T, 2C) x3
    lam_inits = tuple(lambda_init_fn(i + 1) for i in range(L))
    lam = (jnp.exp(jnp.sum(params["lq1"] * params["lk1"], axis=-1))
           - jnp.exp(jnp.sum(params["lq2"] * params["lk2"], axis=-1))
           + jnp.asarray(lam_inits, jnp.float32)).astype(jnp.float32)    # (L,)

    def full(shape):
        nd = len(shape)
        return pl.BlockSpec(shape, lambda: (0,) * nd)

    kernel = partial(_fused_forward_kernel, B=B, T=T, C=C, nH=nH, hd=hd,
                     n_layer=L, lam_inits=lam_inits)

    logits_p = pl.pallas_call(
        kernel,
        out_shape=jax.ShapeDtypeStruct((M, Vp), jnp.float32),
        in_specs=[pl.BlockSpec(memory_space=pltpu.MemorySpace.SMEM),   # lambda scalars
                  full((M, C)),                                        # embedded tokens
                  full((T, 2 * C)), full((T, 2 * C)), full((T, 2 * C)),  # RoPE tables
                  full((L, C, 3 * C)),                                 # c_attn
                  full((L, C, C)),                                     # c_proj
                  full((L, C, Hp)), full((L, C, Hp)), full((L, Hp, C)),  # gated FFN
                  full((C, Vp))],                                      # lm_head (tied)
        out_specs=full((M, Vp)),
        compiler_params=pltpu.CompilerParams(vmem_limit_bytes=32 * 1024 * 1024),
    )(lam, x, cos, sn, sp,
      params["w_attn"], params["w_proj"],
      params["w1p"], params["wgp"], params["w2p"], params["wte_tp"])

    return logits_p[:, :V].reshape(B, T, V)


# ----------------------------------------------------------------------------
# Deterministic synthetic parameters (shapes match the PyTorch module; linear
# weights stored pre-transposed as (in, out), per-layer stacked).  FFN hidden
# (85 = int(8C/3), exactly the PyTorch rounding) and the tied lm_head vocab
# (64) are zero-padded to 128 lanes -> bit-identical math, lane-dense layout.
# ----------------------------------------------------------------------------
def init_params(cfg, key):
    C = cfg.n_embed
    H = int(C * 8.0 / 3.0)                # 85 - true PyTorch hidden size
    Hp, Vp = 128, 128                     # lane-padded sizes
    hd = C // cfg.n_head // 2
    L = cfg.n_layer
    V = cfg.n_vocab
    k = jax.random.split(key, 10)
    p = {
        "wte": 0.02 * jax.random.normal(k[0], (V, C), jnp.float32),
        "w_attn": 0.02 * jax.random.normal(k[1], (L, C, 3 * C), jnp.float32),
        "w_proj": 0.02 * jax.random.normal(k[2], (L, C, C), jnp.float32),
        "lq1": 0.1 * jax.random.normal(k[3], (L, hd), jnp.float32),
        "lk1": 0.1 * jax.random.normal(k[4], (L, hd), jnp.float32),
        "lq2": 0.1 * jax.random.normal(k[5], (L, hd), jnp.float32),
        "lk2": 0.1 * jax.random.normal(k[6], (L, hd), jnp.float32),
        "w1": 0.02 * jax.random.normal(k[7], (L, C, H), jnp.float32),
        "wg": 0.02 * jax.random.normal(k[8], (L, C, H), jnp.float32),
        "w2": 0.02 * jax.random.normal(k[9], (L, H, C), jnp.float32),
    }
    # Zero padding: silu(0)=0 and zero rows/cols contribute nothing -> identical.
    p["w1p"] = jnp.pad(p["w1"], ((0, 0), (0, 0), (0, Hp - H)))
    p["wgp"] = jnp.pad(p["wg"], ((0, 0), (0, 0), (0, Hp - H)))
    p["w2p"] = jnp.pad(p["w2"], ((0, 0), (0, Hp - H), (0, 0)))
    # lm_head weight-tied to wte; pre-transposed and vocab-padded to 128 lanes.
    p["wte_tp"] = jnp.pad(p["wte"].T, ((0, 0), (0, Vp - V)))
    return p


if __name__ == "__main__":
    cfg = Config()
    key = jax.random.PRNGKey(0)
    pkey, tkey = jax.random.split(key)
    params = init_params(cfg, pkey)
    tokens = jax.random.randint(tkey, (2, 8), 0, cfg.n_vocab, dtype=jnp.int32)

    fwd = jax.jit(lambda t: trans_model_forward(t, params, cfg))
    logits = fwd(tokens)
    jax.block_until_ready(logits)
    assert logits.shape == (2, 8, cfg.n_vocab)
    assert bool(jnp.all(jnp.isfinite(logits)))
    print("KERNEL_OK")
</pallas_src>

<mosaic_0001>
module attributes {stable_mosaic.version = 11 : i64} {
  func.func @_fused_forward_kernel(%arg0: memref<2xf32, #tpu.memory_space<smem>>, %arg1: memref<16x32xf32, #tpu.memory_space<vmem>>, %arg2: memref<8x64xf32, #tpu.memory_space<vmem>>, %arg3: memref<8x64xf32, #tpu.memory_space<vmem>>, %arg4: memref<8x64xf32, #tpu.memory_space<vmem>>, %arg5: memref<2x32x96xf32, #tpu.memory_space<vmem>>, %arg6: memref<2x32x32xf32, #tpu.memory_space<vmem>>, %arg7: memref<2x32x128xf32, #tpu.memory_space<vmem>>, %arg8: memref<2x32x128xf32, #tpu.memory_space<vmem>>, %arg9: memref<2x128x32xf32, #tpu.memory_space<vmem>>, %arg10: memref<32x128xf32, #tpu.memory_space<vmem>>, %arg11: memref<16x128xf32, #tpu.memory_space<vmem>>) attributes {dimension_semantics = [], scalar_prefetch = 0 : i64, scratch_operands = 0 : i64, tpu.core_type = #tpu.core_type<tc>} {
    %c0 = arith.constant 0 : index
    %c0_0 = arith.constant 0 : index
    %0 = vector.load %arg1[%c0, %c0_0] : memref<16x32xf32, #tpu.memory_space<vmem>>, vector<16x32xf32>
    %c0_1 = arith.constant 0 : index
    %c0_2 = arith.constant 0 : index
    %1 = vector.load %arg2[%c0_1, %c0_2] : memref<8x64xf32, #tpu.memory_space<vmem>>, vector<8x64xf32>
    %2 = tpu.concatenate %1, %1 in 0 : vector<8x64xf32>, vector<8x64xf32> -> vector<16x64xf32>
    %c0_3 = arith.constant 0 : index
    %c0_4 = arith.constant 0 : index
    %3 = vector.load %arg3[%c0_3, %c0_4] : memref<8x64xf32, #tpu.memory_space<vmem>>, vector<8x64xf32>
    %4 = tpu.concatenate %3, %3 in 0 : vector<8x64xf32>, vector<8x64xf32> -> vector<16x64xf32>
    %c0_5 = arith.constant 0 : index
    %c0_6 = arith.constant 0 : index
    %5 = vector.load %arg4[%c0_5, %c0_6] : memref<8x64xf32, #tpu.memory_space<vmem>>, vector<8x64xf32>
    %6 = tpu.concatenate %5, %5 in 0 : vector<8x64xf32>, vector<8x64xf32> -> vector<16x64xf32>
    %cst = arith.constant 0.000000e+00 : f32
    %7 = vector.broadcast %cst : f32 to vector<16x1xf32>
    %8 = tpu.iota {dimensions = array<i32: 1>} : vector<8x8x8xi32>
    %9 = tpu.iota {dimensions = array<i32: 2>} : vector<8x8x8xi32>
    %10 = arith.cmpi sle, %9, %8 : vector<8x8x8xi32>
    %c0_7 = arith.constant 0 : index
    %11 = memref.load %arg0[%c0_7] : memref<2xf32, #tpu.memory_space<smem>>
    %12 = arith.mulf %0, %0 : vector<16x32xf32>
    %cst_8 = arith.constant dense<0.000000e+00> : vector<16xf32>
    %13 = vector.multi_reduction <add>, %12, %cst_8 [1] : vector<16x32xf32> to vector<16xf32>
    %14 = vector.shape_cast %13 : vector<16xf32> to vector<16x1xf32>
    %cst_9 = arith.constant 3.125000e-02 : f32
    %15 = vector.broadcast %cst_9 : f32 to vector<16x1xf32>
    %16 = arith.mulf %14, %15 : vector<16x1xf32>
    %cst_10 = arith.constant 9.99999974E-6 : f32
    %17 = vector.broadcast %cst_10 : f32 to vector<16x1xf32>
    %18 = arith.addf %16, %17 : vector<16x1xf32>
    %19 = math.rsqrt %18 : vector<16x1xf32>
    %20 = vector.broadcast %19 : vector<16x1xf32> to vector<16x32xf32>
    %21 = arith.mulf %0, %20 : vector<16x32xf32>
    %c0_11 = arith.constant 0 : index
    %c0_12 = arith.constant 0 : index
    %c0_13 = arith.constant 0 : index
    %22 = vector.load %arg5[%c0_11, %c0_12, %c0_13] : memref<2x32x96xf32, #tpu.memory_space<vmem>>, vector<1x32x96xf32>
    %23 = vector.shape_cast %22 : vector<1x32x96xf32> to vector<32x96xf32>
    %cst_14 = arith.constant dense<0.000000e+00> : vector<16x96xf32>
    %24 = tpu.matmul %21, %23, %cst_14 {dimension_numbers = #tpu.dot_dimension_numbers<[1], [0], [0], [1], [0, 0, 1, 1], [], []>} : vector<16x32xf32>, vector<32x96xf32>, vector<16x96xf32> -> vector<16x96xf32>
    %25 = vector.extract_strided_slice %24 {offsets = [0, 0], sizes = [16, 64], strides = [1, 1]} : vector<16x96xf32> to vector<16x64xf32>
    %26 = vector.extract_strided_slice %25 {offsets = [0, 1], sizes = [16, 63], strides = [1, 1]} : vector<16x64xf32> to vector<16x63xf32>
    %27 = tpu.concatenate %26, %7 in 1 : vector<16x63xf32>, vector<16x1xf32> -> vector<16x64xf32>
    %28 = vector.extract_strided_slice %25 {offsets = [0, 0], sizes = [16, 63], strides = [1, 1]} : vector<16x64xf32> to vector<16x63xf32>
    %29 = tpu.concatenate %7, %28 in 1 : vector<16x1xf32>, vector<16x63xf32> -> vector<16x64xf32>
    %30 = arith.mulf %25, %2 : vector<16x64xf32>
    %31 = arith.mulf %27, %4 : vector<16x64xf32>
    %32 = arith.addf %30, %31 : vector<16x64xf32>
    %33 = arith.mulf %29, %6 : vector<16x64xf32>
    %34 = arith.addf %32, %33 : vector<16x64xf32>
    %35 = vector.extract_strided_slice %34 {offsets = [0, 0], sizes = [16, 32], strides = [1, 1]} : vector<16x64xf32> to vector<16x32xf32>
    %36 = vector.extract_strided_slice %34 {offsets = [0, 32], sizes = [16, 32], strides = [1, 1]} : vector<16x64xf32> to vector<16x32xf32>
    %37 = vector.extract_strided_slice %24 {offsets = [0, 64], sizes = [16, 32], strides = [1, 1]} : vector<16x96xf32> to vector<16x32xf32>
    %38 = vector.shape_cast %35 : vector<16x32xf32> to vector<2x8x32xf32>
    %39 = vector.shape_cast %36 : vector<16x32xf32> to vector<2x8x32xf32>
    %40 = vector.shape_cast %37 : vector<16x32xf32> to vector<2x8x32xf32>
    %41 = vector.extract_strided_slice %38 {offsets = [0, 0, 0], sizes = [2, 8, 8], strides = [1, 1, 1]} : vector<2x8x32xf32> to vector<2x8x8xf32>
    %42 = vector.extract_strided_slice %38 {offsets = [0, 0, 8], sizes = [2, 8, 8], strides = [1, 1, 1]} : vector<2x8x32xf32> to vector<2x8x8xf32>
    %43 = vector.extract_strided_slice %38 {offsets = [0, 0, 16], sizes = [2, 8, 8], strides = [1, 1, 1]} : vector<2x8x32xf32> to vector<2x8x8xf32>
    %44 = vector.extract_strided_slice %38 {offsets = [0, 0, 24], sizes = [2, 8, 8], strides = [1, 1, 1]} : vector<2x8x32xf32> to vector<2x8x8xf32>
    %45 = tpu.concatenate %41, %42, %43, %44 in 0 : vector<2x8x8xf32>, vector<2x8x8xf32>, vector<2x8x8xf32>, vector<2x8x8xf32> -> vector<8x8x8xf32>
    %46 = vector.extract_strided_slice %39 {offsets = [0, 0, 0], sizes = [2, 8, 8], strides = [1, 1, 1]} : vector<2x8x32xf32> to vector<2x8x8xf32>
    %47 = vector.extract_strided_slice %39 {offsets = [0, 0, 8], sizes = [2, 8, 8], strides = [1, 1, 1]} : vector<2x8x32xf32> to vector<2x8x8xf32>
    %48 = vector.extract_strided_slice %39 {offsets = [0, 0, 16], sizes = [2, 8, 8], strides = [1, 1, 1]} : vector<2x8x32xf32> to vector<2x8x8xf32>
    %49 = vector.extract_strided_slice %39 {offsets = [0, 0, 24], sizes = [2, 8, 8], strides = [1, 1, 1]} : vector<2x8x32xf32> to vector<2x8x8xf32>
    %50 = tpu.concatenate %46, %47, %48, %49 in 0 : vector<2x8x8xf32>, vector<2x8x8xf32>, vector<2x8x8xf32>, vector<2x8x8xf32> -> vector<8x8x8xf32>
    %51 = vector.extract_strided_slice %40 {offsets = [0, 0, 0], sizes = [2, 8, 16], strides = [1, 1, 1]} : vector<2x8x32xf32> to vector<2x8x16xf32>
    %52 = vector.extract_strided_slice %40 {offsets = [0, 0, 16], sizes = [2, 8, 16], strides = [1, 1, 1]} : vector<2x8x32xf32> to vector<2x8x16xf32>
    %53 = vector.extract_strided_slice %40 {offsets = [0, 0, 0], sizes = [2, 8, 16], strides = [1, 1, 1]} : vector<2x8x32xf32> to vector<2x8x16xf32>
    %54 = vector.extract_strided_slice %40 {offsets = [0, 0, 16], sizes = [2, 8, 16], strides = [1, 1, 1]} : vector<2x8x32xf32> to vector<2x8x16xf32>
    %55 = tpu.concatenate %51, %52, %53, %54 in 0 : vector<2x8x16xf32>, vector<2x8x16xf32>, vector<2x8x16xf32>, vector<2x8x16xf32> -> vector<8x8x16xf32>
    "tpu.trace_start"() <{level = 10 : i32, message = "bqd,bkd->bqk"}> : () -> ()
    %cst_15 = arith.constant dense<0.000000e+00> : vector<8x8x8xf32>
    %56 = tpu.matmul %45, %50, %cst_15 {dimension_numbers = #tpu.dot_dimension_numbers<[2], [2], [1], [1], [0, 0, 0, 1, 1, 1], [0], [0]>} : vector<8x8x8xf32>, vector<8x8x8xf32>, vector<8x8x8xf32> -> vector<8x8x8xf32>
    %cst_16 = arith.constant -1.000000e+30 : f32
    "tpu.trace_stop"() : () -> ()
    %57 = vector.broadcast %cst_16 : f32 to vector<8x8x8xf32>
    %58 = arith.select %10, %56, %57 : vector<8x8x8xi1>, vector<8x8x8xf32>
    %cst_17 = arith.constant dense<0xFF800000> : vector<8x8xf32>
    %59 = vector.multi_reduction <maximumf>, %58, %cst_17 [2] : vector<8x8x8xf32> to vector<8x8xf32>
    %60 = vector.shape_cast %59 : vector<8x8xf32> to vector<8x8x1xf32>
    %61 = vector.broadcast %60 : vector<8x8x1xf32> to vector<8x8x8xf32>
    %62 = arith.subf %58, %61 : vector<8x8x8xf32>
    %63 = math.exp %62 : vector<8x8x8xf32>
    %cst_18 = arith.constant dense<0.000000e+00> : vector<8x8xf32>
    %64 = vector.multi_reduction <add>, %63, %cst_18 [2] : vector<8x8x8xf32> to vector<8x8xf32>
    %65 = vector.shape_cast %64 : vector<8x8xf32> to vector<8x8x1xf32>
    %66 = tpu.reciprocal %65 {approx = true} : vector<8x8x1xf32> -> vector<8x8x1xf32>
    %67 = vector.broadcast %66 : vector<8x8x1xf32> to vector<8x8x8xf32>
    %68 = arith.mulf %63, %67 : vector<8x8x8xf32>
    "tpu.trace_start"() <{level = 10 : i32, message = "bqk,bkd->bqd"}> : () -> ()
    %cst_19 = arith.constant dense<0.000000e+00> : vector<8x8x16xf32>
    %69 = tpu.matmul %68, %55, %cst_19 {dimension_numbers = #tpu.dot_dimension_numbers<[2], [1], [1], [2], [0, 0, 0, 1, 1, 2], [0], [0]>} : vector<8x8x8xf32>, vector<8x8x16xf32>, vector<8x8x16xf32> -> vector<8x8x16xf32>
    "tpu.trace_stop"() : () -> ()
    %70 = vector.extract_strided_slice %69 {offsets = [0, 0, 0], sizes = [4, 8, 16], strides = [1, 1, 1]} : vector<8x8x16xf32> to vector<4x8x16xf32>
    %71 = vector.extract_strided_slice %69 {offsets = [4, 0, 0], sizes = [4, 8, 16], strides = [1, 1, 1]} : vector<8x8x16xf32> to vector<4x8x16xf32>
    %72 = vector.broadcast %11 : f32 to vector<4x8x16xf32>
    %73 = arith.mulf %72, %71 : vector<4x8x16xf32>
    %74 = arith.subf %70, %73 : vector<4x8x16xf32>
    %75 = arith.mulf %74, %74 : vector<4x8x16xf32>
    %cst_20 = arith.constant dense<0.000000e+00> : vector<4x8xf32>
    %76 = vector.multi_reduction <add>, %75, %cst_20 [2] : vector<4x8x16xf32> to vector<4x8xf32>
    %77 = vector.shape_cast %76 : vector<4x8xf32> to vector<4x8x1xf32>
    %cst_21 = arith.constant 6.250000e-02 : f32
    %78 = vector.broadcast %cst_21 : f32 to vector<4x8x1xf32>
    %79 = arith.mulf %77, %78 : vector<4x8x1xf32>
    %cst_22 = arith.constant 9.99999974E-6 : f32
    %80 = vector.broadcast %cst_22 : f32 to vector<4x8x1xf32>
    %81 = arith.addf %79, %80 : vector<4x8x1xf32>
    %82 = math.rsqrt %81 : vector<4x8x1xf32>
    %83 = vector.broadcast %82 : vector<4x8x1xf32> to vector<4x8x16xf32>
    %84 = arith.mulf %74, %83 : vector<4x8x16xf32>
    %cst_23 = arith.constant 8.000000e-01 : f32
    %85 = vector.broadcast %cst_23 : f32 to vector<4x8x16xf32>
    %86 = arith.mulf %84, %85 : vector<4x8x16xf32>
    %c0_24 = arith.constant 0 : index
    %c0_25 = arith.constant 0 : index
    %c0_26 = arith.constant 0 : index
    %87 = vector.load %arg6[%c0_24, %c0_25, %c0_26] : memref<2x32x32xf32, #tpu.memory_space<vmem>>, vector<1x32x32xf32>
    %88 = vector.shape_cast %87 : vector<1x32x32xf32> to vector<32x32xf32>
    %89 = vector.extract_strided_slice %86 {offsets = [0, 0, 0], sizes = [2, 8, 16], strides = [1, 1, 1]} : vector<4x8x16xf32> to vector<2x8x16xf32>
    %90 = vector.shape_cast %89 : vector<2x8x16xf32> to vector<16x16xf32>
    %91 = vector.extract_strided_slice %88 {offsets = [0, 0], sizes = [16, 32], strides = [1, 1]} : vector<32x32xf32> to vector<16x32xf32>
    %cst_27 = arith.constant dense<0.000000e+00> : vector<16x32xf32>
    %92 = tpu.matmul %90, %91, %cst_27 {dimension_numbers = #tpu.dot_dimension_numbers<[1], [0], [0], [1], [0, 0, 1, 1], [], []>} : vector<16x16xf32>, vector<16x32xf32>, vector<16x32xf32> -> vector<16x32xf32>
    %93 = vector.extract_strided_slice %86 {offsets = [2, 0, 0], sizes = [2, 8, 16], strides = [1, 1, 1]} : vector<4x8x16xf32> to vector<2x8x16xf32>
    %94 = vector.shape_cast %93 : vector<2x8x16xf32> to vector<16x16xf32>
    %95 = vector.extract_strided_slice %88 {offsets = [16, 0], sizes = [16, 32], strides = [1, 1]} : vector<32x32xf32> to vector<16x32xf32>
    %cst_28 = arith.constant dense<0.000000e+00> : vector<16x32xf32>
    %96 = tpu.matmul %94, %95, %cst_28 {dimension_numbers = #tpu.dot_dimension_numbers<[1], [0], [0], [1], [0, 0, 1, 1], [], []>} : vector<16x16xf32>, vector<16x32xf32>, vector<16x32xf32> -> vector<16x32xf32>
    %97 = arith.addf %92, %96 : vector<16x32xf32>
    %98 = arith.addf %0, %97 : vector<16x32xf32>
    %99 = arith.mulf %98, %98 : vector<16x32xf32>
    %cst_29 = arith.constant dense<0.000000e+00> : vector<16xf32>
    %100 = vector.multi_reduction <add>, %99, %cst_29 [1] : vector<16x32xf32> to vector<16xf32>
    %101 = vector.shape_cast %100 : vector<16xf32> to vector<16x1xf32>
    %cst_30 = arith.constant 3.125000e-02 : f32
    %102 = vector.broadcast %cst_30 : f32 to vector<16x1xf32>
    %103 = arith.mulf %101, %102 : vector<16x1xf32>
    %cst_31 = arith.constant 9.99999974E-6 : f32
    %104 = vector.broadcast %cst_31 : f32 to vector<16x1xf32>
    %105 = arith.addf %103, %104 : vector<16x1xf32>
    %106 = math.rsqrt %105 : vector<16x1xf32>
    %107 = vector.broadcast %106 : vector<16x1xf32> to vector<16x32xf32>
    %108 = arith.mulf %98, %107 : vector<16x32xf32>
    %c0_32 = arith.constant 0 : index
    %c0_33 = arith.constant 0 : index
    %c0_34 = arith.constant 0 : index
    %109 = vector.load %arg7[%c0_32, %c0_33, %c0_34] : memref<2x32x128xf32, #tpu.memory_space<vmem>>, vector<1x32x128xf32>
    %110 = vector.shape_cast %109 : vector<1x32x128xf32> to vector<32x128xf32>
    %cst_35 = arith.constant dense<0.000000e+00> : vector<16x128xf32>
    %111 = tpu.matmul %108, %110, %cst_35 {dimension_numbers = #tpu.dot_dimension_numbers<[1], [0], [0], [1], [0, 0, 1, 1], [], []>} : vector<16x32xf32>, vector<32x128xf32>, vector<16x128xf32> -> vector<16x128xf32>
    %c0_36 = arith.constant 0 : index
    %c0_37 = arith.constant 0 : index
    %c0_38 = arith.constant 0 : index
    %112 = vector.load %arg8[%c0_36, %c0_37, %c0_38] : memref<2x32x128xf32, #tpu.memory_space<vmem>>, vector<1x32x128xf32>
    %113 = vector.shape_cast %112 : vector<1x32x128xf32> to vector<32x128xf32>
    %cst_39 = arith.constant dense<0.000000e+00> : vector<16x128xf32>
    %114 = tpu.matmul %108, %113, %cst_39 {dimension_numbers = #tpu.dot_dimension_numbers<[1], [0], [0], [1], [0, 0, 1, 1], [], []>} : vector<16x32xf32>, vector<32x128xf32>, vector<16x128xf32> -> vector<16x128xf32>
    %115 = arith.negf %114 : vector<16x128xf32>
    %116 = math.exp %115 : vector<16x128xf32>
    %cst_40 = arith.constant 1.000000e+00 : f32
    %117 = vector.broadcast %cst_40 : f32 to vector<16x128xf32>
    %118 = arith.addf %117, %116 : vector<16x128xf32>
    %119 = arith.divf %117, %118 : vector<16x128xf32>
    %120 = arith.mulf %114, %119 : vector<16x128xf32>
    %121 = arith.mulf %111, %120 : vector<16x128xf32>
    %c0_41 = arith.constant 0 : index
    %c0_42 = arith.constant 0 : index
    %c0_43 = arith.constant 0 : index
    %122 = vector.load %arg9[%c0_41, %c0_42, %c0_43] : memref<2x128x32xf32, #tpu.memory_space<vmem>>, vector<1x128x32xf32>
    %123 = vector.shape_cast %122 : vector<1x128x32xf32> to vector<128x32xf32>
    %cst_44 = arith.constant dense<0.000000e+00> : vector<16x32xf32>
    %124 = tpu.matmul %121, %123, %cst_44 {dimension_numbers = #tpu.dot_dimension_numbers<[1], [0], [0], [1], [0, 0, 1, 1], [], []>} : vector<16x128xf32>, vector<128x32xf32>, vector<16x32xf32> -> vector<16x32xf32>
    %125 = arith.addf %98, %124 : vector<16x32xf32>
    %c1 = arith.constant 1 : index
    %126 = memref.load %arg0[%c1] : memref<2xf32, #tpu.memory_space<smem>>
    %127 = arith.mulf %125, %125 : vector<16x32xf32>
    %cst_45 = arith.constant dense<0.000000e+00> : vector<16xf32>
    %128 = vector.multi_reduction <add>, %127, %cst_45 [1] : vector<16x32xf32> to vector<16xf32>
    %129 = vector.shape_cast %128 : vector<16xf32> to vector<16x1xf32>
    %cst_46 = arith.constant 3.125000e-02 : f32
    %130 = vector.broadcast %cst_46 : f32 to vector<16x1xf32>
    %131 = arith.mulf %129, %130 : vector<16x1xf32>
    %cst_47 = arith.constant 9.99999974E-6 : f32
    %132 = vector.broadcast %cst_47 : f32 to vector<16x1xf32>
    %133 = arith.addf %131, %132 : vector<16x1xf32>
    %134 = math.rsqrt %133 : vector<16x1xf32>
    %135 = vector.broadcast %134 : vector<16x1xf32> to vector<16x32xf32>
    %136 = arith.mulf %125, %135 : vector<16x32xf32>
    %c1_48 = arith.constant 1 : index
    %c0_49 = arith.constant 0 : index
    %c0_50 = arith.constant 0 : index
    %137 = vector.load %arg5[%c1_48, %c0_49, %c0_50] : memref<2x32x96xf32, #tpu.memory_space<vmem>>, vector<1x32x96xf32>
    %138 = vector.shape_cast %137 : vector<1x32x96xf32> to vector<32x96xf32>
    %cst_51 = arith.constant dense<0.000000e+00> : vector<16x96xf32>
    %139 = tpu.matmul %136, %138, %cst_51 {dimension_numbers = #tpu.dot_dimension_numbers<[1], [0], [0], [1], [0, 0, 1, 1], [], []>} : vector<16x32xf32>, vector<32x96xf32>, vector<16x96xf32> -> vector<16x96xf32>
    %140 = vector.extract_strided_slice %139 {offsets = [0, 0], sizes = [16, 64], strides = [1, 1]} : vector<16x96xf32> to vector<16x64xf32>
    %141 = vector.extract_strided_slice %140 {offsets = [0, 1], sizes = [16, 63], strides = [1, 1]} : vector<16x64xf32> to vector<16x63xf32>
    %142 = tpu.concatenate %141, %7 in 1 : vector<16x63xf32>, vector<16x1xf32> -> vector<16x64xf32>
    %143 = vector.extract_strided_slice %140 {offsets = [0, 0], sizes = [16, 63], strides = [1, 1]} : vector<16x64xf32> to vector<16x63xf32>
    %144 = tpu.concatenate %7, %143 in 1 : vector<16x1xf32>, vector<16x63xf32> -> vector<16x64xf32>
    %145 = arith.mulf %140, %2 : vector<16x64xf32>
    %146 = arith.mulf %142, %4 : vector<16x64xf32>
    %147 = arith.addf %145, %146 : vector<16x64xf32>
    %148 = arith.mulf %144, %6 : vector<16x64xf32>
    %149 = arith.addf %147, %148 : vector<16x64xf32>
    %150 = vector.extract_strided_slice %149 {offsets = [0, 0], sizes = [16, 32], strides = [1, 1]} : vector<16x64xf32> to vector<16x32xf32>
    %151 = vector.extract_strided_slice %149 {offsets = [0, 32], sizes = [16, 32], strides = [1, 1]} : vector<16x64xf32> to vector<16x32xf32>
    %152 = vector.extract_strided_slice %139 {offsets = [0, 64], sizes = [16, 32], strides = [1, 1]} : vector<16x96xf32> to vector<16x32xf32>
    %153 = vector.shape_cast %150 : vector<16x32xf32> to vector<2x8x32xf32>
    %154 = vector.shape_cast %151 : vector<16x32xf32> to vector<2x8x32xf32>
    %155 = vector.shape_cast %152 : vector<16x32xf32> to vector<2x8x32xf32>
    %156 = vector.extract_strided_slice %153 {offsets = [0, 0, 0], sizes = [2, 8, 8], strides = [1, 1, 1]} : vector<2x8x32xf32> to vector<2x8x8xf32>
    %157 = vector.extract_strided_slice %153 {offsets = [0, 0, 8], sizes = [2, 8, 8], strides = [1, 1, 1]} : vector<2x8x32xf32> to vector<2x8x8xf32>
    %158 = vector.extract_strided_slice %153 {offsets = [0, 0, 16], sizes = [2, 8, 8], strides = [1, 1, 1]} : vector<2x8x32xf32> to vector<2x8x8xf32>
    %159 = vector.extract_strided_slice %153 {offsets = [0, 0, 24], sizes = [2, 8, 8], strides = [1, 1, 1]} : vector<2x8x32xf32> to vector<2x8x8xf32>
    %160 = tpu.concatenate %156, %157, %158, %159 in 0 : vector<2x8x8xf32>, vector<2x8x8xf32>, vector<2x8x8xf32>, vector<2x8x8xf32> -> vector<8x8x8xf32>
    %161 = vector.extract_strided_slice %154 {offsets = [0, 0, 0], sizes = [2, 8, 8], strides = [1, 1, 1]} : vector<2x8x32xf32> to vector<2x8x8xf32>
    %162 = vector.extract_strided_slice %154 {offsets = [0, 0, 8], sizes = [2, 8, 8], strides = [1, 1, 1]} : vector<2x8x32xf32> to vector<2x8x8xf32>
    %163 = vector.extract_strided_slice %154 {offsets = [0, 0, 16], sizes = [2, 8, 8], strides = [1, 1, 1]} : vector<2x8x32xf32> to vector<2x8x8xf32>
    %164 = vector.extract_strided_slice %154 {offsets = [0, 0, 24], sizes = [2, 8, 8], strides = [1, 1, 1]} : vector<2x8x32xf32> to vector<2x8x8xf32>
    %165 = tpu.concatenate %161, %162, %163, %164 in 0 : vector<2x8x8xf32>, vector<2x8x8xf32>, vector<2x8x8xf32>, vector<2x8x8xf32> -> vector<8x8x8xf32>
    %166 = vector.extract_strided_slice %155 {offsets = [0, 0, 0], sizes = [2, 8, 16], strides = [1, 1, 1]} : vector<2x8x32xf32> to vector<2x8x16xf32>
    %167 = vector.extract_strided_slice %155 {offsets = [0, 0, 16], sizes = [2, 8, 16], strides = [1, 1, 1]} : vector<2x8x32xf32> to vector<2x8x16xf32>
    %168 = vector.extract_strided_slice %155 {offsets = [0, 0, 0], sizes = [2, 8, 16], strides = [1, 1, 1]} : vector<2x8x32xf32> to vector<2x8x16xf32>
    %169 = vector.extract_strided_slice %155 {offsets = [0, 0, 16], sizes = [2, 8, 16], strides = [1, 1, 1]} : vector<2x8x32xf32> to vector<2x8x16xf32>
    %170 = tpu.concatenate %166, %167, %168, %169 in 0 : vector<2x8x16xf32>, vector<2x8x16xf32>, vector<2x8x16xf32>, vector<2x8x16xf32> -> vector<8x8x16xf32>
    "tpu.trace_start"() <{level = 10 : i32, message = "bqd,bkd->bqk"}> : () -> ()
    %cst_52 = arith.constant dense<0.000000e+00> : vector<8x8x8xf32>
    %171 = tpu.matmul %160, %165, %cst_52 {dimension_numbers = #tpu.dot_dimension_numbers<[2], [2], [1], [1], [0, 0, 0, 1, 1, 1], [0], [0]>} : vector<8x8x8xf32>, vector<8x8x8xf32>, vector<8x8x8xf32> -> vector<8x8x8xf32>
    %cst_53 = arith.constant -1.000000e+30 : f32
    "tpu.trace_stop"() : () -> ()
    %172 = vector.broadcast %cst_53 : f32 to vector<8x8x8xf32>
    %173 = arith.select %10, %171, %172 : vector<8x8x8xi1>, vector<8x8x8xf32>
    %cst_54 = arith.constant dense<0xFF800000> : vector<8x8xf32>
    %174 = vector.multi_reduction <maximumf>, %173, %cst_54 [2] : vector<8x8x8xf32> to vector<8x8xf32>
    %175 = vector.shape_cast %174 : vector<8x8xf32> to vector<8x8x1xf32>
    %176 = vector.broadcast %175 : vector<8x8x1xf32> to vector<8x8x8xf32>
    %177 = arith.subf %173, %176 : vector<8x8x8xf32>
    %178 = math.exp %177 : vector<8x8x8xf32>
    %cst_55 = arith.constant dense<0.000000e+00> : vector<8x8xf32>
    %179 = vector.multi_reduction <add>, %178, %cst_55 [2] : vector<8x8x8xf32> to vector<8x8xf32>
    %180 = vector.shape_cast %179 : vector<8x8xf32> to vector<8x8x1xf32>
    %181 = tpu.reciprocal %180 {approx = true} : vector<8x8x1xf32> -> vector<8x8x1xf32>
    %182 = vector.broadcast %181 : vector<8x8x1xf32> to vector<8x8x8xf32>
    %183 = arith.mulf %178, %182 : vector<8x8x8xf32>
    "tpu.trace_start"() <{level = 10 : i32, message = "bqk,bkd->bqd"}> : () -> ()
    %cst_56 = arith.constant dense<0.000000e+00> : vector<8x8x16xf32>
    %184 = tpu.matmul %183, %170, %cst_56 {dimension_numbers = #tpu.dot_dimension_numbers<[2], [1], [1], [2], [0, 0, 0, 1, 1, 2], [0], [0]>} : vector<8x8x8xf32>, vector<8x8x16xf32>, vector<8x8x16xf32> -> vector<8x8x16xf32>
    "tpu.trace_stop"() : () -> ()
    %185 = vector.extract_strided_slice %184 {offsets = [0, 0, 0], sizes = [4, 8, 16], strides = [1, 1, 1]} : vector<8x8x16xf32> to vector<4x8x16xf32>
    %186 = vector.extract_strided_slice %184 {offsets = [4, 0, 0], sizes = [4, 8, 16], strides = [1, 1, 1]} : vector<8x8x16xf32> to vector<4x8x16xf32>
    %187 = vector.broadcast %126 : f32 to vector<4x8x16xf32>
    %188 = arith.mulf %187, %186 : vector<4x8x16xf32>
    %189 = arith.subf %185, %188 : vector<4x8x16xf32>
    %190 = arith.mulf %189, %189 : vector<4x8x16xf32>
    %cst_57 = arith.constant dense<0.000000e+00> : vector<4x8xf32>
    %191 = vector.multi_reduction <add>, %190, %cst_57 [2] : vector<4x8x16xf32> to vector<4x8xf32>
    %192 = vector.shape_cast %191 : vector<4x8xf32> to vector<4x8x1xf32>
    %cst_58 = arith.constant 6.250000e-02 : f32
    %193 = vector.broadcast %cst_58 : f32 to vector<4x8x1xf32>
    %194 = arith.mulf %192, %193 : vector<4x8x1xf32>
    %cst_59 = arith.constant 9.99999974E-6 : f32
    %195 = vector.broadcast %cst_59 : f32 to vector<4x8x1xf32>
    %196 = arith.addf %194, %195 : vector<4x8x1xf32>
    %197 = math.rsqrt %196 : vector<4x8x1xf32>
    %198 = vector.broadcast %197 : vector<4x8x1xf32> to vector<4x8x16xf32>
    %199 = arith.mulf %189, %198 : vector<4x8x16xf32>
    %cst_60 = arith.constant 0.644490957 : f32
    %200 = vector.broadcast %cst_60 : f32 to vector<4x8x16xf32>
    %201 = arith.mulf %199, %200 : vector<4x8x16xf32>
    %c1_61 = arith.constant 1 : index
    %c0_62 = arith.constant 0 : index
    %c0_63 = arith.constant 0 : index
    %202 = vector.load %arg6[%c1_61, %c0_62, %c0_63] : memref<2x32x32xf32, #tpu.memory_space<vmem>>, vector<1x32x32xf32>
    %203 = vector.shape_cast %202 : vector<1x32x32xf32> to vector<32x32xf32>
    %204 = vector.extract_strided_slice %201 {offsets = [0, 0, 0], sizes = [2, 8, 16], strides = [1, 1, 1]} : vector<4x8x16xf32> to vector<2x8x16xf32>
    %205 = vector.shape_cast %204 : vector<2x8x16xf32> to vector<16x16xf32>
    %206 = vector.extract_strided_slice %203 {offsets = [0, 0], sizes = [16, 32], strides = [1, 1]} : vector<32x32xf32> to vector<16x32xf32>
    %cst_64 = arith.constant dense<0.000000e+00> : vector<16x32xf32>
    %207 = tpu.matmul %205, %206, %cst_64 {dimension_numbers = #tpu.dot_dimension_numbers<[1], [0], [0], [1], [0, 0, 1, 1], [], []>} : vector<16x16xf32>, vector<16x32xf32>, vector<16x32xf32> -> vector<16x32xf32>
    %208 = vector.extract_strided_slice %201 {offsets = [2, 0, 0], sizes = [2, 8, 16], strides = [1, 1, 1]} : vector<4x8x16xf32> to vector<2x8x16xf32>
    %209 = vector.shape_cast %208 : vector<2x8x16xf32> to vector<16x16xf32>
    %210 = vector.extract_strided_slice %203 {offsets = [16, 0], sizes = [16, 32], strides = [1, 1]} : vector<32x32xf32> to vector<16x32xf32>
    %cst_65 = arith.constant dense<0.000000e+00> : vector<16x32xf32>
    %211 = tpu.matmul %209, %210, %cst_65 {dimension_numbers = #tpu.dot_dimension_numbers<[1], [0], [0], [1], [0, 0, 1, 1], [], []>} : vector<16x16xf32>, vector<16x32xf32>, vector<16x32xf32> -> vector<16x32xf32>
    %212 = arith.addf %207, %211 : vector<16x32xf32>
    %213 = arith.addf %125, %212 : vector<16x32xf32>
    %214 = arith.mulf %213, %213 : vector<16x32xf32>
    %cst_66 = arith.constant dense<0.000000e+00> : vector<16xf32>
    %215 = vector.multi_reduction <add>, %214, %cst_66 [1] : vector<16x32xf32> to vector<16xf32>
    %216 = vector.shape_cast %215 : vector<16xf32> to vector<16x1xf32>
    %cst_67 = arith.constant 3.125000e-02 : f32
    %217 = vector.broadcast %cst_67 : f32 to vector<16x1xf32>
    %218 = arith.mulf %216, %217 : vector<16x1xf32>
    %cst_68 = arith.constant 9.99999974E-6 : f32
    %219 = vector.broadcast %cst_68 : f32 to vector<16x1xf32>
    %220 = arith.addf %218, %219 : vector<16x1xf32>
    %221 = math.rsqrt %220 : vector<16x1xf32>
    %222 = vector.broadcast %221 : vector<16x1xf32> to vector<16x32xf32>
    %223 = arith.mulf %213, %222 : vector<16x32xf32>
    %c1_69 = arith.constant 1 : index
    %c0_70 = arith.constant 0 : index
    %c0_71 = arith.constant 0 : index
    %224 = vector.load %arg7[%c1_69, %c0_70, %c0_71] : memref<2x32x128xf32, #tpu.memory_space<vmem>>, vector<1x32x128xf32>
    %225 = vector.shape_cast %224 : vector<1x32x128xf32> to vector<32x128xf32>
    %cst_72 = arith.constant dense<0.000000e+00> : vector<16x128xf32>
    %226 = tpu.matmul %223, %225, %cst_72 {dimension_numbers = #tpu.dot_dimension_numbers<[1], [0], [0], [1], [0, 0, 1, 1], [], []>} : vector<16x32xf32>, vector<32x128xf32>, vector<16x128xf32> -> vector<16x128xf32>
    %c1_73 = arith.constant 1 : index
    %c0_74 = arith.constant 0 : index
    %c0_75 = arith.constant 0 : index
    %227 = vector.load %arg8[%c1_73, %c0_74, %c0_75] : memref<2x32x128xf32, #tpu.memory_space<vmem>>, vector<1x32x128xf32>
    %228 = vector.shape_cast %227 : vector<1x32x128xf32> to vector<32x128xf32>
    %cst_76 = arith.constant dense<0.000000e+00> : vector<16x128xf32>
    %229 = tpu.matmul %223, %228, %cst_76 {dimension_numbers = #tpu.dot_dimension_numbers<[1], [0], [0], [1], [0, 0, 1, 1], [], []>} : vector<16x32xf32>, vector<32x128xf32>, vector<16x128xf32> -> vector<16x128xf32>
    %230 = arith.negf %229 : vector<16x128xf32>
    %231 = math.exp %230 : vector<16x128xf32>
    %cst_77 = arith.constant 1.000000e+00 : f32
    %232 = vector.broadcast %cst_77 : f32 to vector<16x128xf32>
    %233 = arith.addf %232, %231 : vector<16x128xf32>
    %234 = arith.divf %232, %233 : vector<16x128xf32>
    %235 = arith.mulf %229, %234 : vector<16x128xf32>
    %236 = arith.mulf %226, %235 : vector<16x128xf32>
    %c1_78 = arith.constant 1 : index
    %c0_79 = arith.constant 0 : index
    %c0_80 = arith.constant 0 : index
    %237 = vector.load %arg9[%c1_78, %c0_79, %c0_80] : memref<2x128x32xf32, #tpu.memory_space<vmem>>, vector<1x128x32xf32>
    %238 = vector.shape_cast %237 : vector<1x128x32xf32> to vector<128x32xf32>
    %cst_81 = arith.constant dense<0.000000e+00> : vector<16x32xf32>
    %239 = tpu.matmul %236, %238, %cst_81 {dimension_numbers = #tpu.dot_dimension_numbers<[1], [0], [0], [1], [0, 0, 1, 1], [], []>} : vector<16x128xf32>, vector<128x32xf32>, vector<16x32xf32> -> vector<16x32xf32>
    %240 = arith.addf %213, %239 : vector<16x32xf32>
    %c0_82 = arith.constant 0 : index
    %c0_83 = arith.constant 0 : index
    %241 = vector.load %arg10[%c0_82, %c0_83] : memref<32x128xf32, #tpu.memory_space<vmem>>, vector<32x128xf32>
    %cst_84 = arith.constant dense<0.000000e+00> : vector<16x128xf32>
    %242 = tpu.matmul %240, %241, %cst_84 {dimension_numbers = #tpu.dot_dimension_numbers<[1], [0], [0], [1], [0, 0, 1, 1], [], []>} : vector<16x32xf32>, vector<32x128xf32>, vector<16x128xf32> -> vector<16x128xf32>
    %c0_85 = arith.constant 0 : index
    %c0_86 = arith.constant 0 : index
    %243 = vector.load %arg11[%c0_85, %c0_86] : memref<16x128xf32, #tpu.memory_space<vmem>>, vector<16x128xf32>
    tpu.vector_store %arg11[%c0_85, %c0_86], %242 {strides = array<i32>} : memref<16x128xf32, #tpu.memory_space<vmem>>, vector<16x128xf32>,
    return
  }
}

</mosaic_0001>

<llo_original>
// kernel: tile.22
$region0: #{tile.22}
  %s0 = inlined_call_operand.vmem [shape: f32[8,4,8], index: 0, kind: input, shape index: {}]
  %s1 = inlined_call_operand.vmem [shape: f32[8,32], index: 1, kind: output, shape index: {}]
  $region1: #{tile.22} parent=0
    #allocation0 [shape = 'u8[32768]{0}', space=vmem, size = 0x8000, scoped, tag = 'scoped mem for input reshape']
    %s3 = sshllo.u32 0, 4
    %s4 = smul.addr 4, 7
    %s5 = scalar_lea.vmem %s0, %s4
    %v6 = vld [vmem:[%s5] sm:%s3]
    %s7 = scalar_lea.vmem [#allocation0], 56
    %8 = vst [vmem:[%s7] sm:%s3] %v6
    %s9 = smul.addr 4, 6
    %s10 = scalar_lea.vmem %s0, %s9
    %v11 = vld [vmem:[%s10] sm:%s3]
    %s12 = scalar_lea.vmem [#allocation0], 48
    %13 = vst [vmem:[%s12] sm:%s3] %v11
    %s14 = smul.addr 4, 5
    %s15 = scalar_lea.vmem %s0, %s14
    %v16 = vld [vmem:[%s15] sm:%s3]
    %s17 = scalar_lea.vmem [#allocation0], 40
    %18 = vst [vmem:[%s17] sm:%s3] %v16
    %s19 = smul.addr 4, 4
    %s20 = scalar_lea.vmem %s0, %s19
    %v21 = vld [vmem:[%s20] sm:%s3]
    %s22 = scalar_lea.vmem [#allocation0], 32
    %23 = vst [vmem:[%s22] sm:%s3] %v21
    %s24 = smul.addr 4, 3
    %s25 = scalar_lea.vmem %s0, %s24
    %v26 = vld [vmem:[%s25] sm:%s3]
    %s27 = scalar_lea.vmem [#allocation0], 24
    %28 = vst [vmem:[%s27] sm:%s3] %v26
    %s29 = smul.addr 4, 2
    %s30 = scalar_lea.vmem %s0, %s29
    %v31 = vld [vmem:[%s30] sm:%s3]
    %s32 = scalar_lea.vmem [#allocation0], 16
    %33 = vst [vmem:[%s32] sm:%s3] %v31
    %s34 = scalar_lea.vmem %s0, 4
    %v35 = vld [vmem:[%s34] sm:%s3]
    %s36 = scalar_lea.vmem [#allocation0], 8
    %37 = vst [vmem:[%s36] sm:%s3] %v35
    %v38 = vld [vmem:[%s0] sm:%s3]
    %39 = vst [vmem:[#allocation0] sm:%s3] %v38
    %v40 = vld [vmem:[#allocation0] ss:$8 sm:$0xf]
    %v41 = vld [vmem:[#allocation0] ss:$8 sm:$0xf0]
    %vm42 = vcmask 1047556
    %v43 = vsel %vm42, %v41, %v40
    %vm44 = vcmask 64512
    %45 = vst.msk [vmem:[%s1] sm:$0xff] %vm44, %v43
    %s46 = scalar_lea.vmem [#allocation0], 3
    %v47 = vld [vmem:[%s46] ss:$8 sm:$0xf]
    %s48 = scalar_lea.vmem [#allocation0], 3
    %v49 = vld [vmem:[%s48] ss:$8 sm:$0xf0]
    %vm50 = vcmask 1047556
    %v51 = vsel %vm50, %v49, %v47
    %52 = vrot.lane.b32.xlu0 %v51, 24
    %v53 = vpop.permute.xlu0 %52
    %vm54 = vcmask 261312
    %55 = vst.msk [vmem:[%s1] sm:$0xff] %vm54, %v53
    %s56 = scalar_lea.vmem [#allocation0], 2
    %v57 = vld [vmem:[%s56] ss:$8 sm:$0xf]
    %s58 = scalar_lea.vmem [#allocation0], 2
    %v59 = vld [vmem:[%s58] ss:$8 sm:$0xf0]
    %vm60 = vcmask 1047556
    %v61 = vsel %vm60, %v59, %v57
    %62 = vrot.lane.b32.xlu0 %v61, 16
    %v63 = vpop.permute.xlu0 %62
    %vm64 = vcmask 195712
    %65 = vst.msk [vmem:[%s1] sm:$0xff] %vm64, %v63
    %s66 = scalar_lea.vmem [#allocation0], 1
    %v67 = vld [vmem:[%s66] ss:$8 sm:$0xf]
    %s68 = scalar_lea.vmem [#allocation0], 1
    %v69 = vld [vmem:[%s68] ss:$8 sm:$0xf0]
    %vm70 = vcmask 1047556
    %v71 = vsel %vm70, %v69, %v67
    %72 = vrot.lane.b32.xlu0 %v71, 8
    %v73 = vpop.permute.xlu0 %72
    %vm74 = vcmask 130112
    %75 = vst.msk [vmem:[%s1] sm:$0xff] %vm74, %v73

// kernel: _lambda_.1
$region0: #{_lambda_.1}
  #allocation0 [shape = 'u32[]', space=smem, size = 0x4, offset = 0x4, fixed_abs, tag = 'smem constant byte address 0x4 - core index']
  #allocation1 [shape = 'u32[144,128]{1,0:T(1,128)}', space=vmem, size = 0x12000, scoped, tag = 'internal scratch']
  %s0 = inlined_call_operand.vmem [shape: f32[2], index: 0, kind: input, shape index: {}]
  %s1 = inlined_call_operand.vmem [shape: f32[16,32], index: 1, kind: input, shape index: {}]
  %s2 = inlined_call_operand.vmem [shape: f32[8,64], index: 2, kind: input, shape index: {}]
  %s3 = inlined_call_operand.vmem [shape: f32[8,64], index: 3, kind: input, shape index: {}]
  %s4 = inlined_call_operand.vmem [shape: f32[8,64], index: 4, kind: input, shape index: {}]
  %s5 = inlined_call_operand.vmem [shape: f32[2,32,96], index: 5, kind: input, shape index: {}]
  %s6 = inlined_call_operand.vmem [shape: f32[2,32,32], index: 6, kind: input, shape index: {}]
  %s7 = inlined_call_operand.vmem [shape: f32[2,32,128], index: 7, kind: input, shape index: {}]
  %s8 = inlined_call_operand.vmem [shape: f32[2,32,128], index: 8, kind: input, shape index: {}]
  %s9 = inlined_call_operand.vmem [shape: f32[2,128,32], index: 9, kind: input, shape index: {}]
  %s10 = inlined_call_operand.vmem [shape: f32[32,128], index: 10, kind: input, shape index: {}]
  %s11 = inlined_call_operand.vmem [shape: f32[16,128], index: 11, kind: output, shape index: {}]
  %s12 = sld [smem:[#allocation0]]
  $region58: #{_lambda_.1} parent=0
    _
  %s14 = ssub.s32 1, %s12
  %s15 = scalar_select 0, %s14, %s12
  $region1: #{_lambda_.1} parent=0
    #allocation2 [shape = 'u8[512]{0}', space=smem, size = 0x200, scoped, tag = 'input window, operand 0, single buffered']
    #allocation3 [shape = 's32[1]{0}', space=sflag, size = 0x4, scoped, tag = 'scoped memory for _lambda_.1']
    %16 = vsyncpa [#allocation3], 0
    // Predicated region
    $region2: #{_lambda_.1} parent=1 // pred_check
      _
    $region3: #{_lambda_.1} parent=1 // pred_check_branch
      %18 = sbr.rel (0) target = $region5
    $region4: #{_lambda_.1} parent=1 // pred_region
      %s20 = ssub.s32 16, 16
      %21 = vsyncadd [#allocation3], %s20
      %s23 = sshll.u32 %s0, 4
      %s24 = int_to_ptr.vmem [resolvable:$true] %s23
      %26 = dma.vmem_to_smem %s24, 16, [#allocation2], [#allocation3]
    $region5: #{_lambda_.1} parent=1 // pred_fallthru
      _
    // Predicated region
    $region6: #{_lambda_.1} parent=1 // pred_check
      _
    $region7: #{_lambda_.1} parent=1 // pred_check_branch
      %28 = sbr.rel (0) target = $region9
    $region8: #{_lambda_.1} parent=1 // pred_region
      _
    $region9: #{_lambda_.1} parent=1 // pred_fallthru
      _
    // Predicated region
    $region10: #{_lambda_.1} parent=1 // pred_check
      _
    $region11: #{_lambda_.1} parent=1 // pred_check_branch
      %30 = sbr.rel (0) target = $region13
    $region12: #{_lambda_.1} parent=1 // pred_region
      _
    $region13: #{_lambda_.1} parent=1 // pred_fallthru
      _
    // Predicated region
    $region14: #{_lambda_.1} parent=1 // pred_check
      _
    $region15: #{_lambda_.1} parent=1 // pred_check_branch
      %32 = sbr.rel (0) target = $region17
    $region16: #{_lambda_.1} parent=1 // pred_region
      _
    $region17: #{_lambda_.1} parent=1 // pred_fallthru
      _
    // Predicated region
    $region18: #{_lambda_.1} parent=1 // pred_check
      _
    $region19: #{_lambda_.1} parent=1 // pred_check_branch
      %34 = sbr.rel (0) target = $region21
    $region20: #{_lambda_.1} parent=1 // pred_region
      _
    $region21: #{_lambda_.1} parent=1 // pred_fallthru
      _
    // Predicated region
    $region22: #{_lambda_.1} parent=1 // pred_check
      _
    $region23: #{_lambda_.1} parent=1 // pred_check_branch
      %36 = sbr.rel (0) target = $region25
    $region24: #{_lambda_.1} parent=1 // pred_region
      _
    $region25: #{_lambda_.1} parent=1 // pred_fallthru
      _
    // Predicated region
    $region26: #{_lambda_.1} parent=1 // pred_check
      _
    $region27: #{_lambda_.1} parent=1 // pred_check_branch
      %38 = sbr.rel (0) target = $region29
    $region28: #{_lambda_.1} parent=1 // pred_region
      _
    $region29: #{_lambda_.1} parent=1 // pred_fallthru
      _
    // Predicated region
    $region30: #{_lambda_.1} parent=1 // pred_check
      _
    $region31: #{_lambda_.1} parent=1 // pred_check_branch
      %40 = sbr.rel (0) target = $region33
    $region32: #{_lambda_.1} parent=1 // pred_region
      _
    $region33: #{_lambda_.1} parent=1 // pred_fallthru
      _
    // Predicated region
    $region34: #{_lambda_.1} parent=1 // pred_check
      _
    $region35: #{_lambda_.1} parent=1 // pred_check_branch
      %42 = sbr.rel (0) target = $region37
    $region36: #{_lambda_.1} parent=1 // pred_region
      _
    $region37: #{_lambda_.1} parent=1 // pred_fallthru
      _
    // Predicated region
    $region38: #{_lambda_.1} parent=1 // pred_check
      _
    $region39: #{_lambda_.1} parent=1 // pred_check_branch
      %44 = sbr.rel (0) target = $region41
    $region40: #{_lambda_.1} parent=1 // pred_region
      _
    $region41: #{_lambda_.1} parent=1 // pred_fallthru
      _
    // Predicated region
    $region42: #{_lambda_.1} parent=1 // pred_check
      _
    $region43: #{_lambda_.1} parent=1 // pred_check_branch
      %46 = sbr.rel (0) target = $region45
    $region44: #{_lambda_.1} parent=1 // pred_region
      _
    $region45: #{_lambda_.1} parent=1 // pred_fallthru
      _
    // Predicated region
    $region46: #{_lambda_.1} parent=1 // pred_check
      _
    $region47: #{_lambda_.1} parent=1 // pred_check_branch
      %48 = sbr.rel (0) target = $region49
    $region48: #{_lambda_.1} parent=1 // pred_region
      %49 = dma.done [#allocation3], 16
    $region49: #{_lambda_.1} parent=1 // pred_fallthru
      _
    %50 = sfence
    %v51 = vld [vmem:[%s1] sm:$0xff]
    %v52 = vld [vmem:[%s1 + $0x8] sm:$0xff]
    %v53 = vld [vmem:[%s2] sm:$0xff]
    %v54 = vld [vmem:[%s3] sm:$0xff]
    %v55 = vld [vmem:[%s4] sm:$0xff]
    %v56 = vlaneseq
    %v57 = vshrl.u32 %v56, 7
    %v58 = vlaneseq
    %v59 = vand.u32 %v58, 127
    %vm60 = vcmp.le.s32.totalorder %v59, %v57
    %s61 = sld [smem:[#allocation2]]
    %v62 = vmul.f32 %v51, %v51
    %v63 = vmul.f32 %v52, %v52
    %vm64 = vcmask 261120
    %v65 = vsel %vm64, %v62, 0.0
    %66 = vadd.xlane.f32.xlu0 %v65
    %v67 = vpop.xlane.xlu0 %66
    %v68 = vsel %vm64, %v63, 0.0
    %69 = vadd.xlane.f32.xlu0 %v68
    %v70 = vpop.xlane.xlu0 %69
    %v71 = vmul.f32 %v67, 0.03125
    %v72 = vmul.f32 %v70, 0.03125
    %v73 = vadd.f32 %v71, 1e-05
    %v74 = vadd.f32 %v72, 1e-05
    %v75 = vrsqrt.pop %v73
    %v76 = vrsqrt.pop %v74
    %v77 = vmul.f32 %v51, %v75
    %v78 = vmul.f32 %v52, %v76
    %v79 = vld [vmem:[%s5] sm:$0xff]
    %v80 = vld [vmem:[%s5 + $0x8] sm:$0xff]
    %v81 = vld [vmem:[%s5 + $0x10] sm:$0xff]
    %v82 = vld [vmem:[%s5 + $0x18] sm:$0xff]
    %v84 = vsel %vm64, %v77, 0
    %v87 = vsel %vm64, %v78, 0
    %89 = vmatprep.subr.mxu0 0.0
    %90 = vmatpush1.msra.mxu0 %v79
    %91 = vmatprep.subr.mxu0 0.0
    %92 = vmatpush1.msra.mxu0 %v80
    %93 = vmatprep.subr.mxu0 0.0
    %94 = vmatpush1.msra.mxu0 %v81
    %95 = vmatprep.subr.mxu0 0.0
    %96 = vmatpush1.msra.mxu0 %v82
    %97 = vmatprep.subr.mxu0 0.0
    %98 = vmatpush1.msra.mxu0 0.0
    %99 = vmatprep.subr.mxu0 0.0
    %100 = vmatpush1.msra.mxu0 0.0
    %101 = vmatprep.subr.mxu0 0.0
    %102 = vmatpush1.msra.mxu0 0.0
    %103 = vmatprep.subr.mxu0 0.0
    %104 = vmatpush1.msra.mxu0 0.0
    %105 = vmatprep.subr.mxu0 0.0
    %106 = vmatpush1.msra.mxu0 0.0
    %107 = vmatprep.subr.mxu0 0.0
    %108 = vmatpush1.msra.mxu0 0.0
    %109 = vmatprep.subr.mxu0 0.0
    %110 = vmatpush1.msra.mxu0 0.0
    %111 = vmatprep.subr.mxu0 0.0
    %112 = vmatpush1.msra.mxu0 0.0
    %113 = vmatprep.subr.mxu0 0.0
    %114 = vmatpush1.msra.mxu0 0.0
    %115 = vmatprep.subr.mxu0 0.0
    %116 = vmatpush1.msra.mxu0 0.0
    %117 = vmatprep.subr.mxu0 0.0
    %118 = vmatpush1.msra.mxu0 0.0
    %119 = vmatprep.subr.mxu0 0.0
    %120 = vmatpush1.msra.mxu0 0.0
    %121 = vmatprep.subr.mxu0 0.0
    %122 = vmatpush1.msra.mxu0 0.0
    %123 = vmatprep.subr.mxu0 0.0
    %124 = vmatpush1.msra.mxu0 0.0
    %125 = vmatprep.subr.mxu0 0.0
    %126 = vmatpush1.msra.mxu0 0.0
    %127 = vmatprep.subr.mxu0 0.0
    %128 = vmatpush1.msra.mxu0 0.0
    %129 = vmatprep.subr.mxu0 0.0
    %130 = vmatpush1.msra.mxu0 0.0
    %131 = vmatprep.subr.mxu0 0.0
    %132 = vmatpush1.msra.mxu0 0.0
    %133 = vmatprep.subr.mxu0 0.0
    %134 = vmatpush1.msra.mxu0 0.0
    %135 = vmatprep.subr.mxu0 0.0
    %136 = vmatpush1.msra.mxu0 0.0
    %137 = vmatprep.subr.mxu0 0.0
    %138 = vmatpush1.msra.mxu0 0.0
    %139 = vmatprep.subr.mxu0 0.0
    %140 = vmatpush1.msra.mxu0 0.0
    %141 = vmatprep.subr.mxu0 0.0
    %142 = vmatpush1.msra.mxu0 0.0
    %143 = vmatprep.subr.mxu0 0.0
    %144 = vmatpush1.msra.mxu0 0.0
    %145 = vmatprep.subr.mxu0 0.0
    %146 = vmatpush1.msra.mxu0 0.0
    %147 = vmatprep.subr.mxu0 0.0
    %148 = vmatpush1.msra.mxu0 0.0
    %149 = vmatprep.subr.mxu0 0.0
    %150 = vmatpush1.msra.mxu0 0.0
    %151 = vmatprep.subr.mxu0 0.0
    %152 = vmatpush1.msra.mxu0 0.0
    %153 = vmatprep.mubr.f32.mxu0 0.0
    %154 = vmatmul.mubr.f32.gmra.mrb[0].mxu0 %v84
    %v155 = vpop.f32.mrb[0].mxu0
    %v156 = vadd.f32 0.0, %v155
    %v157 = vpop.f32.mrb[0].mxu0
    %158 = vmatprep.mubr.f32.mxu0 0.0
    %159 = vmatmul.mubr.f32.gmra.mrb[0].mxu0 %v87
    %v160 = vpop.f32.mrb[0].mxu0
    %v161 = vadd.f32 0.0, %v160
    %v162 = vpop.f32.mrb[0].mxu0
    %163 = vdwg.mxu0
    %166 = vrot.lane.b32.xlu0 %v156, 127
    %v167 = vpop.permute.xlu0 %166
    %168 = vrot.lane.b32.xlu0 %v161, 127
    %v169 = vpop.permute.xlu0 %168
    %vm172 = vcmask 515072
    %v173 = vsel %vm172, %v167, 0.0
    %v174 = vsel %vm172, %v169, 0.0
    %175 = vrot.lane.b32.xlu0 %v156, 1
    %v176 = vpop.permute.xlu0 %175
    %177 = vrot.lane.b32.xlu0 %v161, 1
    %v178 = vpop.permute.xlu0 %177
    %vm181 = vcmask 7168
    %v182 = vsel %vm181, 0.0, %v176
    %v183 = vsel %vm181, 0.0, %v178
    %v184 = vmul.f32 %v156, %v53
    %v185 = vmul.f32 %v161, %v53
    %v186 = vmul.f32 %v173, %v54
    %v187 = vmul.f32 %v174, %v54
    %v188 = vadd.f32 %v184, %v186
    %v189 = vadd.f32 %v185, %v187
    %v190 = vmul.f32 %v182, %v55
    %v191 = vmul.f32 %v183, %v55
    %v192 = vadd.f32 %v188, %v190
    %v193 = vadd.f32 %v189, %v191
    %196 = vrot.lane.b32.xlu0 %v192, 120
    %v197 = vpop.permute.xlu0 %196
    %198 = vrot.lane.b32.xlu0 %v193, 120
    %v199 = vpop.permute.xlu0 %198
    %200 = vrot.lane.b32.xlu0 %v192, 112
    %v201 = vpop.permute.xlu0 %200
    %202 = vrot.lane.b32.xlu0 %v193, 112
    %v203 = vpop.permute.xlu0 %202
    %204 = vrot.lane.b32.xlu0 %v192, 104
    %v205 = vpop.permute.xlu0 %204
    %206 = vrot.lane.b32.xlu0 %v193, 104
    %v207 = vpop.permute.xlu0 %206
    %208 = vrot.lane.b32.xlu0 %v156, 112
    %v209 = vpop.permute.xlu0 %208
    %210 = vrot.lane.b32.xlu0 %v161, 112
    %v211 = vpop.permute.xlu0 %210
    %212 = vrot.lane.b32.xlu0 %v192, 96
    %v213 = vpop.permute.xlu0 %212
    %vm214 = vcmask 64512
    %v215 = vsel %vm214, %v192, 0
    %v217 = vsel %vm214, %v213, 0
    %219 = vmatprep.subr.mxu0 0.0
    %220 = vmatpush1.xpose.msra.mxu0 %v217
    %221 = vmatprep.subr.mxu0 0.0
    %222 = vmatpush1.xpose.msra.mxu0 0.0
    %223 = vmatprep.subr.mxu0 0.0
    %224 = vmatpush1.xpose.msra.mxu0 0.0
    %225 = vmatprep.subr.mxu0 0.0
    %226 = vmatpush1.xpose.msra.mxu0 0.0
    %227 = vmatprep.subr.mxu0 0.0
    %228 = vmatpush1.xpose.msra.mxu0 0.0
    %229 = vmatprep.subr.mxu0 0.0
    %230 = vmatpush1.xpose.msra.mxu0 0.0
    %231 = vmatprep.subr.mxu0 0.0
    %232 = vmatpush1.xpose.msra.mxu0 0.0
    %233 = vmatprep.subr.mxu0 0.0
    %234 = vmatpush1.xpose.msra.mxu0 0.0
    %235 = vmatprep.subr.mxu0 0.0
    %236 = vmatpush1.xpose.msra.mxu0 0.0
    %237 = vmatprep.subr.mxu0 0.0
    %238 = vmatpush1.xpose.msra.mxu0 0.0
    %239 = vmatprep.subr.mxu0 0.0
    %240 = vmatpush1.xpose.msra.mxu0 0.0
    %241 = vmatprep.subr.mxu0 0.0
    %242 = vmatpush1.xpose.msra.mxu0 0.0
    %243 = vmatprep.subr.mxu0 0.0
    %244 = vmatpush1.xpose.msra.mxu0 0.0
    %245 = vmatprep.subr.mxu0 0.0
    %246 = vmatpush1.xpose.msra.mxu0 0.0
    %247 = vmatprep.subr.mxu0 0.0
    %248 = vmatpush1.xpose.msra.mxu0 0.0
    %249 = vmatprep.subr.mxu0 0.0
    %250 = vmatpush1.xpose.msra.mxu0 0.0
    %251 = vmatprep.subr.mxu0 0.0
    %252 = vmatpush1.xpose.msra.mxu0 0.0
    %253 = vmatprep.subr.mxu0 0.0
    %254 = vmatpush1.xpose.msra.mxu0 0.0
    %255 = vmatprep.subr.mxu0 0.0
    %256 = vmatpush1.xpose.msra.mxu0 0.0
    %257 = vmatprep.subr.mxu0 0.0
    %258 = vmatpush1.xpose.msra.mxu0 0.0
    %259 = vmatprep.subr.mxu0 0.0
    %260 = vmatpush1.xpose.msra.mxu0 0.0
    %261 = vmatprep.subr.mxu0 0.0
    %262 = vmatpush1.xpose.msra.mxu0 0.0
    %263 = vmatprep.subr.mxu0 0.0
    %264 = vmatpush1.xpose.msra.mxu0 0.0
    %265 = vmatprep.subr.mxu0 0.0
    %266 = vmatpush1.xpose.msra.mxu0 0.0
    %267 = vmatprep.subr.mxu0 0.0
    %268 = vmatpush1.xpose.msra.mxu0 0.0
    %269 = vmatprep.subr.mxu0 0.0
    %270 = vmatpush1.xpose.msra.mxu0 0.0
    %271 = vmatprep.subr.mxu0 0.0
    %272 = vmatpush1.xpose.msra.mxu0 0.0
    %273 = vmatprep.subr.mxu0 0.0
    %274 = vmatpush1.xpose.msra.mxu0 0.0
    %275 = vmatprep.subr.mxu0 0.0
    %276 = vmatpush1.xpose.msra.mxu0 0.0
    %277 = vmatprep.subr.mxu0 0.0
    %278 = vmatpush1.xpose.msra.mxu0 0.0
    %279 = vmatprep.subr.mxu0 0.0
    %280 = vmatpush1.xpose.msra.mxu0 0.0
    %281 = vmatprep.subr.mxu0 0.0
    %282 = vmatpush1.xpose.msra.mxu0 0.0
    %283 = vmatprep.mubr.f32.mxu0 0.0
    %284 = vmatmul.mubr.f32.gmra.mrb[0].mxu0 %v215
    %v285 = vpop.f32.mrb[0].mxu0
    %v286 = vadd.f32 0.0, %v285
    %v287 = vpop.f32.mrb[0].mxu0
    %288 = vdwg.mxu0
    %289 = vrot.lane.b32.xlu0 %v193, 96
    %v290 = vpop.permute.xlu0 %289
    %v291 = vsel %vm214, %v193, 0
    %v293 = vsel %vm214, %v290, 0
    %295 = vmatprep.subr.mxu0 0.0
    %296 = vmatpush1.xpose.msra.mxu0 %v293
    %297 = vmatprep.subr.mxu0 0.0
    %298 = vmatpush1.xpose.msra.mxu0 0.0
    %299 = vmatprep.subr.mxu0 0.0
    %300 = vmatpush1.xpose.msra.mxu0 0.0
    %301 = vmatprep.subr.mxu0 0.0
    %302 = vmatpush1.xpose.msra.mxu0 0.0
    %303 = vmatprep.subr.mxu0 0.0
    %304 = vmatpush1.xpose.msra.mxu0 0.0
    %305 = vmatprep.subr.mxu0 0.0
    %306 = vmatpush1.xpose.msra.mxu0 0.0
    %307 = vmatprep.subr.mxu0 0.0
    %308 = vmatpush1.xpose.msra.mxu0 0.0
    %309 = vmatprep.subr.mxu0 0.0
    %310 = vmatpush1.xpose.msra.mxu0 0.0
    %311 = vmatprep.subr.mxu0 0.0
    %312 = vmatpush1.xpose.msra.mxu0 0.0
    %313 = vmatprep.subr.mxu0 0.0
    %314 = vmatpush1.xpose.msra.mxu0 0.0
    %315 = vmatprep.subr.mxu0 0.0
    %316 = vmatpush1.xpose.msra.mxu0 0.0
    %317 = vmatprep.subr.mxu0 0.0
    %318 = vmatpush1.xpose.msra.mxu0 0.0
    %319 = vmatprep.subr.mxu0 0.0
    %320 = vmatpush1.xpose.msra.mxu0 0.0
    %321 = vmatprep.subr.mxu0 0.0
    %322 = vmatpush1.xpose.msra.mxu0 0.0
    %323 = vmatprep.subr.mxu0 0.0
    %324 = vmatpush1.xpose.msra.mxu0 0.0
    %325 = vmatprep.subr.mxu0 0.0
    %326 = vmatpush1.xpose.msra.mxu0 0.0
    %327 = vmatprep.subr.mxu0 0.0
    %328 = vmatpush1.xpose.msra.mxu0 0.0
    %329 = vmatprep.subr.mxu0 0.0
    %330 = vmatpush1.xpose.msra.mxu0 0.0
    %331 = vmatprep.subr.mxu0 0.0
    %332 = vmatpush1.xpose.msra.mxu0 0.0
    %333 = vmatprep.subr.mxu0 0.0
    %334 = vmatpush1.xpose.msra.mxu0 0.0
    %335 = vmatprep.subr.mxu0 0.0
    %336 = vmatpush1.xpose.msra.mxu0 0.0
    %337 = vmatprep.subr.mxu0 0.0
    %338 = vmatpush1.xpose.msra.mxu0 0.0
    %339 = vmatprep.subr.mxu0 0.0
    %340 = vmatpush1.xpose.msra.mxu0 0.0
    %341 = vmatprep.subr.mxu0 0.0
    %342 = vmatpush1.xpose.msra.mxu0 0.0
    %343 = vmatprep.subr.mxu0 0.0
    %344 = vmatpush1.xpose.msra.mxu0 0.0
    %345 = vmatprep.subr.mxu0 0.0
    %346 = vmatpush1.xpose.msra.mxu0 0.0
    %347 = vmatprep.subr.mxu0 0.0
    %348 = vmatpush1.xpose.msra.mxu0 0.0
    %349 = vmatprep.subr.mxu0 0.0
    %350 = vmatpush1.xpose.msra.mxu0 0.0
    %351 = vmatprep.subr.mxu0 0.0
    %352 = vmatpush1.xpose.msra.mxu0 0.0
    %353 = vmatprep.subr.mxu0 0.0
    %354 = vmatpush1.xpose.msra.mxu0 0.0
    %355 = vmatprep.subr.mxu0 0.0
    %356 = vmatpush1.xpose.msra.mxu0 0.0
    %357 = vmatprep.subr.mxu0 0.0
    %358 = vmatpush1.xpose.msra.mxu0 0.0
    %359 = vmatprep.mubr.f32.mxu0 0.0
    %360 = vmatmul.mubr.f32.gmra.mrb[0].mxu0 %v291
    %v361 = vpop.f32.mrb[0].mxu0
    %v362 = vadd.f32 0.0, %v361
    %v363 = vpop.f32.mrb[0].mxu0
    %364 = vdwg.mxu0
    %365 = vrot.lane.b32.xlu0 %v197, 96
    %v366 = vpop.permute.xlu0 %365
    %v367 = vsel %vm214, %v197, 0
    %v369 = vsel %vm214, %v366, 0
    %371 = vmatprep.subr.mxu0 0.0
    %372 = vmatpush1.xpose.msra.mxu0 %v369
    %373 = vmatprep.subr.mxu0 0.0
    %374 = vmatpush1.xpose.msra.mxu0 0.0
    %375 = vmatprep.subr.mxu0 0.0
    %376 = vmatpush1.xpose.msra.mxu0 0.0
    %377 = vmatprep.subr.mxu0 0.0
    %378 = vmatpush1.xpose.msra.mxu0 0.0
    %379 = vmatprep.subr.mxu0 0.0
    %380 = vmatpush1.xpose.msra.mxu0 0.0
    %381 = vmatprep.subr.mxu0 0.0
    %382 = vmatpush1.xpose.msra.mxu0 0.0
    %383 = vmatprep.subr.mxu0 0.0
    %384 = vmatpush1.xpose.msra.mxu0 0.0
    %385 = vmatprep.subr.mxu0 0.0
    %386 = vmatpush1.xpose.msra.mxu0 0.0
    %387 = vmatprep.subr.mxu0 0.0
    %388 = vmatpush1.xpose.msra.mxu0 0.0
    %389 = vmatprep.subr.mxu0 0.0
    %390 = vmatpush1.xpose.msra.mxu0 0.0
    %391 = vmatprep.subr.mxu0 0.0
    %392 = vmatpush1.xpose.msra.mxu0 0.0
    %393 = vmatprep.subr.mxu0 0.0
    %394 = vmatpush1.xpose.msra.mxu0 0.0
    %395 = vmatprep.subr.mxu0 0.0
    %396 = vmatpush1.xpose.msra.mxu0 0.0
    %397 = vmatprep.subr.mxu0 0.0
    %398 = vmatpush1.xpose.msra.mxu0 0.0
    %399 = vmatprep.subr.mxu0 0.0
    %400 = vmatpush1.xpose.msra.mxu0 0.0
    %401 = vmatprep.subr.mxu0 0.0
    %402 = vmatpush1.xpose.msra.mxu0 0.0
    %403 = vmatprep.subr.mxu0 0.0
    %404 = vmatpush1.xpose.msra.mxu0 0.0
    %405 = vmatprep.subr.mxu0 0.0
    %406 = vmatpush1.xpose.msra.mxu0 0.0
    %407 = vmatprep.subr.mxu0 0.0
    %408 = vmatpush1.xpose.msra.mxu0 0.0
    %409 = vmatprep.subr.mxu0 0.0
    %410 = vmatpush1.xpose.msra.mxu0 0.0
    %411 = vmatprep.subr.mxu0 0.0
    %412 = vmatpush1.xpose.msra.mxu0 0.0
    %413 = vmatprep.subr.mxu0 0.0
    %414 = vmatpush1.xpose.msra.mxu0 0.0
    %415 = vmatprep.subr.mxu0 0.0
    %416 = vmatpush1.xpose.msra.mxu0 0.0
    %417 = vmatprep.subr.mxu0 0.0
    %418 = vmatpush1.xpose.msra.mxu0 0.0
    %419 = vmatprep.subr.mxu0 0.0
    %420 = vmatpush1.xpose.msra.mxu0 0.0
    %421 = vmatprep.subr.mxu0 0.0
    %422 = vmatpush1.xpose.msra.mxu0 0.0
    %423 = vmatprep.subr.mxu0 0.0
    %424 = vmatpush1.xpose.msra.mxu0 0.0
    %425 = vmatprep.subr.mxu0 0.0
    %426 = vmatpush1.xpose.msra.mxu0 0.0
    %427 = vmatprep.subr.mxu0 0.0
    %428 = vmatpush1.xpose.msra.mxu0 0.0
    %429 = vmatprep.subr.mxu0 0.0
    %430 = vmatpush1.xpose.msra.mxu0 0.0
    %431 = vmatprep.subr.mxu0 0.0
    %432 = vmatpush1.xpose.msra.mxu0 0.0
    %433 = vmatprep.subr.mxu0 0.0
    %434 = vmatpush1.xpose.msra.mxu0 0.0
    %435 = vmatprep.mubr.f32.mxu0 0.0
    %436 = vmatmul.mubr.f32.gmra.mrb[0].mxu0 %v367
    %v437 = vpop.f32.mrb[0].mxu0
    %v438 = vadd.f32 0.0, %v437
    %v439 = vpop.f32.mrb[0].mxu0
    %440 = vdwg.mxu0
    %441 = vrot.lane.b32.xlu0 %v199, 96
    %v442 = vpop.permute.xlu0 %441
    %v443 = vsel %vm214, %v199, 0
    %v445 = vsel %vm214, %v442, 0
    %447 = vmatprep.subr.mxu0 0.0
    %448 = vmatpush1.xpose.msra.mxu0 %v445
    %449 = vmatprep.subr.mxu0 0.0
    %450 = vmatpush1.xpose.msra.mxu0 0.0
    %451 = vmatprep.subr.mxu0 0.0
    %452 = vmatpush1.xpose.msra.mxu0 0.0
    %453 = vmatprep.subr.mxu0 0.0
    %454 = vmatpush1.xpose.msra.mxu0 0.0
    %455 = vmatprep.subr.mxu0 0.0
    %456 = vmatpush1.xpose.msra.mxu0 0.0
    %457 = vmatprep.subr.mxu0 0.0
    %458 = vmatpush1.xpose.msra.mxu0 0.0
    %459 = vmatprep.subr.mxu0 0.0
    %460 = vmatpush1.xpose.msra.mxu0 0.0
    %461 = vmatprep.subr.mxu0 0.0
    %462 = vmatpush1.xpose.msra.mxu0 0.0
    %463 = vmatprep.subr.mxu0 0.0
    %464 = vmatpush1.xpose.msra.mxu0 0.0
    %465 = vmatprep.subr.mxu0 0.0
    %466 = vmatpush1.xpose.msra.mxu0 0.0
    %467 = vmatprep.subr.mxu0 0.0
    %468 = vmatpush1.xpose.msra.mxu0 0.0
    %469 = vmatprep.subr.mxu0 0.0
    %470 = vmatpush1.xpose.msra.mxu0 0.0
    %471 = vmatprep.subr.mxu0 0.0
    %472 = vmatpush1.xpose.msra.mxu0 0.0
    %473 = vmatprep.subr.mxu0 0.0
    %474 = vmatpush1.xpose.msra.mxu0 0.0
    %475 = vmatprep.subr.mxu0 0.0
    %476 = vmatpush1.xpose.msra.mxu0 0.0
    %477 = vmatprep.subr.mxu0 0.0
    %478 = vmatpush1.xpose.msra.mxu0 0.0
    %479 = vmatprep.subr.mxu0 0.0
    %480 = vmatpush1.xpose.msra.mxu0 0.0
    %481 = vmatprep.subr.mxu0 0.0
    %482 = vmatpush1.xpose.msra.mxu0 0.0
    %483 = vmatprep.subr.mxu0 0.0
    %484 = vmatpush1.xpose.msra.mxu0 0.0
    %485 = vmatprep.subr.mxu0 0.0
    %486 = vmatpush1.xpose.msra.mxu0 0.0
    %487 = vmatprep.subr.mxu0 0.0
    %488 = vmatpush1.xpose.msra.mxu0 0.0
    %489 = vmatprep.subr.mxu0 0.0
    %490 = vmatpush1.xpose.msra.mxu0 0.0
    %491 = vmatprep.subr.mxu0 0.0
    %492 = vmatpush1.xpose.msra.mxu0 0.0
    %493 = vmatprep.subr.mxu0 0.0
    %494 = vmatpush1.xpose.msra.mxu0 0.0
    %495 = vmatprep.subr.mxu0 0.0
    %496 = vmatpush1.xpose.msra.mxu0 0.0
    %497 = vmatprep.subr.mxu0 0.0
    %498 = vmatpush1.xpose.msra.mxu0 0.0
    %499 = vmatprep.subr.mxu0 0.0
    %500 = vmatpush1.xpose.msra.mxu0 0.0
    %501 = vmatprep.subr.mxu0 0.0
    %502 = vmatpush1.xpose.msra.mxu0 0.0
    %503 = vmatprep.subr.mxu0 0.0
    %504 = vmatpush1.xpose.msra.mxu0 0.0
    %505 = vmatprep.subr.mxu0 0.0
    %506 = vmatpush1.xpose.msra.mxu0 0.0
    %507 = vmatprep.subr.mxu0 0.0
    %508 = vmatpush1.xpose.msra.mxu0 0.0
    %509 = vmatprep.subr.mxu0 0.0
    %510 = vmatpush1.xpose.msra.mxu0 0.0
    %511 = vmatprep.mubr.f32.mxu0 0.0
    %512 = vmatmul.mubr.f32.gmra.mrb[0].mxu0 %v443
    %v513 = vpop.f32.mrb[0].mxu0
    %v514 = vadd.f32 0.0, %v513
    %v515 = vpop.f32.mrb[0].mxu0
    %516 = vdwg.mxu0
    %517 = vrot.lane.b32.xlu0 %v201, 96
    %v518 = vpop.permute.xlu0 %517
    %v519 = vsel %vm214, %v201, 0
    %v521 = vsel %vm214, %v518, 0
    %523 = vmatprep.subr.mxu0 0.0
    %524 = vmatpush1.xpose.msra.mxu0 %v521
    %525 = vmatprep.subr.mxu0 0.0
    %526 = vmatpush1.xpose.msra.mxu0 0.0
    %527 = vmatprep.subr.mxu0 0.0
    %528 = vmatpush1.xpose.msra.mxu0 0.0
    %529 = vmatprep.subr.mxu0 0.0
    %530 = vmatpush1.xpose.msra.mxu0 0.0
    %531 = vmatprep.subr.mxu0 0.0
    %532 = vmatpush1.xpose.msra.mxu0 0.0
    %533 = vmatprep.subr.mxu0 0.0
    %534 = vmatpush1.xpose.msra.mxu0 0.0
    %535 = vmatprep.subr.mxu0 0.0
    %536 = vmatpush1.xpose.msra.mxu0 0.0
    %537 = vmatprep.subr.mxu0 0.0
    %538 = vmatpush1.xpose.msra.mxu0 0.0
    %539 = vmatprep.subr.mxu0 0.0
    %540 = vmatpush1.xpose.msra.mxu0 0.0
    %541 = vmatprep.subr.mxu0 0.0
    %542 = vmatpush1.xpose.msra.mxu0 0.0
    %543 = vmatprep.subr.mxu0 0.0
    %544 = vmatpush1.xpose.msra.mxu0 0.0
    %545 = vmatprep.subr.mxu0 0.0
    %546 = vmatpush1.xpose.msra.mxu0 0.0
    %547 = vmatprep.subr.mxu0 0.0
    %548 = vmatpush1.xpose.msra.mxu0 0.0
    %549 = vmatprep.subr.mxu0 0.0
    %550 = vmatpush1.xpose.msra.mxu0 0.0
    %551 = vmatprep.subr.mxu0 0.0
    %552 = vmatpush1.xpose.msra.mxu0 0.0
    %553 = vmatprep.subr.mxu0 0.0
    %554 = vmatpush1.xpose.msra.mxu0 0.0
    %555 = vmatprep.subr.mxu0 0.0
    %556 = vmatpush1.xpose.msra.mxu0 0.0
    %557 = vmatprep.subr.mxu0 0.0
    %558 = vmatpush1.xpose.msra.mxu0 0.0
    %559 = vmatprep.subr.mxu0 0.0
    %560 = vmatpush1.xpose.msra.mxu0 0.0
    %561 = vmatprep.subr.mxu0 0.0
    %562 = vmatpush1.xpose.msra.mxu0 0.0
    %563 = vmatprep.subr.mxu0 0.0
    %564 = vmatpush1.xpose.msra.mxu0 0.0
    %565 = vmatprep.subr.mxu0 0.0
    %566 = vmatpush1.xpose.msra.mxu0 0.0
    %567 = vmatprep.subr.mxu0 0.0
    %568 = vmatpush1.xpose.msra.mxu0 0.0
    %569 = vmatprep.subr.mxu0 0.0
    %570 = vmatpush1.xpose.msra.mxu0 0.0
    %571 = vmatprep.subr.mxu0 0.0
    %572 = vmatpush1.xpose.msra.mxu0 0.0
    %573 = vmatprep.subr.mxu0 0.0
    %574 = vmatpush1.xpose.msra.mxu0 0.0
    %575 = vmatprep.subr.mxu0 0.0
    %576 = vmatpush1.xpose.msra.mxu0 0.0
    %577 = vmatprep.subr.mxu0 0.0
    %578 = vmatpush1.xpose.msra.mxu0 0.0
    %579 = vmatprep.subr.mxu0 0.0
    %580 = vmatpush1.xpose.msra.mxu0 0.0
    %581 = vmatprep.subr.mxu0 0.0
    %582 = vmatpush1.xpose.msra.mxu0 0.0
    %583 = vmatprep.subr.mxu0 0.0
    %584 = vmatpush1.xpose.msra.mxu0 0.0
    %585 = vmatprep.subr.mxu0 0.0
    %586 = vmatpush1.xpose.msra.mxu0 0.0
    %587 = vmatprep.mubr.f32.mxu0 0.0
    %588 = vmatmul.mubr.f32.gmra.mrb[0].mxu0 %v519
    %v589 = vpop.f32.mrb[0].mxu0
    %v590 = vadd.f32 0.0, %v589
    %v591 = vpop.f32.mrb[0].mxu0
    %592 = vdwg.mxu0
    %593 = vrot.lane.b32.xlu0 %v203, 96
    %v594 = vpop.permute.xlu0 %593
    %v595 = vsel %vm214, %v203, 0
    %v597 = vsel %vm214, %v594, 0
    %599 = vmatprep.subr.mxu0 0.0
    %600 = vmatpush1.xpose.msra.mxu0 %v597
    %601 = vmatprep.subr.mxu0 0.0
    %602 = vmatpush1.xpose.msra.mxu0 0.0
    %603 = vmatprep.subr.mxu0 0.0
    %604 = vmatpush1.xpose.msra.mxu0 0.0
    %605 = vmatprep.subr.mxu0 0.0
    %606 = vmatpush1.xpose.msra.mxu0 0.0
    %607 = vmatprep.subr.mxu0 0.0
    %608 = vmatpush1.xpose.msra.mxu0 0.0
    %609 = vmatprep.subr.mxu0 0.0
    %610 = vmatpush1.xpose.msra.mxu0 0.0
    %611 = vmatprep.subr.mxu0 0.0
    %612 = vmatpush1.xpose.msra.mxu0 0.0
    %613 = vmatprep.subr.mxu0 0.0
    %614 = vmatpush1.xpose.msra.mxu0 0.0
    %615 = vmatprep.subr.mxu0 0.0
    %616 = vmatpush1.xpose.msra.mxu0 0.0
    %617 = vmatprep.subr.mxu0 0.0
    %618 = vmatpush1.xpose.msra.mxu0 0.0
    %619 = vmatprep.subr.mxu0 0.0
    %620 = vmatpush1.xpose.msra.mxu0 0.0
    %621 = vmatprep.subr.mxu0 0.0
    %622 = vmatpush1.xpose.msra.mxu0 0.0
    %623 = vmatprep.subr.mxu0 0.0
    %624 = vmatpush1.xpose.msra.mxu0 0.0
    %625 = vmatprep.subr.mxu0 0.0
    %626 = vmatpush1.xpose.msra.mxu0 0.0
    %627 = vmatprep.subr.mxu0 0.0
    %628 = vmatpush1.xpose.msra.mxu0 0.0
    %629 = vmatprep.subr.mxu0 0.0
    %630 = vmatpush1.xpose.msra.mxu0 0.0
    %631 = vmatprep.subr.mxu0 0.0
    %632 = vmatpush1.xpose.msra.mxu0 0.0
    %633 = vmatprep.subr.mxu0 0.0
    %634 = vmatpush1.xpose.msra.mxu0 0.0
    %635 = vmatprep.subr.mxu0 0.0
    %636 = vmatpush1.xpose.msra.mxu0 0.0
    %637 = vmatprep.subr.mxu0 0.0
    %638 = vmatpush1.xpose.msra.mxu0 0.0
    %639 = vmatprep.subr.mxu0 0.0
    %640 = vmatpush1.xpose.msra.mxu0 0.0
    %641 = vmatprep.subr.mxu0 0.0
    %642 = vmatpush1.xpose.msra.mxu0 0.0
    %643 = vmatprep.subr.mxu0 0.0
    %644 = vmatpush1.xpose.msra.mxu0 0.0
    %645 = vmatprep.subr.mxu0 0.0
    %646 = vmatpush1.xpose.msra.mxu0 0.0
    %647 = vmatprep.subr.mxu0 0.0
    %648 = vmatpush1.xpose.msra.mxu0 0.0
    %649 = vmatprep.subr.mxu0 0.0
    %650 = vmatpush1.xpose.msra.mxu0 0.0
    %651 = vmatprep.subr.mxu0 0.0
    %652 = vmatpush1.xpose.msra.mxu0 0.0
    %653 = vmatprep.subr.mxu0 0.0
    %654 = vmatpush1.xpose.msra.mxu0 0.0
    %655 = vmatprep.subr.mxu0 0.0
    %656 = vmatpush1.xpose.msra.mxu0 0.0
    %657 = vmatprep.subr.mxu0 0.0
    %658 = vmatpush1.xpose.msra.mxu0 0.0
    %659 = vmatprep.subr.mxu0 0.0
    %660 = vmatpush1.xpose.msra.mxu0 0.0
    %661 = vmatprep.subr.mxu0 0.0
    %662 = vmatpush1.xpose.msra.mxu0 0.0
    %663 = vmatprep.mubr.f32.mxu0 0.0
    %664 = vmatmul.mubr.f32.gmra.mrb[0].mxu0 %v595
    %v665 = vpop.f32.mrb[0].mxu0
    %v666 = vadd.f32 0.0, %v665
    %v667 = vpop.f32.mrb[0].mxu0
    %668 = vdwg.mxu0
    %669 = vrot.lane.b32.xlu0 %v205, 96
    %v670 = vpop.permute.xlu0 %669
    %v671 = vsel %vm214, %v205, 0
    %v673 = vsel %vm214, %v670, 0
    %675 = vmatprep.subr.mxu0 0.0
    %676 = vmatpush1.xpose.msra.mxu0 %v673
    %677 = vmatprep.subr.mxu0 0.0
    %678 = vmatpush1.xpose.msra.mxu0 0.0
    %679 = vmatprep.subr.mxu0 0.0
    %680 = vmatpush1.xpose.msra.mxu0 0.0
    %681 = vmatprep.subr.mxu0 0.0
    %682 = vmatpush1.xpose.msra.mxu0 0.0
    %683 = vmatprep.subr.mxu0 0.0
    %684 = vmatpush1.xpose.msra.mxu0 0.0
    %685 = vmatprep.subr.mxu0 0.0
    %686 = vmatpush1.xpose.msra.mxu0 0.0
    %687 = vmatprep.subr.mxu0 0.0
    %688 = vmatpush1.xpose.msra.mxu0 0.0
    %689 = vmatprep.subr.mxu0 0.0
    %690 = vmatpush1.xpose.msra.mxu0 0.0
    %691 = vmatprep.subr.mxu0 0.0
    %692 = vmatpush1.xpose.msra.mxu0 0.0
    %693 = vmatprep.subr.mxu0 0.0
    %694 = vmatpush1.xpose.msra.mxu0 0.0
    %695 = vmatprep.subr.mxu0 0.0
    %696 = vmatpush1.xpose.msra.mxu0 0.0
    %697 = vmatprep.subr.mxu0 0.0
    %698 = vmatpush1.xpose.msra.mxu0 0.0
    %699 = vmatprep.subr.mxu0 0.0
    %700 = vmatpush1.xpose.msra.mxu0 0.0
    %701 = vmatprep.subr.mxu0 0.0
    %702 = vmatpush1.xpose.msra.mxu0 0.0
    %703 = vmatprep.subr.mxu0 0.0
    %704 = vmatpush1.xpose.msra.mxu0 0.0
    %705 = vmatprep.subr.mxu0 0.0
    %706 = vmatpush1.xpose.msra.mxu0 0.0
    %707 = vmatprep.subr.mxu0 0.0
    %708 = vmatpush1.xpose.msra.mxu0 0.0
    %709 = vmatprep.subr.mxu0 0.0
    %710 = vmatpush1.xpose.msra.mxu0 0.0
    %711 = vmatprep.subr.mxu0 0.0
    %712 = vmatpush1.xpose.msra.mxu0 0.0
    %713 = vmatprep.subr.mxu0 0.0
    %714 = vmatpush1.xpose.msra.mxu0 0.0
    %715 = vmatprep.subr.mxu0 0.0
    %716 = vmatpush1.xpose.msra.mxu0 0.0
    %717 = vmatprep.subr.mxu0 0.0
    %718 = vmatpush1.xpose.msra.mxu0 0.0
    %719 = vmatprep.subr.mxu0 0.0
    %720 = vmatpush1.xpose.msra.mxu0 0.0
    %721 = vmatprep.subr.mxu0 0.0
    %722 = vmatpush1.xpose.msra.mxu0 0.0
    %723 = vmatprep.subr.mxu0 0.0
    %724 = vmatpush1.xpose.msra.mxu0 0.0
    %725 = vmatprep.subr.mxu0 0.0
    %726 = vmatpush1.xpose.msra.mxu0 0.0
    %727 = vmatprep.subr.mxu0 0.0
    %728 = vmatpush1.xpose.msra.mxu0 0.0
    %729 = vmatprep.subr.mxu0 0.0
    %730 = vmatpush1.xpose.msra.mxu0 0.0
    %731 = vmatprep.subr.mxu0 0.0
    %732 = vmatpush1.xpose.msra.mxu0 0.0
    %733 = vmatprep.subr.mxu0 0.0
    %734 = vmatpush1.xpose.msra.mxu0 0.0
    %735 = vmatprep.subr.mxu0 0.0
    %736 = vmatpush1.xpose.msra.mxu0 0.0
    %737 = vmatprep.subr.mxu0 0.0
    %738 = vmatpush1.xpose.msra.mxu0 0.0
    %739 = vmatprep.mubr.f32.mxu0 0.0
    %740 = vmatmul.mubr.f32.gmra.mrb[0].mxu0 %v671
    %v741 = vpop.f32.mrb[0].mxu0
    %v742 = vadd.f32 0.0, %v741
    %v743 = vpop.f32.mrb[0].mxu0
    %744 = vdwg.mxu0
    %745 = vrot.lane.b32.xlu0 %v207, 96
    %v746 = vpop.permute.xlu0 %745
    %v747 = vsel %vm214, %v207, 0
    %v749 = vsel %vm214, %v746, 0
    %751 = vmatprep.subr.mxu0 0.0
    %752 = vmatpush1.xpose.msra.mxu0 %v749
    %753 = vmatprep.subr.mxu0 0.0
    %754 = vmatpush1.xpose.msra.mxu0 0.0
    %755 = vmatprep.subr.mxu0 0.0
    %756 = vmatpush1.xpose.msra.mxu0 0.0
    %757 = vmatprep.subr.mxu0 0.0
    %758 = vmatpush1.xpose.msra.mxu0 0.0
    %759 = vmatprep.subr.mxu0 0.0
    %760 = vmatpush1.xpose.msra.mxu0 0.0
    %761 = vmatprep.subr.mxu0 0.0
    %762 = vmatpush1.xpose.msra.mxu0 0.0
    %763 = vmatprep.subr.mxu0 0.0
    %764 = vmatpush1.xpose.msra.mxu0 0.0
    %765 = vmatprep.subr.mxu0 0.0
    %766 = vmatpush1.xpose.msra.mxu0 0.0
    %767 = vmatprep.subr.mxu0 0.0
    %768 = vmatpush1.xpose.msra.mxu0 0.0
    %769 = vmatprep.subr.mxu0 0.0
    %770 = vmatpush1.xpose.msra.mxu0 0.0
    %771 = vmatprep.subr.mxu0 0.0
    %772 = vmatpush1.xpose.msra.mxu0 0.0
    %773 = vmatprep.subr.mxu0 0.0
    %774 = vmatpush1.xpose.msra.mxu0 0.0
    %775 = vmatprep.subr.mxu0 0.0
    %776 = vmatpush1.xpose.msra.mxu0 0.0
    %777 = vmatprep.subr.mxu0 0.0
    %778 = vmatpush1.xpose.msra.mxu0 0.0
    %779 = vmatprep.subr.mxu0 0.0
    %780 = vmatpush1.xpose.msra.mxu0 0.0
    %781 = vmatprep.subr.mxu0 0.0
    %782 = vmatpush1.xpose.msra.mxu0 0.0
    %783 = vmatprep.subr.mxu0 0.0
    %784 = vmatpush1.xpose.msra.mxu0 0.0
    %785 = vmatprep.subr.mxu0 0.0
    %786 = vmatpush1.xpose.msra.mxu0 0.0
    %787 = vmatprep.subr.mxu0 0.0
    %788 = vmatpush1.xpose.msra.mxu0 0.0
    %789 = vmatprep.subr.mxu0 0.0
    %790 = vmatpush1.xpose.msra.mxu0 0.0
    %791 = vmatprep.subr.mxu0 0.0
    %792 = vmatpush1.xpose.msra.mxu0 0.0
    %793 = vmatprep.subr.mxu0 0.0
    %794 = vmatpush1.xpose.msra.mxu0 0.0
    %795 = vmatprep.subr.mxu0 0.0
    %796 = vmatpush1.xpose.msra.mxu0 0.0
    %797 = vmatprep.subr.mxu0 0.0
    %798 = vmatpush1.xpose.msra.mxu0 0.0
    %799 = vmatprep.subr.mxu0 0.0
    %800 = vmatpush1.xpose.msra.mxu0 0.0
    %801 = vmatprep.subr.mxu0 0.0
    %802 = vmatpush1.xpose.msra.mxu0 0.0
    %803 = vmatprep.subr.mxu0 0.0
    %804 = vmatpush1.xpose.msra.mxu0 0.0
    %805 = vmatprep.subr.mxu0 0.0
    %806 = vmatpush1.xpose.msra.mxu0 0.0
    %807 = vmatprep.subr.mxu0 0.0
    %808 = vmatpush1.xpose.msra.mxu0 0.0
    %809 = vmatprep.subr.mxu0 0.0
    %810 = vmatpush1.xpose.msra.mxu0 0.0
    %811 = vmatprep.subr.mxu0 0.0
    %812 = vmatpush1.xpose.msra.mxu0 0.0
    %813 = vmatprep.subr.mxu0 0.0
    %814 = vmatpush1.xpose.msra.mxu0 0.0
    %815 = vmatprep.mubr.f32.mxu0 0.0
    %816 = vmatmul.mubr.f32.gmra.mrb[0].mxu0 %v747
    %v817 = vpop.f32.mrb[0].mxu0
    %v818 = vadd.f32 0.0, %v817
    %v819 = vpop.f32.mrb[0].mxu0
    %820 = vdwg.mxu0
    %v821 = vsel %vm60, %v286, -1e+30
    %v822 = vsel %vm60, %v362, -1e+30
    %v823 = vsel %vm60, %v438, -1e+30
    %v824 = vsel %vm60, %v514, -1e+30
    %v825 = vsel %vm60, %v590, -1e+30
    %v826 = vsel %vm60, %v666, -1e+30
    %v827 = vsel %vm60, %v742, -1e+30
    %v828 = vsel %vm60, %v818, -1e+30
    %v829 = vsel %vm214, %v821, -inf
    %830 = vmax.xlane.f32.xlu0 %v829
    %v831 = vpop.xlane.xlu0 %830
    %v832 = vsel %vm214, %v822, -inf
    %833 = vmax.xlane.f32.xlu0 %v832
    %v834 = vpop.xlane.xlu0 %833
    %v835 = vsel %vm214, %v823, -inf
    %836 = vmax.xlane.f32.xlu0 %v835
    %v837 = vpop.xlane.xlu0 %836
    %v838 = vsel %vm214, %v824, -inf
    %839 = vmax.xlane.f32.xlu0 %v838
    %v840 = vpop.xlane.xlu0 %839
    %v841 = vsel %vm214, %v825, -inf
    %842 = vmax.xlane.f32.xlu0 %v841
    %v843 = vpop.xlane.xlu0 %842
    %v844 = vsel %vm214, %v826, -inf
    %845 = vmax.xlane.f32.xlu0 %v844
    %v846 = vpop.xlane.xlu0 %845
    %v847 = vsel %vm214, %v827, -inf
    %848 = vmax.xlane.f32.xlu0 %v847
    %v849 = vpop.xlane.xlu0 %848
    %v850 = vsel %vm214, %v828, -inf
    %851 = vmax.xlane.f32.xlu0 %v850
    %v852 = vpop.xlane.xlu0 %851
    %v853 = vsub.f32 %v821, %v831
    %v854 = vsub.f32 %v822, %v834
    %v855 = vsub.f32 %v823, %v837
    %v856 = vsub.f32 %v824, %v840
    %v857 = vsub.f32 %v825, %v843
    %v858 = vsub.f32 %v826, %v846
    %v859 = vsub.f32 %v827, %v849
    %v860 = vsub.f32 %v828, %v852
    %v861 = vmul.f32 %v853, 1.442695
    %v862 = vpow.pop %v861
    %v863 = vmul.f32 %v854, 1.442695
    %v864 = vpow.pop %v863
    %v865 = vmul.f32 %v855, 1.442695
    %v866 = vpow.pop %v865
    %v867 = vmul.f32 %v856, 1.442695
    %v868 = vpow.pop %v867
    %v869 = vmul.f32 %v857, 1.442695
    %v870 = vpow.pop %v869
    %v871 = vmul.f32 %v858, 1.442695
    %v872 = vpow.pop %v871
    %v873 = vmul.f32 %v859, 1.442695
    %v874 = vpow.pop %v873
    %v875 = vmul.f32 %v860, 1.442695
    %v876 = vpow.pop %v875
    %v877 = vsel %vm214, %v862, 0.0
    %878 = vadd.xlane.f32.xlu0 %v877
    %v879 = vpop.xlane.xlu0 %878
    %v880 = vsel %vm214, %v864, 0.0
    %881 = vadd.xlane.f32.xlu0 %v880
    %v882 = vpop.xlane.xlu0 %881
    %v883 = vsel %vm214, %v866, 0.0
    %884 = vadd.xlane.f32.xlu0 %v883
    %v885 = vpop.xlane.xlu0 %884
    %v886 = vsel %vm214, %v868, 0.0
    %887 = vadd.xlane.f32.xlu0 %v886
    %v888 = vpop.xlane.xlu0 %887
    %v889 = vsel %vm214, %v870, 0.0
    %890 = vadd.xlane.f32.xlu0 %v889
    %v891 = vpop.xlane.xlu0 %890
    %v892 = vsel %vm214, %v872, 0.0
    %893 = vadd.xlane.f32.xlu0 %v892
    %v894 = vpop.xlane.xlu0 %893
    %v895 = vsel %vm214, %v874, 0.0
    %896 = vadd.xlane.f32.xlu0 %v895
    %v897 = vpop.xlane.xlu0 %896
    %v898 = vsel %vm214, %v876, 0.0
    %899 = vadd.xlane.f32.xlu0 %v898
    %v900 = vpop.xlane.xlu0 %899
    %v901 = vrcp.pop %v879
    %v902 = vrcp.pop %v882
    %v903 = vrcp.pop %v885
    %v904 = vrcp.pop %v888
    %v905 = vrcp.pop %v891
    %v906 = vrcp.pop %v894
    %v907 = vrcp.pop %v897
    %v908 = vrcp.pop %v900
    %v909 = vmul.f32 %v862, %v901
    %v910 = vmul.f32 %v864, %v902
    %v911 = vmul.f32 %v866, %v903
    %v912 = vmul.f32 %v868, %v904
    %v913 = vmul.f32 %v870, %v905
    %v914 = vmul.f32 %v872, %v906
    %v915 = vmul.f32 %v874, %v907
    %v916 = vmul.f32 %v876, %v908
    %917 = vrot.lane.b32.xlu0 %v156, 64
    %v918 = vpop.permute.xlu0 %917
    %v921 = vsel %vm214, %v909, 0
    %923 = vmatprep.subr.mxu0 0.0
    %924 = vmatpush1.msra.mxu0 %v918
    %925 = vmatprep.subr.mxu0 0.0
    %926 = vmatpush1.msra.mxu0 0.0
    %927 = vmatprep.subr.mxu0 0.0
    %928 = vmatpush1.msra.mxu0 0.0
    %929 = vmatprep.subr.mxu0 0.0
    %930 = vmatpush1.msra.mxu0 0.0
    %931 = vmatprep.subr.mxu0 0.0
    %932 = vmatpush1.msra.mxu0 0.0
    %933 = vmatprep.subr.mxu0 0.0
    %934 = vmatpush1.msra.mxu0 0.0
    %935 = vmatprep.subr.mxu0 0.0
    %936 = vmatpush1.msra.mxu0 0.0
    %937 = vmatprep.subr.mxu0 0.0
    %938 = vmatpush1.msra.mxu0 0.0
    %939 = vmatprep.subr.mxu0 0.0
    %940 = vmatpush1.msra.mxu0 0.0
    %941 = vmatprep.subr.mxu0 0.0
    %942 = vmatpush1.msra.mxu0 0.0
    %943 = vmatprep.subr.mxu0 0.0
    %944 = vmatpush1.msra.mxu0 0.0
    %945 = vmatprep.subr.mxu0 0.0
    %946 = vmatpush1.msra.mxu0 0.0
    %947 = vmatprep.subr.mxu0 0.0
    %948 = vmatpush1.msra.mxu0 0.0
    %949 = vmatprep.subr.mxu0 0.0
    %950 = vmatpush1.msra.mxu0 0.0
    %951 = vmatprep.subr.mxu0 0.0
    %952 = vmatpush1.msra.mxu0 0.0
    %953 = vmatprep.subr.mxu0 0.0
    %954 = vmatpush1.msra.mxu0 0.0
    %955 = vmatprep.subr.mxu0 0.0
    %956 = vmatpush1.msra.mxu0 0.0
    %957 = vmatprep.subr.mxu0 0.0
    %958 = vmatpush1.msra.mxu0 0.0
    %959 = vmatprep.subr.mxu0 0.0
    %960 = vmatpush1.msra.mxu0 0.0
    %961 = vmatprep.subr.mxu0 0.0
    %962 = vmatpush1.msra.mxu0 0.0
    %963 = vmatprep.subr.mxu0 0.0
    %964 = vmatpush1.msra.mxu0 0.0
    %965 = vmatprep.subr.mxu0 0.0
    %966 = vmatpush1.msra.mxu0 0.0
    %967 = vmatprep.subr.mxu0 0.0
    %968 = vmatpush1.msra.mxu0 0.0
    %969 = vmatprep.subr.mxu0 0.0
    %970 = vmatpush1.msra.mxu0 0.0
    %971 = vmatprep.subr.mxu0 0.0
    %972 = vmatpush1.msra.mxu0 0.0
    %973 = vmatprep.subr.mxu0 0.0
    %974 = vmatpush1.msra.mxu0 0.0
    %975 = vmatprep.subr.mxu0 0.0
    %976 = vmatpush1.msra.mxu0 0.0
    %977 = vmatprep.subr.mxu0 0.0
    %978 = vmatpush1.msra.mxu0 0.0
    %979 = vmatprep.subr.mxu0 0.0
    %980 = vmatpush1.msra.mxu0 0.0
    %981 = vmatprep.subr.mxu0 0.0
    %982 = vmatpush1.msra.mxu0 0.0
    %983 = vmatprep.subr.mxu0 0.0
    %984 = vmatpush1.msra.mxu0 0.0
    %985 = vmatprep.subr.mxu0 0.0
    %986 = vmatpush1.msra.mxu0 0.0
    %987 = vmatprep.mubr.f32.mxu0 0.0
    %988 = vmatmul.mubr.f32.gmra.mrb[0].mxu0 %v921
    %v989 = vpop.f32.mrb[0].mxu0
    %v990 = vadd.f32 0.0, %v989
    %v991 = vpop.f32.mrb[0].mxu0
    %992 = vdwg.mxu0
    %993 = vrot.lane.b32.xlu0 %v161, 64
    %v994 = vpop.permute.xlu0 %993
    %v997 = vsel %vm214, %v910, 0
    %999 = vmatprep.subr.mxu0 0.0
    %1000 = vmatpush1.msra.mxu0 %v994
    %1001 = vmatprep.subr.mxu0 0.0
    %1002 = vmatpush1.msra.mxu0 0.0
    %1003 = vmatprep.subr.mxu0 0.0
    %1004 = vmatpush1.msra.mxu0 0.0
    %1005 = vmatprep.subr.mxu0 0.0
    %1006 = vmatpush1.msra.mxu0 0.0
    %1007 = vmatprep.subr.mxu0 0.0
    %1008 = vmatpush1.msra.mxu0 0.0
    %1009 = vmatprep.subr.mxu0 0.0
    %1010 = vmatpush1.msra.mxu0 0.0
    %1011 = vmatprep.subr.mxu0 0.0
    %1012 = vmatpush1.msra.mxu0 0.0
    %1013 = vmatprep.subr.mxu0 0.0
    %1014 = vmatpush1.msra.mxu0 0.0
    %1015 = vmatprep.subr.mxu0 0.0
    %1016 = vmatpush1.msra.mxu0 0.0
    %1017 = vmatprep.subr.mxu0 0.0
    %1018 = vmatpush1.msra.mxu0 0.0
    %1019 = vmatprep.subr.mxu0 0.0
    %1020 = vmatpush1.msra.mxu0 0.0
    %1021 = vmatprep.subr.mxu0 0.0
    %1022 = vmatpush1.msra.mxu0 0.0
    %1023 = vmatprep.subr.mxu0 0.0
    %1024 = vmatpush1.msra.mxu0 0.0
    %1025 = vmatprep.subr.mxu0 0.0
    %1026 = vmatpush1.msra.mxu0 0.0
    %1027 = vmatprep.subr.mxu0 0.0
    %1028 = vmatpush1.msra.mxu0 0.0
    %1029 = vmatprep.subr.mxu0 0.0
    %1030 = vmatpush1.msra.mxu0 0.0
    %1031 = vmatprep.subr.mxu0 0.0
    %1032 = vmatpush1.msra.mxu0 0.0
    %1033 = vmatprep.subr.mxu0 0.0
    %1034 = vmatpush1.msra.mxu0 0.0
    %1035 = vmatprep.subr.mxu0 0.0
    %1036 = vmatpush1.msra.mxu0 0.0
    %1037 = vmatprep.subr.mxu0 0.0
    %1038 = vmatpush1.msra.mxu0 0.0
    %1039 = vmatprep.subr.mxu0 0.0
    %1040 = vmatpush1.msra.mxu0 0.0
    %1041 = vmatprep.subr.mxu0 0.0
    %1042 = vmatpush1.msra.mxu0 0.0
    %1043 = vmatprep.subr.mxu0 0.0
    %1044 = vmatpush1.msra.mxu0 0.0
    %1045 = vmatprep.subr.mxu0 0.0
    %1046 = vmatpush1.msra.mxu0 0.0
    %1047 = vmatprep.subr.mxu0 0.0
    %1048 = vmatpush1.msra.mxu0 0.0
    %1049 = vmatprep.subr.mxu0 0.0
    %1050 = vmatpush1.msra.mxu0 0.0
    %1051 = vmatprep.subr.mxu0 0.0
    %1052 = vmatpush1.msra.mxu0 0.0
    %1053 = vmatprep.subr.mxu0 0.0
    %1054 = vmatpush1.msra.mxu0 0.0
    %1055 = vmatprep.subr.mxu0 0.0
    %1056 = vmatpush1.msra.mxu0 0.0
    %1057 = vmatprep.subr.mxu0 0.0
    %1058 = vmatpush1.msra.mxu0 0.0
    %1059 = vmatprep.subr.mxu0 0.0
    %1060 = vmatpush1.msra.mxu0 0.0
    %1061 = vmatprep.subr.mxu0 0.0
    %1062 = vmatpush1.msra.mxu0 0.0
    %1063 = vmatprep.mubr.f32.mxu0 0.0
    %1064 = vmatmul.mubr.f32.gmra.mrb[0].mxu0 %v997
    %v1065 = vpop.f32.mrb[0].mxu0
    %v1066 = vadd.f32 0.0, %v1065
    %v1067 = vpop.f32.mrb[0].mxu0
    %1068 = vdwg.mxu0
    %1069 = vrot.lane.b32.xlu0 %v209, 64
    %v1070 = vpop.permute.xlu0 %1069
    %v1073 = vsel %vm214, %v911, 0
    %1075 = vmatprep.subr.mxu0 0.0
    %1076 = vmatpush1.msra.mxu0 %v1070
    %1077 = vmatprep.subr.mxu0 0.0
    %1078 = vmatpush1.msra.mxu0 0.0
    %1079 = vmatprep.subr.mxu0 0.0
    %1080 = vmatpush1.msra.mxu0 0.0
    %1081 = vmatprep.subr.mxu0 0.0
    %1082 = vmatpush1.msra.mxu0 0.0
    %1083 = vmatprep.subr.mxu0 0.0
    %1084 = vmatpush1.msra.mxu0 0.0
    %1085 = vmatprep.subr.mxu0 0.0
    %1086 = vmatpush1.msra.mxu0 0.0
    %1087 = vmatprep.subr.mxu0 0.0
    %1088 = vmatpush1.msra.mxu0 0.0
    %1089 = vmatprep.subr.mxu0 0.0
    %1090 = vmatpush1.msra.mxu0 0.0
    %1091 = vmatprep.subr.mxu0 0.0
    %1092 = vmatpush1.msra.mxu0 0.0
    %1093 = vmatprep.subr.mxu0 0.0
    %1094 = vmatpush1.msra.mxu0 0.0
    %1095 = vmatprep.subr.mxu0 0.0
    %1096 = vmatpush1.msra.mxu0 0.0
    %1097 = vmatprep.subr.mxu0 0.0
    %1098 = vmatpush1.msra.mxu0 0.0
    %1099 = vmatprep.subr.mxu0 0.0
    %1100 = vmatpush1.msra.mxu0 0.0
    %1101 = vmatprep.subr.mxu0 0.0
    %1102 = vmatpush1.msra.mxu0 0.0
    %1103 = vmatprep.subr.mxu0 0.0
    %1104 = vmatpush1.msra.mxu0 0.0
    %1105 = vmatprep.subr.mxu0 0.0
    %1106 = vmatpush1.msra.mxu0 0.0
    %1107 = vmatprep.subr.mxu0 0.0
    %1108 = vmatpush1.msra.mxu0 0.0
    %1109 = vmatprep.subr.mxu0 0.0
    %1110 = vmatpush1.msra.mxu0 0.0
    %1111 = vmatprep.subr.mxu0 0.0
    %1112 = vmatpush1.msra.mxu0 0.0
    %1113 = vmatprep.subr.mxu0 0.0
    %1114 = vmatpush1.msra.mxu0 0.0
    %1115 = vmatprep.subr.mxu0 0.0
    %1116 = vmatpush1.msra.mxu0 0.0
    %1117 = vmatprep.subr.mxu0 0.0
    %1118 = vmatpush1.msra.mxu0 0.0
    %1119 = vmatprep.subr.mxu0 0.0
    %1120 = vmatpush1.msra.mxu0 0.0
    %1121 = vmatprep.subr.mxu0 0.0
    %1122 = vmatpush1.msra.mxu0 0.0
    %1123 = vmatprep.subr.mxu0 0.0
    %1124 = vmatpush1.msra.mxu0 0.0
    %1125 = vmatprep.subr.mxu0 0.0
    %1126 = vmatpush1.msra.mxu0 0.0
    %1127 = vmatprep.subr.mxu0 0.0
    %1128 = vmatpush1.msra.mxu0 0.0
    %1129 = vmatprep.subr.mxu0 0.0
    %1130 = vmatpush1.msra.mxu0 0.0
    %1131 = vmatprep.subr.mxu0 0.0
    %1132 = vmatpush1.msra.mxu0 0.0
    %1133 = vmatprep.subr.mxu0 0.0
    %1134 = vmatpush1.msra.mxu0 0.0
    %1135 = vmatprep.subr.mxu0 0.0
    %1136 = vmatpush1.msra.mxu0 0.0
    %1137 = vmatprep.subr.mxu0 0.0
    %1138 = vmatpush1.msra.mxu0 0.0
    %1139 = vmatprep.mubr.f32.mxu0 0.0
    %1140 = vmatmul.mubr.f32.gmra.mrb[0].mxu0 %v1073
    %v1141 = vpop.f32.mrb[0].mxu0
    %v1142 = vadd.f32 0.0, %v1141
    %v1143 = vpop.f32.mrb[0].mxu0
    %1144 = vdwg.mxu0
    %1145 = vrot.lane.b32.xlu0 %v211, 64
    %v1146 = vpop.permute.xlu0 %1145
    %v1149 = vsel %vm214, %v912, 0
    %1151 = vmatprep.subr.mxu0 0.0
    %1152 = vmatpush1.msra.mxu0 %v1146
    %1153 = vmatprep.subr.mxu0 0.0
    %1154 = vmatpush1.msra.mxu0 0.0
    %1155 = vmatprep.subr.mxu0 0.0
    %1156 = vmatpush1.msra.mxu0 0.0
    %1157 = vmatprep.subr.mxu0 0.0
    %1158 = vmatpush1.msra.mxu0 0.0
    %1159 = vmatprep.subr.mxu0 0.0
    %1160 = vmatpush1.msra.mxu0 0.0
    %1161 = vmatprep.subr.mxu0 0.0
    %1162 = vmatpush1.msra.mxu0 0.0
    %1163 = vmatprep.subr.mxu0 0.0
    %1164 = vmatpush1.msra.mxu0 0.0
    %1165 = vmatprep.subr.mxu0 0.0
    %1166 = vmatpush1.msra.mxu0 0.0
    %1167 = vmatprep.subr.mxu0 0.0
    %1168 = vmatpush1.msra.mxu0 0.0
    %1169 = vmatprep.subr.mxu0 0.0
    %1170 = vmatpush1.msra.mxu0 0.0
    %1171 = vmatprep.subr.mxu0 0.0
    %1172 = vmatpush1.msra.mxu0 0.0
    %1173 = vmatprep.subr.mxu0 0.0
    %1174 = vmatpush1.msra.mxu0 0.0
    %1175 = vmatprep.subr.mxu0 0.0
    %1176 = vmatpush1.msra.mxu0 0.0
    %1177 = vmatprep.subr.mxu0 0.0
    %1178 = vmatpush1.msra.mxu0 0.0
    %1179 = vmatprep.subr.mxu0 0.0
    %1180 = vmatpush1.msra.mxu0 0.0
    %1181 = vmatprep.subr.mxu0 0.0
    %1182 = vmatpush1.msra.mxu0 0.0
    %1183 = vmatprep.subr.mxu0 0.0
    %1184 = vmatpush1.msra.mxu0 0.0
    %1185 = vmatprep.subr.mxu0 0.0
    %1186 = vmatpush1.msra.mxu0 0.0
    %1187 = vmatprep.subr.mxu0 0.0
    %1188 = vmatpush1.msra.mxu0 0.0
    %1189 = vmatprep.subr.mxu0 0.0
    %1190 = vmatpush1.msra.mxu0 0.0
    %1191 = vmatprep.subr.mxu0 0.0
    %1192 = vmatpush1.msra.mxu0 0.0
    %1193 = vmatprep.subr.mxu0 0.0
    %1194 = vmatpush1.msra.mxu0 0.0
    %1195 = vmatprep.subr.mxu0 0.0
    %1196 = vmatpush1.msra.mxu0 0.0
    %1197 = vmatprep.subr.mxu0 0.0
    %1198 = vmatpush1.msra.mxu0 0.0
    %1199 = vmatprep.subr.mxu0 0.0
    %1200 = vmatpush1.msra.mxu0 0.0
    %1201 = vmatprep.subr.mxu0 0.0
    %1202 = vmatpush1.msra.mxu0 0.0
    %1203 = vmatprep.subr.mxu0 0.0
    %1204 = vmatpush1.msra.mxu0 0.0
    %1205 = vmatprep.subr.mxu0 0.0
    %1206 = vmatpush1.msra.mxu0 0.0
    %1207 = vmatprep.subr.mxu0 0.0
    %1208 = vmatpush1.msra.mxu0 0.0
    %1209 = vmatprep.subr.mxu0 0.0
    %1210 = vmatpush1.msra.mxu0 0.0
    %1211 = vmatprep.subr.mxu0 0.0
    %1212 = vmatpush1.msra.mxu0 0.0
    %1213 = vmatprep.subr.mxu0 0.0
    %1214 = vmatpush1.msra.mxu0 0.0
    %1215 = vmatprep.mubr.f32.mxu0 0.0
    %1216 = vmatmul.mubr.f32.gmra.mrb[0].mxu0 %v1149
    %v1217 = vpop.f32.mrb[0].mxu0
    %v1218 = vadd.f32 0.0, %v1217
    %v1219 = vpop.f32.mrb[0].mxu0
    %1220 = vdwg.mxu0
    %v1222 = vsel %vm214, %v913, 0
    %1224 = vmatprep.subr.mxu0 0.0
    %1225 = vmatpush1.msra.mxu0 %v918
    %1226 = vmatprep.subr.mxu0 0.0
    %1227 = vmatpush1.msra.mxu0 0.0
    %1228 = vmatprep.subr.mxu0 0.0
    %1229 = vmatpush1.msra.mxu0 0.0
    %1230 = vmatprep.subr.mxu0 0.0
    %1231 = vmatpush1.msra.mxu0 0.0
    %1232 = vmatprep.subr.mxu0 0.0
    %1233 = vmatpush1.msra.mxu0 0.0
    %1234 = vmatprep.subr.mxu0 0.0
    %1235 = vmatpush1.msra.mxu0 0.0
    %1236 = vmatprep.subr.mxu0 0.0
    %1237 = vmatpush1.msra.mxu0 0.0
    %1238 = vmatprep.subr.mxu0 0.0
    %1239 = vmatpush1.msra.mxu0 0.0
    %1240 = vmatprep.subr.mxu0 0.0
    %1241 = vmatpush1.msra.mxu0 0.0
    %1242 = vmatprep.subr.mxu0 0.0
    %1243 = vmatpush1.msra.mxu0 0.0
    %1244 = vmatprep.subr.mxu0 0.0
    %1245 = vmatpush1.msra.mxu0 0.0
    %1246 = vmatprep.subr.mxu0 0.0
    %1247 = vmatpush1.msra.mxu0 0.0
    %1248 = vmatprep.subr.mxu0 0.0
    %1249 = vmatpush1.msra.mxu0 0.0
    %1250 = vmatprep.subr.mxu0 0.0
    %1251 = vmatpush1.msra.mxu0 0.0
    %1252 = vmatprep.subr.mxu0 0.0
    %1253 = vmatpush1.msra.mxu0 0.0
    %1254 = vmatprep.subr.mxu0 0.0
    %1255 = vmatpush1.msra.mxu0 0.0
    %1256 = vmatprep.subr.mxu0 0.0
    %1257 = vmatpush1.msra.mxu0 0.0
    %1258 = vmatprep.subr.mxu0 0.0
    %1259 = vmatpush1.msra.mxu0 0.0
    %1260 = vmatprep.subr.mxu0 0.0
    %1261 = vmatpush1.msra.mxu0 0.0
    %1262 = vmatprep.subr.mxu0 0.0
    %1263 = vmatpush1.msra.mxu0 0.0
    %1264 = vmatprep.subr.mxu0 0.0
    %1265 = vmatpush1.msra.mxu0 0.0
    %1266 = vmatprep.subr.mxu0 0.0
    %1267 = vmatpush1.msra.mxu0 0.0
    %1268 = vmatprep.subr.mxu0 0.0
    %1269 = vmatpush1.msra.mxu0 0.0
    %1270 = vmatprep.subr.mxu0 0.0
    %1271 = vmatpush1.msra.mxu0 0.0
    %1272 = vmatprep.subr.mxu0 0.0
    %1273 = vmatpush1.msra.mxu0 0.0
    %1274 = vmatprep.subr.mxu0 0.0
    %1275 = vmatpush1.msra.mxu0 0.0
    %1276 = vmatprep.subr.mxu0 0.0
    %1277 = vmatpush1.msra.mxu0 0.0
    %1278 = vmatprep.subr.mxu0 0.0
    %1279 = vmatpush1.msra.mxu0 0.0
    %1280 = vmatprep.subr.mxu0 0.0
    %1281 = vmatpush1.msra.mxu0 0.0
    %1282 = vmatprep.subr.mxu0 0.0
    %1283 = vmatpush1.msra.mxu0 0.0
    %1284 = vmatprep.subr.mxu0 0.0
    %1285 = vmatpush1.msra.mxu0 0.0
    %1286 = vmatprep.subr.mxu0 0.0
    %1287 = vmatpush1.msra.mxu0 0.0
    %1288 = vmatprep.mubr.f32.mxu0 0.0
    %1289 = vmatmul.mubr.f32.gmra.mrb[0].mxu0 %v1222
    %v1290 = vpop.f32.mrb[0].mxu0
    %v1291 = vadd.f32 0.0, %v1290
    %v1292 = vpop.f32.mrb[0].mxu0
    %1293 = vdwg.mxu0
    %v1295 = vsel %vm214, %v914, 0
    %1297 = vmatprep.subr.mxu0 0.0
    %1298 = vmatpush1.msra.mxu0 %v994
    %1299 = vmatprep.subr.mxu0 0.0
    %1300 = vmatpush1.msra.mxu0 0.0
    %1301 = vmatprep.subr.mxu0 0.0
    %1302 = vmatpush1.msra.mxu0 0.0
    %1303 = vmatprep.subr.mxu0 0.0
    %1304 = vmatpush1.msra.mxu0 0.0
    %1305 = vmatprep.subr.mxu0 0.0
    %1306 = vmatpush1.msra.mxu0 0.0
    %1307 = vmatprep.subr.mxu0 0.0
    %1308 = vmatpush1.msra.mxu0 0.0
    %1309 = vmatprep.subr.mxu0 0.0
    %1310 = vmatpush1.msra.mxu0 0.0
    %1311 = vmatprep.subr.mxu0 0.0
    %1312 = vmatpush1.msra.mxu0 0.0
    %1313 = vmatprep.subr.mxu0 0.0
    %1314 = vmatpush1.msra.mxu0 0.0
    %1315 = vmatprep.subr.mxu0 0.0
    %1316 = vmatpush1.msra.mxu0 0.0
    %1317 = vmatprep.subr.mxu0 0.0
    %1318 = vmatpush1.msra.mxu0 0.0
    %1319 = vmatprep.subr.mxu0 0.0
    %1320 = vmatpush1.msra.mxu0 0.0
    %1321 = vmatprep.subr.mxu0 0.0
    %1322 = vmatpush1.msra.mxu0 0.0
    %1323 = vmatprep.subr.mxu0 0.0
    %1324 = vmatpush1.msra.mxu0 0.0
    %1325 = vmatprep.subr.mxu0 0.0
    %1326 = vmatpush1.msra.mxu0 0.0
    %1327 = vmatprep.subr.mxu0 0.0
    %1328 = vmatpush1.msra.mxu0 0.0
    %1329 = vmatprep.subr.mxu0 0.0
    %1330 = vmatpush1.msra.mxu0 0.0
    %1331 = vmatprep.subr.mxu0 0.0
    %1332 = vmatpush1.msra.mxu0 0.0
    %1333 = vmatprep.subr.mxu0 0.0
    %1334 = vmatpush1.msra.mxu0 0.0
    %1335 = vmatprep.subr.mxu0 0.0
    %1336 = vmatpush1.msra.mxu0 0.0
    %1337 = vmatprep.subr.mxu0 0.0
    %1338 = vmatpush1.msra.mxu0 0.0
    %1339 = vmatprep.subr.mxu0 0.0
    %1340 = vmatpush1.msra.mxu0 0.0
    %1341 = vmatprep.subr.mxu0 0.0
    %1342 = vmatpush1.msra.mxu0 0.0
    %1343 = vmatprep.subr.mxu0 0.0
    %1344 = vmatpush1.msra.mxu0 0.0
    %1345 = vmatprep.subr.mxu0 0.0
    %1346 = vmatpush1.msra.mxu0 0.0
    %1347 = vmatprep.subr.mxu0 0.0
    %1348 = vmatpush1.msra.mxu0 0.0
    %1349 = vmatprep.subr.mxu0 0.0
    %1350 = vmatpush1.msra.mxu0 0.0
    %1351 = vmatprep.subr.mxu0 0.0
    %1352 = vmatpush1.msra.mxu0 0.0
    %1353 = vmatprep.subr.mxu0 0.0
    %1354 = vmatpush1.msra.mxu0 0.0
    %1355 = vmatprep.subr.mxu0 0.0
    %1356 = vmatpush1.msra.mxu0 0.0
    %1357 = vmatprep.subr.mxu0 0.0
    %1358 = vmatpush1.msra.mxu0 0.0
    %1359 = vmatprep.subr.mxu0 0.0
    %1360 = vmatpush1.msra.mxu0 0.0
    %1361 = vmatprep.mubr.f32.mxu0 0.0
    %1362 = vmatmul.mubr.f32.gmra.mrb[0].mxu0 %v1295
    %v1363 = vpop.f32.mrb[0].mxu0
    %v1364 = vadd.f32 0.0, %v1363
    %v1365 = vpop.f32.mrb[0].mxu0
    %1366 = vdwg.mxu0
    %v1368 = vsel %vm214, %v915, 0
    %1370 = vmatprep.subr.mxu0 0.0
    %1371 = vmatpush1.msra.mxu0 %v1070
    %1372 = vmatprep.subr.mxu0 0.0
    %1373 = vmatpush1.msra.mxu0 0.0
    %1374 = vmatprep.subr.mxu0 0.0
    %1375 = vmatpush1.msra.mxu0 0.0
    %1376 = vmatprep.subr.mxu0 0.0
    %1377 = vmatpush1.msra.mxu0 0.0
    %1378 = vmatprep.subr.mxu0 0.0
    %1379 = vmatpush1.msra.mxu0 0.0
    %1380 = vmatprep.subr.mxu0 0.0
    %1381 = vmatpush1.msra.mxu0 0.0
    %1382 = vmatprep.subr.mxu0 0.0
    %1383 = vmatpush1.msra.mxu0 0.0
    %1384 = vmatprep.subr.mxu0 0.0
    %1385 = vmatpush1.msra.mxu0 0.0
    %1386 = vmatprep.subr.mxu0 0.0
    %1387 = vmatpush1.msra.mxu0 0.0
    %1388 = vmatprep.subr.mxu0 0.0
    %1389 = vmatpush1.msra.mxu0 0.0
    %1390 = vmatprep.subr.mxu0 0.0
    %1391 = vmatpush1.msra.mxu0 0.0
    %1392 = vmatprep.subr.mxu0 0.0
    %1393 = vmatpush1.msra.mxu0 0.0
    %1394 = vmatprep.subr.mxu0 0.0
    %1395 = vmatpush1.msra.mxu0 0.0
    %1396 = vmatprep.subr.mxu0 0.0
    %1397 = vmatpush1.msra.mxu0 0.0
    %1398 = vmatprep.subr.mxu0 0.0
    %1399 = vmatpush1.msra.mxu0 0.0
    %1400 = vmatprep.subr.mxu0 0.0
    %1401 = vmatpush1.msra.mxu0 0.0
    %1402 = vmatprep.subr.mxu0 0.0
    %1403 = vmatpush1.msra.mxu0 0.0
    %1404 = vmatprep.subr.mxu0 0.0
    %1405 = vmatpush1.msra.mxu0 0.0
    %1406 = vmatprep.subr.mxu0 0.0
    %1407 = vmatpush1.msra.mxu0 0.0
    %1408 = vmatprep.subr.mxu0 0.0
    %1409 = vmatpush1.msra.mxu0 0.0
    %1410 = vmatprep.subr.mxu0 0.0
    %1411 = vmatpush1.msra.mxu0 0.0
    %1412 = vmatprep.subr.mxu0 0.0
    %1413 = vmatpush1.msra.mxu0 0.0
    %1414 = vmatprep.subr.mxu0 0.0
    %1415 = vmatpush1.msra.mxu0 0.0
    %1416 = vmatprep.subr.mxu0 0.0
    %1417 = vmatpush1.msra.mxu0 0.0
    %1418 = vmatprep.subr.mxu0 0.0
    %1419 = vmatpush1.msra.mxu0 0.0
    %1420 = vmatprep.subr.mxu0 0.0
    %1421 = vmatpush1.msra.mxu0 0.0
    %1422 = vmatprep.subr.mxu0 0.0
    %1423 = vmatpush1.msra.mxu0 0.0
    %1424 = vmatprep.subr.mxu0 0.0
    %1425 = vmatpush1.msra.mxu0 0.0
    %1426 = vmatprep.subr.mxu0 0.0
    %1427 = vmatpush1.msra.mxu0 0.0
    %1428 = vmatprep.subr.mxu0 0.0
    %1429 = vmatpush1.msra.mxu0 0.0
    %1430 = vmatprep.subr.mxu0 0.0
    %1431 = vmatpush1.msra.mxu0 0.0
    %1432 = vmatprep.subr.mxu0 0.0
    %1433 = vmatpush1.msra.mxu0 0.0
    %1434 = vmatprep.mubr.f32.mxu0 0.0
    %1435 = vmatmul.mubr.f32.gmra.mrb[0].mxu0 %v1368
    %v1436 = vpop.f32.mrb[0].mxu0
    %v1437 = vadd.f32 0.0, %v1436
    %v1438 = vpop.f32.mrb[0].mxu0
    %1439 = vdwg.mxu0
    %v1441 = vsel %vm214, %v916, 0
    %1443 = vmatprep.subr.mxu0 0.0
    %1444 = vmatpush1.msra.mxu0 %v1146
    %1445 = vmatprep.subr.mxu0 0.0
    %1446 = vmatpush1.msra.mxu0 0.0
    %1447 = vmatprep.subr.mxu0 0.0
    %1448 = vmatpush1.msra.mxu0 0.0
    %1449 = vmatprep.subr.mxu0 0.0
    %1450 = vmatpush1.msra.mxu0 0.0
    %1451 = vmatprep.subr.mxu0 0.0
    %1452 = vmatpush1.msra.mxu0 0.0
    %1453 = vmatprep.subr.mxu0 0.0
    %1454 = vmatpush1.msra.mxu0 0.0
    %1455 = vmatprep.subr.mxu0 0.0
    %1456 = vmatpush1.msra.mxu0 0.0
    %1457 = vmatprep.subr.mxu0 0.0
    %1458 = vmatpush1.msra.mxu0 0.0
    %1459 = vmatprep.subr.mxu0 0.0
    %1460 = vmatpush1.msra.mxu0 0.0
    %1461 = vmatprep.subr.mxu0 0.0
    %1462 = vmatpush1.msra.mxu0 0.0
    %1463 = vmatprep.subr.mxu0 0.0
    %1464 = vmatpush1.msra.mxu0 0.0
    %1465 = vmatprep.subr.mxu0 0.0
    %1466 = vmatpush1.msra.mxu0 0.0
    %1467 = vmatprep.subr.mxu0 0.0
    %1468 = vmatpush1.msra.mxu0 0.0
    %1469 = vmatprep.subr.mxu0 0.0
    %1470 = vmatpush1.msra.mxu0 0.0
    %1471 = vmatprep.subr.mxu0 0.0
    %1472 = vmatpush1.msra.mxu0 0.0
    %1473 = vmatprep.subr.mxu0 0.0
    %1474 = vmatpush1.msra.mxu0 0.0
    %1475 = vmatprep.subr.mxu0 0.0
    %1476 = vmatpush1.msra.mxu0 0.0
    %1477 = vmatprep.subr.mxu0 0.0
    %1478 = vmatpush1.msra.mxu0 0.0
    %1479 = vmatprep.subr.mxu0 0.0
    %1480 = vmatpush1.msra.mxu0 0.0
    %1481 = vmatprep.subr.mxu0 0.0
    %1482 = vmatpush1.msra.mxu0 0.0
    %1483 = vmatprep.subr.mxu0 0.0
    %1484 = vmatpush1.msra.mxu0 0.0
    %1485 = vmatprep.subr.mxu0 0.0
    %1486 = vmatpush1.msra.mxu0 0.0
    %1487 = vmatprep.subr.mxu0 0.0
    %1488 = vmatpush1.msra.mxu0 0.0
    %1489 = vmatprep.subr.mxu0 0.0
    %1490 = vmatpush1.msra.mxu0 0.0
    %1491 = vmatprep.subr.mxu0 0.0
    %1492 = vmatpush1.msra.mxu0 0.0
    %1493 = vmatprep.subr.mxu0 0.0
    %1494 = vmatpush1.msra.mxu0 0.0
    %1495 = vmatprep.subr.mxu0 0.0
    %1496 = vmatpush1.msra.mxu0 0.0
    %1497 = vmatprep.subr.mxu0 0.0
    %1498 = vmatpush1.msra.mxu0 0.0
    %1499 = vmatprep.subr.mxu0 0.0
    %1500 = vmatpush1.msra.mxu0 0.0
    %1501 = vmatprep.subr.mxu0 0.0
    %1502 = vmatpush1.msra.mxu0 0.0
    %1503 = vmatprep.subr.mxu0 0.0
    %1504 = vmatpush1.msra.mxu0 0.0
    %1505 = vmatprep.subr.mxu0 0.0
    %1506 = vmatpush1.msra.mxu0 0.0
    %1507 = vmatprep.mubr.f32.mxu0 0.0
    %1508 = vmatmul.mubr.f32.gmra.mrb[0].mxu0 %v1441
    %v1509 = vpop.f32.mrb[0].mxu0
    %v1510 = vadd.f32 0.0, %v1509
    %v1511 = vpop.f32.mrb[0].mxu0
    %1512 = vdwg.mxu0
    %v1513 = vstv %s61
    %v1514 = vmul.f32 %v1513, %v1291
    %v1515 = vmul.f32 %v1513, %v1364
    %v1516 = vmul.f32 %v1513, %v1437
    %v1517 = vmul.f32 %v1513, %v1510
    %v1518 = vsub.f32 %v990, %v1514
    %v1519 = vsub.f32 %v1066, %v1515
    %v1520 = vsub.f32 %v1142, %v1516
    %v1521 = vsub.f32 %v1218, %v1517
    %v1522 = vmul.f32 %v1518, %v1518
    %v1523 = vmul.f32 %v1519, %v1519
    %v1524 = vmul.f32 %v1520, %v1520
    %v1525 = vmul.f32 %v1521, %v1521
    %vm1526 = vcmask 130048
    %v1527 = vsel %vm1526, %v1522, 0.0
    %1528 = vadd.xlane.f32.xlu0 %v1527
    %v1529 = vpop.xlane.xlu0 %1528
    %v1530 = vsel %vm1526, %v1523, 0.0
    %1531 = vadd.xlane.f32.xlu0 %v1530
    %v1532 = vpop.xlane.xlu0 %1531
    %v1533 = vsel %vm1526, %v1524, 0.0
    %1534 = vadd.xlane.f32.xlu0 %v1533
    %v1535 = vpop.xlane.xlu0 %1534
    %v1536 = vsel %vm1526, %v1525, 0.0
    %1537 = vadd.xlane.f32.xlu0 %v1536
    %v1538 = vpop.xlane.xlu0 %1537
    %v1539 = vmul.f32 %v1529, 0.0625
    %v1540 = vmul.f32 %v1532, 0.0625
    %v1541 = vmul.f32 %v1535, 0.0625
    %v1542 = vmul.f32 %v1538, 0.0625
    %v1543 = vadd.f32 %v1539, 1e-05
    %v1544 = vadd.f32 %v1540, 1e-05
    %v1545 = vadd.f32 %v1541, 1e-05
    %v1546 = vadd.f32 %v1542, 1e-05
    %v1547 = vrsqrt.pop %v1543
    %v1548 = vrsqrt.pop %v1544
    %v1549 = vrsqrt.pop %v1545
    %v1550 = vrsqrt.pop %v1546
    %v1551 = vmul.f32 %v1518, %v1547
    %v1552 = vmul.f32 %v1519, %v1548
    %v1553 = vmul.f32 %v1520, %v1549
    %v1554 = vmul.f32 %v1521, %v1550
    %v1555 = vmul.f32 %v1551, 0.8
    %v1556 = vmul.f32 %v1552, 0.8
    %v1557 = vmul.f32 %v1553, 0.8
    %v1558 = vmul.f32 %v1554, 0.8
    %v1559 = vld [vmem:[%s6] sm:$0xff]
    %v1560 = vld [vmem:[%s6 + $0x8] sm:$0xff]
    %v1561 = vld [vmem:[%s6 + $0x10] sm:$0xff]
    %v1562 = vld [vmem:[%s6 + $0x18] sm:$0xff]
    %v1564 = vsel %vm1526, %v1557, 0
    %v1567 = vsel %vm1526, %v1558, 0
    %1569 = vmatprep.subr.mxu0 0.0
    %1570 = vmatpush1.msra.mxu0 %v1561
    %1571 = vmatprep.subr.mxu0 0.0
    %1572 = vmatpush1.msra.mxu0 %v1562
    %1573 = vmatprep.subr.mxu0 0.0
    %1574 = vmatpush1.msra.mxu0 0.0
    %1575 = vmatprep.subr.mxu0 0.0
    %1576 = vmatpush1.msra.mxu0 0.0
    %1577 = vmatprep.subr.mxu0 0.0
    %1578 = vmatpush1.msra.mxu0 0.0
    %1579 = vmatprep.subr.mxu0 0.0
    %1580 = vmatpush1.msra.mxu0 0.0
    %1581 = vmatprep.subr.mxu0 0.0
    %1582 = vmatpush1.msra.mxu0 0.0
    %1583 = vmatprep.subr.mxu0 0.0
    %1584 = vmatpush1.msra.mxu0 0.0
    %1585 = vmatprep.subr.mxu0 0.0
    %1586 = vmatpush1.msra.mxu0 0.0
    %1587 = vmatprep.subr.mxu0 0.0
    %1588 = vmatpush1.msra.mxu0 0.0
    %1589 = vmatprep.subr.mxu0 0.0
    %1590 = vmatpush1.msra.mxu0 0.0
    %1591 = vmatprep.subr.mxu0 0.0
    %1592 = vmatpush1.msra.mxu0 0.0
    %1593 = vmatprep.subr.mxu0 0.0
    %1594 = vmatpush1.msra.mxu0 0.0
    %1595 = vmatprep.subr.mxu0 0.0
    %1596 = vmatpush1.msra.mxu0 0.0
    %1597 = vmatprep.subr.mxu0 0.0
    %1598 = vmatpush1.msra.mxu0 0.0
    %1599 = vmatprep.subr.mxu0 0.0
    %1600 = vmatpush1.msra.mxu0 0.0
    %1601 = vmatprep.subr.mxu0 0.0
    %1602 = vmatpush1.msra.mxu0 0.0
    %1603 = vmatprep.subr.mxu0 0.0
    %1604 = vmatpush1.msra.mxu0 0.0
    %1605 = vmatprep.subr.mxu0 0.0
    %1606 = vmatpush1.msra.mxu0 0.0
    %1607 = vmatprep.subr.mxu0 0.0
    %1608 = vmatpush1.msra.mxu0 0.0
    %1609 = vmatprep.subr.mxu0 0.0
    %1610 = vmatpush1.msra.mxu0 0.0
    %1611 = vmatprep.subr.mxu0 0.0
    %1612 = vmatpush1.msra.mxu0 0.0
    %1613 = vmatprep.subr.mxu0 0.0
    %1614 = vmatpush1.msra.mxu0 0.0
    %1615 = vmatprep.subr.mxu0 0.0
    %1616 = vmatpush1.msra.mxu0 0.0
    %1617 = vmatprep.subr.mxu0 0.0
    %1618 = vmatpush1.msra.mxu0 0.0
    %1619 = vmatprep.subr.mxu0 0.0
    %1620 = vmatpush1.msra.mxu0 0.0
    %1621 = vmatprep.subr.mxu0 0.0
    %1622 = vmatpush1.msra.mxu0 0.0
    %1623 = vmatprep.subr.mxu0 0.0
    %1624 = vmatpush1.msra.mxu0 0.0
    %1625 = vmatprep.subr.mxu0 0.0
    %1626 = vmatpush1.msra.mxu0 0.0
    %1627 = vmatprep.subr.mxu0 0.0
    %1628 = vmatpush1.msra.mxu0 0.0
    %1629 = vmatprep.subr.mxu0 0.0
    %1630 = vmatpush1.msra.mxu0 0.0
    %1631 = vmatprep.subr.mxu0 0.0
    %1632 = vmatpush1.msra.mxu0 0.0
    %1633 = vmatprep.mubr.f32.mxu0 0.0
    %1634 = vmatmul.mubr.f32.gmra.mrb[0].mxu0 %v1564
    %v1635 = vpop.f32.mrb[0].mxu0
    %v1636 = vadd.f32 0.0, %v1635
    %v1637 = vpop.f32.mrb[0].mxu0
    %1638 = vmatprep.mubr.f32.mxu0 0.0
    %1639 = vmatmul.mubr.f32.gmra.mrb[0].mxu0 %v1567
    %v1640 = vpop.f32.mrb[0].mxu0
    %v1641 = vadd.f32 0.0, %v1640
    %v1642 = vpop.f32.mrb[0].mxu0
    %1643 = vdwg.mxu0
    %v1645 = vsel %vm1526, %v1555, 0
    %v1648 = vsel %vm1526, %v1556, 0
    %1650 = vmatprep.subr.mxu0 0.0
    %1651 = vmatpush1.msra.mxu0 %v1559
    %1652 = vmatprep.subr.mxu0 0.0
    %1653 = vmatpush1.msra.mxu0 %v1560
    %1654 = vmatprep.subr.mxu0 0.0
    %1655 = vmatpush1.msra.mxu0 0.0
    %1656 = vmatprep.subr.mxu0 0.0
    %1657 = vmatpush1.msra.mxu0 0.0
    %1658 = vmatprep.subr.mxu0 0.0
    %1659 = vmatpush1.msra.mxu0 0.0
    %1660 = vmatprep.subr.mxu0 0.0
    %1661 = vmatpush1.msra.mxu0 0.0
    %1662 = vmatprep.subr.mxu0 0.0
    %1663 = vmatpush1.msra.mxu0 0.0
    %1664 = vmatprep.subr.mxu0 0.0
    %1665 = vmatpush1.msra.mxu0 0.0
    %1666 = vmatprep.subr.mxu0 0.0
    %1667 = vmatpush1.msra.mxu0 0.0
    %1668 = vmatprep.subr.mxu0 0.0
    %1669 = vmatpush1.msra.mxu0 0.0
    %1670 = vmatprep.subr.mxu0 0.0
    %1671 = vmatpush1.msra.mxu0 0.0
    %1672 = vmatprep.subr.mxu0 0.0
    %1673 = vmatpush1.msra.mxu0 0.0
    %1674 = vmatprep.subr.mxu0 0.0
    %1675 = vmatpush1.msra.mxu0 0.0
    %1676 = vmatprep.subr.mxu0 0.0
    %1677 = vmatpush1.msra.mxu0 0.0
    %1678 = vmatprep.subr.mxu0 0.0
    %1679 = vmatpush1.msra.mxu0 0.0
    %1680 = vmatprep.subr.mxu0 0.0
    %1681 = vmatpush1.msra.mxu0 0.0
    %1682 = vmatprep.subr.mxu0 0.0
    %1683 = vmatpush1.msra.mxu0 0.0
    %1684 = vmatprep.subr.mxu0 0.0
    %1685 = vmatpush1.msra.mxu0 0.0
    %1686 = vmatprep.subr.mxu0 0.0
    %1687 = vmatpush1.msra.mxu0 0.0
    %1688 = vmatprep.subr.mxu0 0.0
    %1689 = vmatpush1.msra.mxu0 0.0
    %1690 = vmatprep.subr.mxu0 0.0
    %1691 = vmatpush1.msra.mxu0 0.0
    %1692 = vmatprep.subr.mxu0 0.0
    %1693 = vmatpush1.msra.mxu0 0.0
    %1694 = vmatprep.subr.mxu0 0.0
    %1695 = vmatpush1.msra.mxu0 0.0
    %1696 = vmatprep.subr.mxu0 0.0
    %1697 = vmatpush1.msra.mxu0 0.0
    %1698 = vmatprep.subr.mxu0 0.0
    %1699 = vmatpush1.msra.mxu0 0.0
    %1700 = vmatprep.subr.mxu0 0.0
    %1701 = vmatpush1.msra.mxu0 0.0
    %1702 = vmatprep.subr.mxu0 0.0
    %1703 = vmatpush1.msra.mxu0 0.0
    %1704 = vmatprep.subr.mxu0 0.0
    %1705 = vmatpush1.msra.mxu0 0.0
    %1706 = vmatprep.subr.mxu0 0.0
    %1707 = vmatpush1.msra.mxu0 0.0
    %1708 = vmatprep.subr.mxu0 0.0
    %1709 = vmatpush1.msra.mxu0 0.0
    %1710 = vmatprep.subr.mxu0 0.0
    %1711 = vmatpush1.msra.mxu0 0.0
    %1712 = vmatprep.subr.mxu0 0.0
    %1713 = vmatpush1.msra.mxu0 0.0
    %1714 = vmatprep.mubr.f32.mxu0 0.0
    %1715 = vmatmul.mubr.f32.gmra.mrb[0].mxu0 %v1645
    %v1716 = vpop.f32.mrb[0].mxu0
    %v1717 = vadd.f32 %v1636, %v1716
    %v1718 = vpop.f32.mrb[0].mxu0
    %1719 = vmatprep.mubr.f32.mxu0 0.0
    %1720 = vmatmul.mubr.f32.gmra.mrb[0].mxu0 %v1648
    %v1721 = vpop.f32.mrb[0].mxu0
    %v1722 = vadd.f32 %v1641, %v1721
    %v1723 = vpop.f32.mrb[0].mxu0
    %1724 = vdwg.mxu0
    %v1725 = vadd.f32 %v51, %v1717
    %v1726 = vadd.f32 %v52, %v1722
    %v1727 = vmul.f32 %v1725, %v1725
    %v1728 = vmul.f32 %v1726, %v1726
    %v1729 = vsel %vm64, %v1727, 0.0
    %1730 = vadd.xlane.f32.xlu0 %v1729
    %v1731 = vpop.xlane.xlu0 %1730
    %v1732 = vsel %vm64, %v1728, 0.0
    %1733 = vadd.xlane.f32.xlu0 %v1732
    %v1734 = vpop.xlane.xlu0 %1733
    %v1735 = vmul.f32 %v1731, 0.03125
    %v1736 = vmul.f32 %v1734, 0.03125
    %v1737 = vadd.f32 %v1735, 1e-05
    %v1738 = vadd.f32 %v1736, 1e-05
    %v1739 = vrsqrt.pop %v1737
    %v1740 = vrsqrt.pop %v1738
    %v1741 = vmul.f32 %v1725, %v1739
    %v1742 = vmul.f32 %v1726, %v1740
    %v1743 = vld [vmem:[%s7] sm:$0xff]
    %v1744 = vld [vmem:[%s7 + $0x8] sm:$0xff]
    %v1745 = vld [vmem:[%s7 + $0x10] sm:$0xff]
    %v1746 = vld [vmem:[%s7 + $0x18] sm:$0xff]
    %v1748 = vsel %vm64, %v1741, 0
    %v1751 = vsel %vm64, %v1742, 0
    %1753 = vmatprep.subr.mxu0 0.0
    %1754 = vmatpush1.msra.mxu0 %v1743
    %1755 = vmatprep.subr.mxu0 0.0
    %1756 = vmatpush1.msra.mxu0 %v1744
    %1757 = vmatprep.subr.mxu0 0.0
    %1758 = vmatpush1.msra.mxu0 %v1745
    %1759 = vmatprep.subr.mxu0 0.0
    %1760 = vmatpush1.msra.mxu0 %v1746
    %1761 = vmatprep.subr.mxu0 0.0
    %1762 = vmatpush1.msra.mxu0 0.0
    %1763 = vmatprep.subr.mxu0 0.0
    %1764 = vmatpush1.msra.mxu0 0.0
    %1765 = vmatprep.subr.mxu0 0.0
    %1766 = vmatpush1.msra.mxu0 0.0
    %1767 = vmatprep.subr.mxu0 0.0
    %1768 = vmatpush1.msra.mxu0 0.0
    %1769 = vmatprep.subr.mxu0 0.0
    %1770 = vmatpush1.msra.mxu0 0.0
    %1771 = vmatprep.subr.mxu0 0.0
    %1772 = vmatpush1.msra.mxu0 0.0
    %1773 = vmatprep.subr.mxu0 0.0
    %1774 = vmatpush1.msra.mxu0 0.0
    %1775 = vmatprep.subr.mxu0 0.0
    %1776 = vmatpush1.msra.mxu0 0.0
    %1777 = vmatprep.subr.mxu0 0.0
    %1778 = vmatpush1.msra.mxu0 0.0
    %1779 = vmatprep.subr.mxu0 0.0
    %1780 = vmatpush1.msra.mxu0 0.0
    %1781 = vmatprep.subr.mxu0 0.0
    %1782 = vmatpush1.msra.mxu0 0.0
    %1783 = vmatprep.subr.mxu0 0.0
    %1784 = vmatpush1.msra.mxu0 0.0
    %1785 = vmatprep.subr.mxu0 0.0
    %1786 = vmatpush1.msra.mxu0 0.0
    %1787 = vmatprep.subr.mxu0 0.0
    %1788 = vmatpush1.msra.mxu0 0.0
    %1789 = vmatprep.subr.mxu0 0.0
    %1790 = vmatpush1.msra.mxu0 0.0
    %1791 = vmatprep.subr.mxu0 0.0
    %1792 = vmatpush1.msra.mxu0 0.0
    %1793 = vmatprep.subr.mxu0 0.0
    %1794 = vmatpush1.msra.mxu0 0.0
    %1795 = vmatprep.subr.mxu0 0.0
    %1796 = vmatpush1.msra.mxu0 0.0
    %1797 = vmatprep.subr.mxu0 0.0
    %1798 = vmatpush1.msra.mxu0 0.0
    %1799 = vmatprep.subr.mxu0 0.0
    %1800 = vmatpush1.msra.mxu0 0.0
    %1801 = vmatprep.subr.mxu0 0.0
    %1802 = vmatpush1.msra.mxu0 0.0
    %1803 = vmatprep.subr.mxu0 0.0
    %1804 = vmatpush1.msra.mxu0 0.0
    %1805 = vmatprep.subr.mxu0 0.0
    %1806 = vmatpush1.msra.mxu0 0.0
    %1807 = vmatprep.subr.mxu0 0.0
    %1808 = vmatpush1.msra.mxu0 0.0
    %1809 = vmatprep.subr.mxu0 0.0
    %1810 = vmatpush1.msra.mxu0 0.0
    %1811 = vmatprep.subr.mxu0 0.0
    %1812 = vmatpush1.msra.mxu0 0.0
    %1813 = vmatprep.subr.mxu0 0.0
    %1814 = vmatpush1.msra.mxu0 0.0
    %1815 = vmatprep.subr.mxu0 0.0
    %1816 = vmatpush1.msra.mxu0 0.0
    %1817 = vmatprep.mubr.f32.mxu0 0.0
    %1818 = vmatmul.mubr.f32.gmra.mrb[0].mxu0 %v1748
    %v1819 = vpop.f32.mrb[0].mxu0
    %v1820 = vadd.f32 0.0, %v1819
    %v1821 = vpop.f32.mrb[0].mxu0
    %1822 = vmatprep.mubr.f32.mxu0 0.0
    %1823 = vmatmul.mubr.f32.gmra.mrb[0].mxu0 %v1751
    %v1824 = vpop.f32.mrb[0].mxu0
    %v1825 = vadd.f32 0.0, %v1824
    %v1826 = vpop.f32.mrb[0].mxu0
    %1827 = vdwg.mxu0
    %v1828 = vld [vmem:[%s8] sm:$0xff]
    %v1829 = vld [vmem:[%s8 + $0x8] sm:$0xff]
    %v1830 = vld [vmem:[%s8 + $0x10] sm:$0xff]
    %v1831 = vld [vmem:[%s8 + $0x18] sm:$0xff]
    %1832 = vmatprep.subr.mxu0 0.0
    %1833 = vmatpush1.msra.mxu0 %v1828
    %1834 = vmatprep.subr.mxu0 0.0
    %1835 = vmatpush1.msra.mxu0 %v1829
    %1836 = vmatprep.subr.mxu0 0.0
    %1837 = vmatpush1.msra.mxu0 %v1830
    %1838 = vmatprep.subr.mxu0 0.0
    %1839 = vmatpush1.msra.mxu0 %v1831
    %1840 = vmatprep.subr.mxu0 0.0
    %1841 = vmatpush1.msra.mxu0 0.0
    %1842 = vmatprep.subr.mxu0 0.0
    %1843 = vmatpush1.msra.mxu0 0.0
    %1844 = vmatprep.subr.mxu0 0.0
    %1845 = vmatpush1.msra.mxu0 0.0
    %1846 = vmatprep.subr.mxu0 0.0
    %1847 = vmatpush1.msra.mxu0 0.0
    %1848 = vmatprep.subr.mxu0 0.0
    %1849 = vmatpush1.msra.mxu0 0.0
    %1850 = vmatprep.subr.mxu0 0.0
    %1851 = vmatpush1.msra.mxu0 0.0
    %1852 = vmatprep.subr.mxu0 0.0
    %1853 = vmatpush1.msra.mxu0 0.0
    %1854 = vmatprep.subr.mxu0 0.0
    %1855 = vmatpush1.msra.mxu0 0.0
    %1856 = vmatprep.subr.mxu0 0.0
    %1857 = vmatpush1.msra.mxu0 0.0
    %1858 = vmatprep.subr.mxu0 0.0
    %1859 = vmatpush1.msra.mxu0 0.0
    %1860 = vmatprep.subr.mxu0 0.0
    %1861 = vmatpush1.msra.mxu0 0.0
    %1862 = vmatprep.subr.mxu0 0.0
    %1863 = vmatpush1.msra.mxu0 0.0
    %1864 = vmatprep.subr.mxu0 0.0
    %1865 = vmatpush1.msra.mxu0 0.0
    %1866 = vmatprep.subr.mxu0 0.0
    %1867 = vmatpush1.msra.mxu0 0.0
    %1868 = vmatprep.subr.mxu0 0.0
    %1869 = vmatpush1.msra.mxu0 0.0
    %1870 = vmatprep.subr.mxu0 0.0
    %1871 = vmatpush1.msra.mxu0 0.0
    %1872 = vmatprep.subr.mxu0 0.0
    %1873 = vmatpush1.msra.mxu0 0.0
    %1874 = vmatprep.subr.mxu0 0.0
    %1875 = vmatpush1.msra.mxu0 0.0
    %1876 = vmatprep.subr.mxu0 0.0
    %1877 = vmatpush1.msra.mxu0 0.0
    %1878 = vmatprep.subr.mxu0 0.0
    %1879 = vmatpush1.msra.mxu0 0.0
    %1880 = vmatprep.subr.mxu0 0.0
    %1881 = vmatpush1.msra.mxu0 0.0
    %1882 = vmatprep.subr.mxu0 0.0
    %1883 = vmatpush1.msra.mxu0 0.0
    %1884 = vmatprep.subr.mxu0 0.0
    %1885 = vmatpush1.msra.mxu0 0.0
    %1886 = vmatprep.subr.mxu0 0.0
    %1887 = vmatpush1.msra.mxu0 0.0
    %1888 = vmatprep.subr.mxu0 0.0
    %1889 = vmatpush1.msra.mxu0 0.0
    %1890 = vmatprep.subr.mxu0 0.0
    %1891 = vmatpush1.msra.mxu0 0.0
    %1892 = vmatprep.subr.mxu0 0.0
    %1893 = vmatpush1.msra.mxu0 0.0
    %1894 = vmatprep.subr.mxu0 0.0
    %1895 = vmatpush1.msra.mxu0 0.0
    %1896 = vmatprep.mubr.f32.mxu0 0.0
    %1897 = vmatmul.mubr.f32.gmra.mrb[0].mxu0 %v1748
    %v1898 = vpop.f32.mrb[0].mxu0
    %v1899 = vadd.f32 0.0, %v1898
    %v1900 = vpop.f32.mrb[0].mxu0
    %1901 = vmatprep.mubr.f32.mxu0 0.0
    %1902 = vmatmul.mubr.f32.gmra.mrb[0].mxu0 %v1751
    %v1903 = vpop.f32.mrb[0].mxu0
    %v1904 = vadd.f32 0.0, %v1903
    %v1905 = vpop.f32.mrb[0].mxu0
    %1906 = vdwg.mxu0
    %v1907 = vxor.u32 %v1899, 2147483648
    %v1908 = vxor.u32 %v1904, 2147483648
    %v1909 = vmul.f32 %v1907, 1.442695
    %v1910 = vpow.pop %v1909
    %v1911 = vmul.f32 %v1908, 1.442695
    %v1912 = vpow.pop %v1911
    %v1913 = vadd.f32 %v1910, 1.0
    %v1914 = vadd.f32 %v1912, 1.0
    %v1915 = vrcp.pop %v1913
    %v1916 = vmul.f32 1.0, %v1915
    %v1917 = vrcp.pop %v1914
    %v1918 = vmul.f32 1.0, %v1917
    %v1919 = vmul.f32 %v1899, %v1916
    %v1920 = vmul.f32 %v1904, %v1918
    %v1921 = vmul.f32 %v1820, %v1919
    %v1922 = vmul.f32 %v1825, %v1920
    %v1923 = vld [vmem:[%s9] sm:$0xff]
    %v1924 = vld [vmem:[%s9 + $0x8] sm:$0xff]
    %v1925 = vld [vmem:[%s9 + $0x10] sm:$0xff]
    %v1926 = vld [vmem:[%s9 + $0x18] sm:$0xff]
    %v1927 = vld [vmem:[%s9 + $0x20] sm:$0xff]
    %v1928 = vld [vmem:[%s9 + $0x28] sm:$0xff]
    %v1929 = vld [vmem:[%s9 + $0x30] sm:$0xff]
    %v1930 = vld [vmem:[%s9 + $0x38] sm:$0xff]
    %v1931 = vld [vmem:[%s9 + $0x40] sm:$0xff]
    %v1932 = vld [vmem:[%s9 + $0x48] sm:$0xff]
    %v1933 = vld [vmem:[%s9 + $0x50] sm:$0xff]
    %v1934 = vld [vmem:[%s9 + $0x58] sm:$0xff]
    %v1935 = vld [vmem:[%s9 + $0x60] sm:$0xff]
    %v1936 = vld [vmem:[%s9 + $0x68] sm:$0xff]
    %v1937 = vld [vmem:[%s9 + $0x70] sm:$0xff]
    %v1938 = vld [vmem:[%s9 + $0x78] sm:$0xff]
    %1939 = vmatprep.subr.mxu0 0.0
    %1940 = vmatpush1.msra.mxu0 %v1923
    %1941 = vmatprep.subr.mxu0 0.0
    %1942 = vmatpush1.msra.mxu0 %v1924
    %1943 = vmatprep.subr.mxu0 0.0
    %1944 = vmatpush1.msra.mxu0 %v1925
    %1945 = vmatprep.subr.mxu0 0.0
    %1946 = vmatpush1.msra.mxu0 %v1926
    %1947 = vmatprep.subr.mxu0 0.0
    %1948 = vmatpush1.msra.mxu0 %v1927
    %1949 = vmatprep.subr.mxu0 0.0
    %1950 = vmatpush1.msra.mxu0 %v1928
    %1951 = vmatprep.subr.mxu0 0.0
    %1952 = vmatpush1.msra.mxu0 %v1929
    %1953 = vmatprep.subr.mxu0 0.0
    %1954 = vmatpush1.msra.mxu0 %v1930
    %1955 = vmatprep.subr.mxu0 0.0
    %1956 = vmatpush1.msra.mxu0 %v1931
    %1957 = vmatprep.subr.mxu0 0.0
    %1958 = vmatpush1.msra.mxu0 %v1932
    %1959 = vmatprep.subr.mxu0 0.0
    %1960 = vmatpush1.msra.mxu0 %v1933
    %1961 = vmatprep.subr.mxu0 0.0
    %1962 = vmatpush1.msra.mxu0 %v1934
    %1963 = vmatprep.subr.mxu0 0.0
    %1964 = vmatpush1.msra.mxu0 %v1935
    %1965 = vmatprep.subr.mxu0 0.0
    %1966 = vmatpush1.msra.mxu0 %v1936
    %1967 = vmatprep.subr.mxu0 0.0
    %1968 = vmatpush1.msra.mxu0 %v1937
    %1969 = vmatprep.subr.mxu0 0.0
    %1970 = vmatpush1.msra.mxu0 %v1938
    %1971 = vmatprep.subr.mxu0 0.0
    %1972 = vmatpush1.msra.mxu0 0.0
    %1973 = vmatprep.subr.mxu0 0.0
    %1974 = vmatpush1.msra.mxu0 0.0
    %1975 = vmatprep.subr.mxu0 0.0
    %1976 = vmatpush1.msra.mxu0 0.0
    %1977 = vmatprep.subr.mxu0 0.0
    %1978 = vmatpush1.msra.mxu0 0.0
    %1979 = vmatprep.subr.mxu0 0.0
    %1980 = vmatpush1.msra.mxu0 0.0
    %1981 = vmatprep.subr.mxu0 0.0
    %1982 = vmatpush1.msra.mxu0 0.0
    %1983 = vmatprep.subr.mxu0 0.0
    %1984 = vmatpush1.msra.mxu0 0.0
    %1985 = vmatprep.subr.mxu0 0.0
    %1986 = vmatpush1.msra.mxu0 0.0
    %1987 = vmatprep.subr.mxu0 0.0
    %1988 = vmatpush1.msra.mxu0 0.0
    %1989 = vmatprep.subr.mxu0 0.0
    %1990 = vmatpush1.msra.mxu0 0.0
    %1991 = vmatprep.subr.mxu0 0.0
    %1992 = vmatpush1.msra.mxu0 0.0
    %1993 = vmatprep.subr.mxu0 0.0
    %1994 = vmatpush1.msra.mxu0 0.0
    %1995 = vmatprep.subr.mxu0 0.0
    %1996 = vmatpush1.msra.mxu0 0.0
    %1997 = vmatprep.subr.mxu0 0.0
    %1998 = vmatpush1.msra.mxu0 0.0
    %1999 = vmatprep.subr.mxu0 0.0
    %2000 = vmatpush1.msra.mxu0 0.0
    %2001 = vmatprep.subr.mxu0 0.0
    %2002 = vmatpush1.msra.mxu0 0.0
    %2003 = vmatprep.mubr.f32.mxu0 0.0
    %2004 = vmatmul.mubr.f32.gmra.mrb[0].mxu0 %v1921
    %v2005 = vpop.f32.mrb[0].mxu0
    %v2006 = vadd.f32 0.0, %v2005
    %v2007 = vpop.f32.mrb[0].mxu0
    %2008 = vmatprep.mubr.f32.mxu0 0.0
    %2009 = vmatmul.mubr.f32.gmra.mrb[0].mxu0 %v1922
    %v2010 = vpop.f32.mrb[0].mxu0
    %v2011 = vadd.f32 0.0, %v2010
    %v2012 = vpop.f32.mrb[0].mxu0
    %2013 = vdwg.mxu0
    %v2014 = vadd.f32 %v1725, %v2006
    %v2015 = vadd.f32 %v1726, %v2011
    %s2016 = sld [smem:[#allocation2 + $0x1]]
    %v2017 = vmul.f32 %v2014, %v2014
    %v2018 = vmul.f32 %v2015, %v2015
    %v2019 = vsel %vm64, %v2017, 0.0
    %2020 = vadd.xlane.f32.xlu0 %v2019
    %v2021 = vpop.xlane.xlu0 %2020
    %v2022 = vsel %vm64, %v2018, 0.0
    %2023 = vadd.xlane.f32.xlu0 %v2022
    %v2024 = vpop.xlane.xlu0 %2023
    %v2025 = vmul.f32 %v2021, 0.03125
    %v2026 = vmul.f32 %v2024, 0.03125
    %v2027 = vadd.f32 %v2025, 1e-05
    %v2028 = vadd.f32 %v2026, 1e-05
    %v2029 = vrsqrt.pop %v2027
    %v2030 = vrsqrt.pop %v2028
    %v2031 = vmul.f32 %v2014, %v2029
    %v2032 = vmul.f32 %v2015, %v2030
    %s2033 = scalar_lea.vmem %s5, 32
    %v2034 = vld [vmem:[%s2033] sm:$0xff]
    %v2035 = vld [vmem:[%s2033 + $0x8] sm:$0xff]
    %v2036 = vld [vmem:[%s2033 + $0x10] sm:$0xff]
    %v2037 = vld [vmem:[%s2033 + $0x18] sm:$0xff]
    %v2039 = vsel %vm64, %v2031, 0
    %v2042 = vsel %vm64, %v2032, 0
    %2044 = vmatprep.subr.mxu0 0.0
    %2045 = vmatpush1.msra.mxu0 %v2034
    %2046 = vmatprep.subr.mxu0 0.0
    %2047 = vmatpush1.msra.mxu0 %v2035
    %2048 = vmatprep.subr.mxu0 0.0
    %2049 = vmatpush1.msra.mxu0 %v2036
    %2050 = vmatprep.subr.mxu0 0.0
    %2051 = vmatpush1.msra.mxu0 %v2037
    %2052 = vmatprep.subr.mxu0 0.0
    %2053 = vmatpush1.msra.mxu0 0.0
    %2054 = vmatprep.subr.mxu0 0.0
    %2055 = vmatpush1.msra.mxu0 0.0
    %2056 = vmatprep.subr.mxu0 0.0
    %2057 = vmatpush1.msra.mxu0 0.0
    %2058 = vmatprep.subr.mxu0 0.0
    %2059 = vmatpush1.msra.mxu0 0.0
    %2060 = vmatprep.subr.mxu0 0.0
    %2061 = vmatpush1.msra.mxu0 0.0
    %2062 = vmatprep.subr.mxu0 0.0
    %2063 = vmatpush1.msra.mxu0 0.0
    %2064 = vmatprep.subr.mxu0 0.0
    %2065 = vmatpush1.msra.mxu0 0.0
    %2066 = vmatprep.subr.mxu0 0.0
    %2067 = vmatpush1.msra.mxu0 0.0
    %2068 = vmatprep.subr.mxu0 0.0
    %2069 = vmatpush1.msra.mxu0 0.0
    %2070 = vmatprep.subr.mxu0 0.0
    %2071 = vmatpush1.msra.mxu0 0.0
    %2072 = vmatprep.subr.mxu0 0.0
    %2073 = vmatpush1.msra.mxu0 0.0
    %2074 = vmatprep.subr.mxu0 0.0
    %2075 = vmatpush1.msra.mxu0 0.0
    %2076 = vmatprep.subr.mxu0 0.0
    %2077 = vmatpush1.msra.mxu0 0.0
    %2078 = vmatprep.subr.mxu0 0.0
    %2079 = vmatpush1.msra.mxu0 0.0
    %2080 = vmatprep.subr.mxu0 0.0
    %2081 = vmatpush1.msra.mxu0 0.0
    %2082 = vmatprep.subr.mxu0 0.0
    %2083 = vmatpush1.msra.mxu0 0.0
    %2084 = vmatprep.subr.mxu0 0.0
    %2085 = vmatpush1.msra.mxu0 0.0
    %2086 = vmatprep.subr.mxu0 0.0
    %2087 = vmatpush1.msra.mxu0 0.0
    %2088 = vmatprep.subr.mxu0 0.0
    %2089 = vmatpush1.msra.mxu0 0.0
    %2090 = vmatprep.subr.mxu0 0.0
    %2091 = vmatpush1.msra.mxu0 0.0
    %2092 = vmatprep.subr.mxu0 0.0
    %2093 = vmatpush1.msra.mxu0 0.0
    %2094 = vmatprep.subr.mxu0 0.0
    %2095 = vmatpush1.msra.mxu0 0.0
    %2096 = vmatprep.subr.mxu0 0.0
    %2097 = vmatpush1.msra.mxu0 0.0
    %2098 = vmatprep.subr.mxu0 0.0
    %2099 = vmatpush1.msra.mxu0 0.0
    %2100 = vmatprep.subr.mxu0 0.0
    %2101 = vmatpush1.msra.mxu0 0.0
    %2102 = vmatprep.subr.mxu0 0.0
    %2103 = vmatpush1.msra.mxu0 0.0
    %2104 = vmatprep.subr.mxu0 0.0
    %2105 = vmatpush1.msra.mxu0 0.0
    %2106 = vmatprep.subr.mxu0 0.0
    %2107 = vmatpush1.msra.mxu0 0.0
    %2108 = vmatprep.mubr.f32.mxu0 0.0
    %2109 = vmatmul.mubr.f32.gmra.mrb[0].mxu0 %v2039
    %v2110 = vpop.f32.mrb[0].mxu0
    %v2111 = vadd.f32 0.0, %v2110
    %v2112 = vpop.f32.mrb[0].mxu0
    %2113 = vmatprep.mubr.f32.mxu0 0.0
    %2114 = vmatmul.mubr.f32.gmra.mrb[0].mxu0 %v2042
    %v2115 = vpop.f32.mrb[0].mxu0
    %v2116 = vadd.f32 0.0, %v2115
    %v2117 = vpop.f32.mrb[0].mxu0
    %2118 = vdwg.mxu0
    %2121 = vrot.lane.b32.xlu0 %v2111, 127
    %v2122 = vpop.permute.xlu0 %2121
    %2123 = vrot.lane.b32.xlu0 %v2116, 127
    %v2124 = vpop.permute.xlu0 %2123
    %v2127 = vsel %vm172, %v2122, 0.0
    %v2128 = vsel %vm172, %v2124, 0.0
    %2129 = vrot.lane.b32.xlu0 %v2111, 1
    %v2130 = vpop.permute.xlu0 %2129
    %2131 = vrot.lane.b32.xlu0 %v2116, 1
    %v2132 = vpop.permute.xlu0 %2131
    %v2135 = vsel %vm181, 0.0, %v2130
    %v2136 = vsel %vm181, 0.0, %v2132
    %v2137 = vmul.f32 %v2111, %v53
    %v2138 = vmul.f32 %v2116, %v53
    %v2139 = vmul.f32 %v2127, %v54
    %v2140 = vmul.f32 %v2128, %v54
    %v2141 = vadd.f32 %v2137, %v2139
    %v2142 = vadd.f32 %v2138, %v2140
    %v2143 = vmul.f32 %v2135, %v55
    %v2144 = vmul.f32 %v2136, %v55
    %v2145 = vadd.f32 %v2141, %v2143
    %v2146 = vadd.f32 %v2142, %v2144
    %2149 = vrot.lane.b32.xlu0 %v2145, 120
    %v2150 = vpop.permute.xlu0 %2149
    %2151 = vrot.lane.b32.xlu0 %v2146, 120
    %v2152 = vpop.permute.xlu0 %2151
    %2153 = vrot.lane.b32.xlu0 %v2145, 112
    %v2154 = vpop.permute.xlu0 %2153
    %2155 = vrot.lane.b32.xlu0 %v2146, 112
    %v2156 = vpop.permute.xlu0 %2155
    %2157 = vrot.lane.b32.xlu0 %v2145, 104
    %v2158 = vpop.permute.xlu0 %2157
    %2159 = vrot.lane.b32.xlu0 %v2146, 104
    %v2160 = vpop.permute.xlu0 %2159
    %2161 = vrot.lane.b32.xlu0 %v2111, 112
    %v2162 = vpop.permute.xlu0 %2161
    %2163 = vrot.lane.b32.xlu0 %v2116, 112
    %v2164 = vpop.permute.xlu0 %2163
    %2165 = vrot.lane.b32.xlu0 %v2145, 96
    %v2166 = vpop.permute.xlu0 %2165
    %v2167 = vsel %vm214, %v2145, 0
    %v2169 = vsel %vm214, %v2166, 0
    %2171 = vmatprep.subr.mxu0 0.0
    %2172 = vmatpush1.xpose.msra.mxu0 %v2169
    %2173 = vmatprep.subr.mxu0 0.0
    %2174 = vmatpush1.xpose.msra.mxu0 0.0
    %2175 = vmatprep.subr.mxu0 0.0
    %2176 = vmatpush1.xpose.msra.mxu0 0.0
    %2177 = vmatprep.subr.mxu0 0.0
    %2178 = vmatpush1.xpose.msra.mxu0 0.0
    %2179 = vmatprep.subr.mxu0 0.0
    %2180 = vmatpush1.xpose.msra.mxu0 0.0
    %2181 = vmatprep.subr.mxu0 0.0
    %2182 = vmatpush1.xpose.msra.mxu0 0.0
    %2183 = vmatprep.subr.mxu0 0.0
    %2184 = vmatpush1.xpose.msra.mxu0 0.0
    %2185 = vmatprep.subr.mxu0 0.0
    %2186 = vmatpush1.xpose.msra.mxu0 0.0
    %2187 = vmatprep.subr.mxu0 0.0
    %2188 = vmatpush1.xpose.msra.mxu0 0.0
    %2189 = vmatprep.subr.mxu0 0.0
    %2190 = vmatpush1.xpose.msra.mxu0 0.0
    %2191 = vmatprep.subr.mxu0 0.0
    %2192 = vmatpush1.xpose.msra.mxu0 0.0
    %2193 = vmatprep.subr.mxu0 0.0
    %2194 = vmatpush1.xpose.msra.mxu0 0.0
    %2195 = vmatprep.subr.mxu0 0.0
    %2196 = vmatpush1.xpose.msra.mxu0 0.0
    %2197 = vmatprep.subr.mxu0 0.0
    %2198 = vmatpush1.xpose.msra.mxu0 0.0
    %2199 = vmatprep.subr.mxu0 0.0
    %2200 = vmatpush1.xpose.msra.mxu0 0.0
    %2201 = vmatprep.subr.mxu0 0.0
    %2202 = vmatpush1.xpose.msra.mxu0 0.0
    %2203 = vmatprep.subr.mxu0 0.0
    %2204 = vmatpush1.xpose.msra.mxu0 0.0
    %2205 = vmatprep.subr.mxu0 0.0
    %2206 = vmatpush1.xpose.msra.mxu0 0.0
    %2207 = vmatprep.subr.mxu0 0.0
    %2208 = vmatpush1.xpose.msra.mxu0 0.0
    %2209 = vmatprep.subr.mxu0 0.0
    %2210 = vmatpush1.xpose.msra.mxu0 0.0
    %2211 = vmatprep.subr.mxu0 0.0
    %2212 = vmatpush1.xpose.msra.mxu0 0.0
    %2213 = vmatprep.subr.mxu0 0.0
    %2214 = vmatpush1.xpose.msra.mxu0 0.0
    %2215 = vmatprep.subr.mxu0 0.0
    %2216 = vmatpush1.xpose.msra.mxu0 0.0
    %2217 = vmatprep.subr.mxu0 0.0
    %2218 = vmatpush1.xpose.msra.mxu0 0.0
    %2219 = vmatprep.subr.mxu0 0.0
    %2220 = vmatpush1.xpose.msra.mxu0 0.0
    %2221 = vmatprep.subr.mxu0 0.0
    %2222 = vmatpush1.xpose.msra.mxu0 0.0
    %2223 = vmatprep.subr.mxu0 0.0
    %2224 = vmatpush1.xpose.msra.mxu0 0.0
    %2225 = vmatprep.subr.mxu0 0.0
    %2226 = vmatpush1.xpose.msra.mxu0 0.0
    %2227 = vmatprep.subr.mxu0 0.0
    %2228 = vmatpush1.xpose.msra.mxu0 0.0
    %2229 = vmatprep.subr.mxu0 0.0
    %2230 = vmatpush1.xpose.msra.mxu0 0.0
    %2231 = vmatprep.subr.mxu0 0.0
    %2232 = vmatpush1.xpose.msra.mxu0 0.0
    %2233 = vmatprep.subr.mxu0 0.0
    %2234 = vmatpush1.xpose.msra.mxu0 0.0
    %2235 = vmatprep.mubr.f32.mxu0 0.0
    %2236 = vmatmul.mubr.f32.gmra.mrb[0].mxu0 %v2167
    %v2237 = vpop.f32.mrb[0].mxu0
    %v2238 = vadd.f32 0.0, %v2237
    %v2239 = vpop.f32.mrb[0].mxu0
    %2240 = vdwg.mxu0
    %2241 = vrot.lane.b32.xlu0 %v2146, 96
    %v2242 = vpop.permute.xlu0 %2241
    %v2243 = vsel %vm214, %v2146, 0
    %v2245 = vsel %vm214, %v2242, 0
    %2247 = vmatprep.subr.mxu0 0.0
    %2248 = vmatpush1.xpose.msra.mxu0 %v2245
    %2249 = vmatprep.subr.mxu0 0.0
    %2250 = vmatpush1.xpose.msra.mxu0 0.0
    %2251 = vmatprep.subr.mxu0 0.0
    %2252 = vmatpush1.xpose.msra.mxu0 0.0
    %2253 = vmatprep.subr.mxu0 0.0
    %2254 = vmatpush1.xpose.msra.mxu0 0.0
    %2255 = vmatprep.subr.mxu0 0.0
    %2256 = vmatpush1.xpose.msra.mxu0 0.0
    %2257 = vmatprep.subr.mxu0 0.0
    %2258 = vmatpush1.xpose.msra.mxu0 0.0
    %2259 = vmatprep.subr.mxu0 0.0
    %2260 = vmatpush1.xpose.msra.mxu0 0.0
    %2261 = vmatprep.subr.mxu0 0.0
    %2262 = vmatpush1.xpose.msra.mxu0 0.0
    %2263 = vmatprep.subr.mxu0 0.0
    %2264 = vmatpush1.xpose.msra.mxu0 0.0
    %2265 = vmatprep.subr.mxu0 0.0
    %2266 = vmatpush1.xpose.msra.mxu0 0.0
    %2267 = vmatprep.subr.mxu0 0.0
    %2268 = vmatpush1.xpose.msra.mxu0 0.0
    %2269 = vmatprep.subr.mxu0 0.0
    %2270 = vmatpush1.xpose.msra.mxu0 0.0
    %2271 = vmatprep.subr.mxu0 0.0
    %2272 = vmatpush1.xpose.msra.mxu0 0.0
    %2273 = vmatprep.subr.mxu0 0.0
    %2274 = vmatpush1.xpose.msra.mxu0 0.0
    %2275 = vmatprep.subr.mxu0 0.0
    %2276 = vmatpush1.xpose.msra.mxu0 0.0
    %2277 = vmatprep.subr.mxu0 0.0
    %2278 = vmatpush1.xpose.msra.mxu0 0.0
    %2279 = vmatprep.subr.mxu0 0.0
    %2280 = vmatpush1.xpose.msra.mxu0 0.0
    %2281 = vmatprep.subr.mxu0 0.0
    %2282 = vmatpush1.xpose.msra.mxu0 0.0
    %2283 = vmatprep.subr.mxu0 0.0
    %2284 = vmatpush1.xpose.msra.mxu0 0.0
    %2285 = vmatprep.subr.mxu0 0.0
    %2286 = vmatpush1.xpose.msra.mxu0 0.0
    %2287 = vmatprep.subr.mxu0 0.0
    %2288 = vmatpush1.xpose.msra.mxu0 0.0
    %2289 = vmatprep.subr.mxu0 0.0
    %2290 = vmatpush1.xpose.msra.mxu0 0.0
    %2291 = vmatprep.subr.mxu0 0.0
    %2292 = vmatpush1.xpose.msra.mxu0 0.0
    %2293 = vmatprep.subr.mxu0 0.0
    %2294 = vmatpush1.xpose.msra.mxu0 0.0
    %2295 = vmatprep.subr.mxu0 0.0
    %2296 = vmatpush1.xpose.msra.mxu0 0.0
    %2297 = vmatprep.subr.mxu0 0.0
    %2298 = vmatpush1.xpose.msra.mxu0 0.0
    %2299 = vmatprep.subr.mxu0 0.0
    %2300 = vmatpush1.xpose.msra.mxu0 0.0
    %2301 = vmatprep.subr.mxu0 0.0
    %2302 = vmatpush1.xpose.msra.mxu0 0.0
    %2303 = vmatprep.subr.mxu0 0.0
    %2304 = vmatpush1.xpose.msra.mxu0 0.0
    %2305 = vmatprep.subr.mxu0 0.0
    %2306 = vmatpush1.xpose.msra.mxu0 0.0
    %2307 = vmatprep.subr.mxu0 0.0
    %2308 = vmatpush1.xpose.msra.mxu0 0.0
    %2309 = vmatprep.subr.mxu0 0.0
    %2310 = vmatpush1.xpose.msra.mxu0 0.0
    %2311 = vmatprep.mubr.f32.mxu0 0.0
    %2312 = vmatmul.mubr.f32.gmra.mrb[0].mxu0 %v2243
    %v2313 = vpop.f32.mrb[0].mxu0
    %v2314 = vadd.f32 0.0, %v2313
    %v2315 = vpop.f32.mrb[0].mxu0
    %2316 = vdwg.mxu0
    %2317 = vrot.lane.b32.xlu0 %v2150, 96
    %v2318 = vpop.permute.xlu0 %2317
    %v2319 = vsel %vm214, %v2150, 0
    %v2321 = vsel %vm214, %v2318, 0
    %2323 = vmatprep.subr.mxu0 0.0
    %2324 = vmatpush1.xpose.msra.mxu0 %v2321
    %2325 = vmatprep.subr.mxu0 0.0
    %2326 = vmatpush1.xpose.msra.mxu0 0.0
    %2327 = vmatprep.subr.mxu0 0.0
    %2328 = vmatpush1.xpose.msra.mxu0 0.0
    %2329 = vmatprep.subr.mxu0 0.0
    %2330 = vmatpush1.xpose.msra.mxu0 0.0
    %2331 = vmatprep.subr.mxu0 0.0
    %2332 = vmatpush1.xpose.msra.mxu0 0.0
    %2333 = vmatprep.subr.mxu0 0.0
    %2334 = vmatpush1.xpose.msra.mxu0 0.0
    %2335 = vmatprep.subr.mxu0 0.0
    %2336 = vmatpush1.xpose.msra.mxu0 0.0
    %2337 = vmatprep.subr.mxu0 0.0
    %2338 = vmatpush1.xpose.msra.mxu0 0.0
    %2339 = vmatprep.subr.mxu0 0.0
    %2340 = vmatpush1.xpose.msra.mxu0 0.0
    %2341 = vmatprep.subr.mxu0 0.0
    %2342 = vmatpush1.xpose.msra.mxu0 0.0
    %2343 = vmatprep.subr.mxu0 0.0
    %2344 = vmatpush1.xpose.msra.mxu0 0.0
    %2345 = vmatprep.subr.mxu0 0.0
    %2346 = vmatpush1.xpose.msra.mxu0 0.0
    %2347 = vmatprep.subr.mxu0 0.0
    %2348 = vmatpush1.xpose.msra.mxu0 0.0
    %2349 = vmatprep.subr.mxu0 0.0
    %2350 = vmatpush1.xpose.msra.mxu0 0.0
    %2351 = vmatprep.subr.mxu0 0.0
    %2352 = vmatpush1.xpose.msra.mxu0 0.0
    %2353 = vmatprep.subr.mxu0 0.0
    %2354 = vmatpush1.xpose.msra.mxu0 0.0
    %2355 = vmatprep.subr.mxu0 0.0
    %2356 = vmatpush1.xpose.msra.mxu0 0.0
    %2357 = vmatprep.subr.mxu0 0.0
    %2358 = vmatpush1.xpose.msra.mxu0 0.0
    %2359 = vmatprep.subr.mxu0 0.0
    %2360 = vmatpush1.xpose.msra.mxu0 0.0
    %2361 = vmatprep.subr.mxu0 0.0
    %2362 = vmatpush1.xpose.msra.mxu0 0.0
    %2363 = vmatprep.subr.mxu0 0.0
    %2364 = vmatpush1.xpose.msra.mxu0 0.0
    %2365 = vmatprep.subr.mxu0 0.0
    %2366 = vmatpush1.xpose.msra.mxu0 0.0
    %2367 = vmatprep.subr.mxu0 0.0
    %2368 = vmatpush1.xpose.msra.mxu0 0.0
    %2369 = vmatprep.subr.mxu0 0.0
    %2370 = vmatpush1.xpose.msra.mxu0 0.0
    %2371 = vmatprep.subr.mxu0 0.0
    %2372 = vmatpush1.xpose.msra.mxu0 0.0
    %2373 = vmatprep.subr.mxu0 0.0
    %2374 = vmatpush1.xpose.msra.mxu0 0.0
    %2375 = vmatprep.subr.mxu0 0.0
    %2376 = vmatpush1.xpose.msra.mxu0 0.0
    %2377 = vmatprep.subr.mxu0 0.0
    %2378 = vmatpush1.xpose.msra.mxu0 0.0
    %2379 = vmatprep.subr.mxu0 0.0
    %2380 = vmatpush1.xpose.msra.mxu0 0.0
    %2381 = vmatprep.subr.mxu0 0.0
    %2382 = vmatpush1.xpose.msra.mxu0 0.0
    %2383 = vmatprep.subr.mxu0 0.0
    %2384 = vmatpush1.xpose.msra.mxu0 0.0
    %2385 = vmatprep.subr.mxu0 0.0
    %2386 = vmatpush1.xpose.msra.mxu0 0.0
    %2387 = vmatprep.mubr.f32.mxu0 0.0
    %2388 = vmatmul.mubr.f32.gmra.mrb[0].mxu0 %v2319
    %v2389 = vpop.f32.mrb[0].mxu0
    %v2390 = vadd.f32 0.0, %v2389
    %v2391 = vpop.f32.mrb[0].mxu0
    %2392 = vdwg.mxu0
    %2393 = vrot.lane.b32.xlu0 %v2152, 96
    %v2394 = vpop.permute.xlu0 %2393
    %v2395 = vsel %vm214, %v2152, 0
    %v2397 = vsel %vm214, %v2394, 0
    %2399 = vmatprep.subr.mxu0 0.0
    %2400 = vmatpush1.xpose.msra.mxu0 %v2397
    %2401 = vmatprep.subr.mxu0 0.0
    %2402 = vmatpush1.xpose.msra.mxu0 0.0
    %2403 = vmatprep.subr.mxu0 0.0
    %2404 = vmatpush1.xpose.msra.mxu0 0.0
    %2405 = vmatprep.subr.mxu0 0.0
    %2406 = vmatpush1.xpose.msra.mxu0 0.0
    %2407 = vmatprep.subr.mxu0 0.0
    %2408 = vmatpush1.xpose.msra.mxu0 0.0
    %2409 = vmatprep.subr.mxu0 0.0
    %2410 = vmatpush1.xpose.msra.mxu0 0.0
    %2411 = vmatprep.subr.mxu0 0.0
    %2412 = vmatpush1.xpose.msra.mxu0 0.0
    %2413 = vmatprep.subr.mxu0 0.0
    %2414 = vmatpush1.xpose.msra.mxu0 0.0
    %2415 = vmatprep.subr.mxu0 0.0
    %2416 = vmatpush1.xpose.msra.mxu0 0.0
    %2417 = vmatprep.subr.mxu0 0.0
    %2418 = vmatpush1.xpose.msra.mxu0 0.0
    %2419 = vmatprep.subr.mxu0 0.0
    %2420 = vmatpush1.xpose.msra.mxu0 0.0
    %2421 = vmatprep.subr.mxu0 0.0
    %2422 = vmatpush1.xpose.msra.mxu0 0.0
    %2423 = vmatprep.subr.mxu0 0.0
    %2424 = vmatpush1.xpose.msra.mxu0 0.0
    %2425 = vmatprep.subr.mxu0 0.0
    %2426 = vmatpush1.xpose.msra.mxu0 0.0
    %2427 = vmatprep.subr.mxu0 0.0
    %2428 = vmatpush1.xpose.msra.mxu0 0.0
    %2429 = vmatprep.subr.mxu0 0.0
    %2430 = vmatpush1.xpose.msra.mxu0 0.0
    %2431 = vmatprep.subr.mxu0 0.0
    %2432 = vmatpush1.xpose.msra.mxu0 0.0
    %2433 = vmatprep.subr.mxu0 0.0
    %2434 = vmatpush1.xpose.msra.mxu0 0.0
    %2435 = vmatprep.subr.mxu0 0.0
    %2436 = vmatpush1.xpose.msra.mxu0 0.0
    %2437 = vmatprep.subr.mxu0 0.0
    %2438 = vmatpush1.xpose.msra.mxu0 0.0
    %2439 = vmatprep.subr.mxu0 0.0
    %2440 = vmatpush1.xpose.msra.mxu0 0.0
    %2441 = vmatprep.subr.mxu0 0.0
    %2442 = vmatpush1.xpose.msra.mxu0 0.0
    %2443 = vmatprep.subr.mxu0 0.0
    %2444 = vmatpush1.xpose.msra.mxu0 0.0
    %2445 = vmatprep.subr.mxu0 0.0
    %2446 = vmatpush1.xpose.msra.mxu0 0.0
    %2447 = vmatprep.subr.mxu0 0.0
    %2448 = vmatpush1.xpose.msra.mxu0 0.0
    %2449 = vmatprep.subr.mxu0 0.0
    %2450 = vmatpush1.xpose.msra.mxu0 0.0
    %2451 = vmatprep.subr.mxu0 0.0
    %2452 = vmatpush1.xpose.msra.mxu0 0.0
    %2453 = vmatprep.subr.mxu0 0.0
    %2454 = vmatpush1.xpose.msra.mxu0 0.0
    %2455 = vmatprep.subr.mxu0 0.0
    %2456 = vmatpush1.xpose.msra.mxu0 0.0
    %2457 = vmatprep.subr.mxu0 0.0
    %2458 = vmatpush1.xpose.msra.mxu0 0.0
    %2459 = vmatprep.subr.mxu0 0.0
    %2460 = vmatpush1.xpose.msra.mxu0 0.0
    %2461 = vmatprep.subr.mxu0 0.0
    %2462 = vmatpush1.xpose.msra.mxu0 0.0
    %2463 = vmatprep.mubr.f32.mxu0 0.0
    %2464 = vmatmul.mubr.f32.gmra.mrb[0].mxu0 %v2395
    %v2465 = vpop.f32.mrb[0].mxu0
    %v2466 = vadd.f32 0.0, %v2465
    %v2467 = vpop.f32.mrb[0].mxu0
    %2468 = vdwg.mxu0
    %2469 = vrot.lane.b32.xlu0 %v2154, 96
    %v2470 = vpop.permute.xlu0 %2469
    %v2471 = vsel %vm214, %v2154, 0
    %v2473 = vsel %vm214, %v2470, 0
    %2475 = vmatprep.subr.mxu0 0.0
    %2476 = vmatpush1.xpose.msra.mxu0 %v2473
    %2477 = vmatprep.subr.mxu0 0.0
    %2478 = vmatpush1.xpose.msra.mxu0 0.0
    %2479 = vmatprep.subr.mxu0 0.0
    %2480 = vmatpush1.xpose.msra.mxu0 0.0
    %2481 = vmatprep.subr.mxu0 0.0
    %2482 = vmatpush1.xpose.msra.mxu0 0.0
    %2483 = vmatprep.subr.mxu0 0.0
    %2484 = vmatpush1.xpose.msra.mxu0 0.0
    %2485 = vmatprep.subr.mxu0 0.0
    %2486 = vmatpush1.xpose.msra.mxu0 0.0
    %2487 = vmatprep.subr.mxu0 0.0
    %2488 = vmatpush1.xpose.msra.mxu0 0.0
    %2489 = vmatprep.subr.mxu0 0.0
    %2490 = vmatpush1.xpose.msra.mxu0 0.0
    %2491 = vmatprep.subr.mxu0 0.0
    %2492 = vmatpush1.xpose.msra.mxu0 0.0
    %2493 = vmatprep.subr.mxu0 0.0
    %2494 = vmatpush1.xpose.msra.mxu0 0.0
    %2495 = vmatprep.subr.mxu0 0.0
    %2496 = vmatpush1.xpose.msra.mxu0 0.0
    %2497 = vmatprep.subr.mxu0 0.0
    %2498 = vmatpush1.xpose.msra.mxu0 0.0
    %2499 = vmatprep.subr.mxu0 0.0
    %2500 = vmatpush1.xpose.msra.mxu0 0.0
    %2501 = vmatprep.subr.mxu0 0.0
    %2502 = vmatpush1.xpose.msra.mxu0 0.0
    %2503 = vmatprep.subr.mxu0 0.0
    %2504 = vmatpush1.xpose.msra.mxu0 0.0
    %2505 = vmatprep.subr.mxu0 0.0
    %2506 = vmatpush1.xpose.msra.mxu0 0.0
    %2507 = vmatprep.subr.mxu0 0.0
    %2508 = vmatpush1.xpose.msra.mxu0 0.0
    %2509 = vmatprep.subr.mxu0 0.0
    %2510 = vmatpush1.xpose.msra.mxu0 0.0
    %2511 = vmatprep.subr.mxu0 0.0
    %2512 = vmatpush1.xpose.msra.mxu0 0.0
    %2513 = vmatprep.subr.mxu0 0.0
    %2514 = vmatpush1.xpose.msra.mxu0 0.0
    %2515 = vmatprep.subr.mxu0 0.0
    %2516 = vmatpush1.xpose.msra.mxu0 0.0
    %2517 = vmatprep.subr.mxu0 0.0
    %2518 = vmatpush1.xpose.msra.mxu0 0.0
    %2519 = vmatprep.subr.mxu0 0.0
    %2520 = vmatpush1.xpose.msra.mxu0 0.0
    %2521 = vmatprep.subr.mxu0 0.0
    %2522 = vmatpush1.xpose.msra.mxu0 0.0
    %2523 = vmatprep.subr.mxu0 0.0
    %2524 = vmatpush1.xpose.msra.mxu0 0.0
    %2525 = vmatprep.subr.mxu0 0.0
    %2526 = vmatpush1.xpose.msra.mxu0 0.0
    %2527 = vmatprep.subr.mxu0 0.0
    %2528 = vmatpush1.xpose.msra.mxu0 0.0
    %2529 = vmatprep.subr.mxu0 0.0
    %2530 = vmatpush1.xpose.msra.mxu0 0.0
    %2531 = vmatprep.subr.mxu0 0.0
    %2532 = vmatpush1.xpose.msra.mxu0 0.0
    %2533 = vmatprep.subr.mxu0 0.0
    %2534 = vmatpush1.xpose.msra.mxu0 0.0
    %2535 = vmatprep.subr.mxu0 0.0
    %2536 = vmatpush1.xpose.msra.mxu0 0.0
    %2537 = vmatprep.subr.mxu0 0.0
    %2538 = vmatpush1.xpose.msra.mxu0 0.0
    %2539 = vmatprep.mubr.f32.mxu0 0.0
    %2540 = vmatmul.mubr.f32.gmra.mrb[0].mxu0 %v2471
    %v2541 = vpop.f32.mrb[0].mxu0
    %v2542 = vadd.f32 0.0, %v2541
    %v2543 = vpop.f32.mrb[0].mxu0
    %2544 = vdwg.mxu0
    %2545 = vrot.lane.b32.xlu0 %v2156, 96
    %v2546 = vpop.permute.xlu0 %2545
    %v2547 = vsel %vm214, %v2156, 0
    %v2549 = vsel %vm214, %v2546, 0
    %2551 = vmatprep.subr.mxu0 0.0
    %2552 = vmatpush1.xpose.msra.mxu0 %v2549
    %2553 = vmatprep.subr.mxu0 0.0
    %2554 = vmatpush1.xpose.msra.mxu0 0.0
    %2555 = vmatprep.subr.mxu0 0.0
    %2556 = vmatpush1.xpose.msra.mxu0 0.0
    %2557 = vmatprep.subr.mxu0 0.0
    %2558 = vmatpush1.xpose.msra.mxu0 0.0
    %2559 = vmatprep.subr.mxu0 0.0
    %2560 = vmatpush1.xpose.msra.mxu0 0.0
    %2561 = vmatprep.subr.mxu0 0.0
    %2562 = vmatpush1.xpose.msra.mxu0 0.0
    %2563 = vmatprep.subr.mxu0 0.0
    %2564 = vmatpush1.xpose.msra.mxu0 0.0
    %2565 = vmatprep.subr.mxu0 0.0
    %2566 = vmatpush1.xpose.msra.mxu0 0.0
    %2567 = vmatprep.subr.mxu0 0.0
    %2568 = vmatpush1.xpose.msra.mxu0 0.0
    %2569 = vmatprep.subr.mxu0 0.0
    %2570 = vmatpush1.xpose.msra.mxu0 0.0
    %2571 = vmatprep.subr.mxu0 0.0
    %2572 = vmatpush1.xpose.msra.mxu0 0.0
    %2573 = vmatprep.subr.mxu0 0.0
    %2574 = vmatpush1.xpose.msra.mxu0 0.0
    %2575 = vmatprep.subr.mxu0 0.0
    %2576 = vmatpush1.xpose.msra.mxu0 0.0
    %2577 = vmatprep.subr.mxu0 0.0
    %2578 = vmatpush1.xpose.msra.mxu0 0.0
    %2579 = vmatprep.subr.mxu0 0.0
    %2580 = vmatpush1.xpose.msra.mxu0 0.0
    %2581 = vmatprep.subr.mxu0 0.0
    %2582 = vmatpush1.xpose.msra.mxu0 0.0
    %2583 = vmatprep.subr.mxu0 0.0
    %2584 = vmatpush1.xpose.msra.mxu0 0.0
    %2585 = vmatprep.subr.mxu0 0.0
    %2586 = vmatpush1.xpose.msra.mxu0 0.0
    %2587 = vmatprep.subr.mxu0 0.0
    %2588 = vmatpush1.xpose.msra.mxu0 0.0
    %2589 = vmatprep.subr.mxu0 0.0
    %2590 = vmatpush1.xpose.msra.mxu0 0.0
    %2591 = vmatprep.subr.mxu0 0.0
    %2592 = vmatpush1.xpose.msra.mxu0 0.0
    %2593 = vmatprep.subr.mxu0 0.0
    %2594 = vmatpush1.xpose.msra.mxu0 0.0
    %2595 = vmatprep.subr.mxu0 0.0
    %2596 = vmatpush1.xpose.msra.mxu0 0.0
    %2597 = vmatprep.subr.mxu0 0.0
    %2598 = vmatpush1.xpose.msra.mxu0 0.0
    %2599 = vmatprep.subr.mxu0 0.0
    %2600 = vmatpush1.xpose.msra.mxu0 0.0
    %2601 = vmatprep.subr.mxu0 0.0
    %2602 = vmatpush1.xpose.msra.mxu0 0.0
    %2603 = vmatprep.subr.mxu0 0.0
    %2604 = vmatpush1.xpose.msra.mxu0 0.0
    %2605 = vmatprep.subr.mxu0 0.0
    %2606 = vmatpush1.xpose.msra.mxu0 0.0
    %2607 = vmatprep.subr.mxu0 0.0
    %2608 = vmatpush1.xpose.msra.mxu0 0.0
    %2609 = vmatprep.subr.mxu0 0.0
    %2610 = vmatpush1.xpose.msra.mxu0 0.0
    %2611 = vmatprep.subr.mxu0 0.0
    %2612 = vmatpush1.xpose.msra.mxu0 0.0
    %2613 = vmatprep.subr.mxu0 0.0
    %2614 = vmatpush1.xpose.msra.mxu0 0.0
    %2615 = vmatprep.mubr.f32.mxu0 0.0
    %2616 = vmatmul.mubr.f32.gmra.mrb[0].mxu0 %v2547
    %v2617 = vpop.f32.mrb[0].mxu0
    %v2618 = vadd.f32 0.0, %v2617
    %v2619 = vpop.f32.mrb[0].mxu0
    %2620 = vdwg.mxu0
    %2621 = vrot.lane.b32.xlu0 %v2158, 96
    %v2622 = vpop.permute.xlu0 %2621
    %v2623 = vsel %vm214, %v2158, 0
    %v2625 = vsel %vm214, %v2622, 0
    %2627 = vmatprep.subr.mxu0 0.0
    %2628 = vmatpush1.xpose.msra.mxu0 %v2625
    %2629 = vmatprep.subr.mxu0 0.0
    %2630 = vmatpush1.xpose.msra.mxu0 0.0
    %2631 = vmatprep.subr.mxu0 0.0
    %2632 = vmatpush1.xpose.msra.mxu0 0.0
    %2633 = vmatprep.subr.mxu0 0.0
    %2634 = vmatpush1.xpose.msra.mxu0 0.0
    %2635 = vmatprep.subr.mxu0 0.0
    %2636 = vmatpush1.xpose.msra.mxu0 0.0
    %2637 = vmatprep.subr.mxu0 0.0
    %2638 = vmatpush1.xpose.msra.mxu0 0.0
    %2639 = vmatprep.subr.mxu0 0.0
    %2640 = vmatpush1.xpose.msra.mxu0 0.0
    %2641 = vmatprep.subr.mxu0 0.0
    %2642 = vmatpush1.xpose.msra.mxu0 0.0
    %2643 = vmatprep.subr.mxu0 0.0
    %2644 = vmatpush1.xpose.msra.mxu0 0.0
    %2645 = vmatprep.subr.mxu0 0.0
    %2646 = vmatpush1.xpose.msra.mxu0 0.0
    %2647 = vmatprep.subr.mxu0 0.0
    %2648 = vmatpush1.xpose.msra.mxu0 0.0
    %2649 = vmatprep.subr.mxu0 0.0
    %2650 = vmatpush1.xpose.msra.mxu0 0.0
    %2651 = vmatprep.subr.mxu0 0.0
    %2652 = vmatpush1.xpose.msra.mxu0 0.0
    %2653 = vmatprep.subr.mxu0 0.0
    %2654 = vmatpush1.xpose.msra.mxu0 0.0
    %2655 = vmatprep.subr.mxu0 0.0
    %2656 = vmatpush1.xpose.msra.mxu0 0.0
    %2657 = vmatprep.subr.mxu0 0.0
    %2658 = vmatpush1.xpose.msra.mxu0 0.0
    %2659 = vmatprep.subr.mxu0 0.0
    %2660 = vmatpush1.xpose.msra.mxu0 0.0
    %2661 = vmatprep.subr.mxu0 0.0
    %2662 = vmatpush1.xpose.msra.mxu0 0.0
    %2663 = vmatprep.subr.mxu0 0.0
    %2664 = vmatpush1.xpose.msra.mxu0 0.0
    %2665 = vmatprep.subr.mxu0 0.0
    %2666 = vmatpush1.xpose.msra.mxu0 0.0
    %2667 = vmatprep.subr.mxu0 0.0
    %2668 = vmatpush1.xpose.msra.mxu0 0.0
    %2669 = vmatprep.subr.mxu0 0.0
    %2670 = vmatpush1.xpose.msra.mxu0 0.0
    %2671 = vmatprep.subr.mxu0 0.0
    %2672 = vmatpush1.xpose.msra.mxu0 0.0
    %2673 = vmatprep.subr.mxu0 0.0
    %2674 = vmatpush1.xpose.msra.mxu0 0.0
    %2675 = vmatprep.subr.mxu0 0.0
    %2676 = vmatpush1.xpose.msra.mxu0 0.0
    %2677 = vmatprep.subr.mxu0 0.0
    %2678 = vmatpush1.xpose.msra.mxu0 0.0
    %2679 = vmatprep.subr.mxu0 0.0
    %2680 = vmatpush1.xpose.msra.mxu0 0.0
    %2681 = vmatprep.subr.mxu0 0.0
    %2682 = vmatpush1.xpose.msra.mxu0 0.0
    %2683 = vmatprep.subr.mxu0 0.0
    %2684 = vmatpush1.xpose.msra.mxu0 0.0
    %2685 = vmatprep.subr.mxu0 0.0
    %2686 = vmatpush1.xpose.msra.mxu0 0.0
    %2687 = vmatprep.subr.mxu0 0.0
    %2688 = vmatpush1.xpose.msra.mxu0 0.0
    %2689 = vmatprep.subr.mxu0 0.0
    %2690 = vmatpush1.xpose.msra.mxu0 0.0
    %2691 = vmatprep.mubr.f32.mxu0 0.0
    %2692 = vmatmul.mubr.f32.gmra.mrb[0].mxu0 %v2623
    %v2693 = vpop.f32.mrb[0].mxu0
    %v2694 = vadd.f32 0.0, %v2693
    %v2695 = vpop.f32.mrb[0].mxu0
    %2696 = vdwg.mxu0
    %2697 = vrot.lane.b32.xlu0 %v2160, 96
    %v2698 = vpop.permute.xlu0 %2697
    %v2699 = vsel %vm214, %v2160, 0
    %v2701 = vsel %vm214, %v2698, 0
    %2703 = vmatprep.subr.mxu0 0.0
    %2704 = vmatpush1.xpose.msra.mxu0 %v2701
    %2705 = vmatprep.subr.mxu0 0.0
    %2706 = vmatpush1.xpose.msra.mxu0 0.0
    %2707 = vmatprep.subr.mxu0 0.0
    %2708 = vmatpush1.xpose.msra.mxu0 0.0
    %2709 = vmatprep.subr.mxu0 0.0
    %2710 = vmatpush1.xpose.msra.mxu0 0.0
    %2711 = vmatprep.subr.mxu0 0.0
    %2712 = vmatpush1.xpose.msra.mxu0 0.0
    %2713 = vmatprep.subr.mxu0 0.0
    %2714 = vmatpush1.xpose.msra.mxu0 0.0
    %2715 = vmatprep.subr.mxu0 0.0
    %2716 = vmatpush1.xpose.msra.mxu0 0.0
    %2717 = vmatprep.subr.mxu0 0.0
    %2718 = vmatpush1.xpose.msra.mxu0 0.0
    %2719 = vmatprep.subr.mxu0 0.0
    %2720 = vmatpush1.xpose.msra.mxu0 0.0
    %2721 = vmatprep.subr.mxu0 0.0
    %2722 = vmatpush1.xpose.msra.mxu0 0.0
    %2723 = vmatprep.subr.mxu0 0.0
    %2724 = vmatpush1.xpose.msra.mxu0 0.0
    %2725 = vmatprep.subr.mxu0 0.0
    %2726 = vmatpush1.xpose.msra.mxu0 0.0
    %2727 = vmatprep.subr.mxu0 0.0
    %2728 = vmatpush1.xpose.msra.mxu0 0.0
    %2729 = vmatprep.subr.mxu0 0.0
    %2730 = vmatpush1.xpose.msra.mxu0 0.0
    %2731 = vmatprep.subr.mxu0 0.0
    %2732 = vmatpush1.xpose.msra.mxu0 0.0
    %2733 = vmatprep.subr.mxu0 0.0
    %2734 = vmatpush1.xpose.msra.mxu0 0.0
    %2735 = vmatprep.subr.mxu0 0.0
    %2736 = vmatpush1.xpose.msra.mxu0 0.0
    %2737 = vmatprep.subr.mxu0 0.0
    %2738 = vmatpush1.xpose.msra.mxu0 0.0
    %2739 = vmatprep.subr.mxu0 0.0
    %2740 = vmatpush1.xpose.msra.mxu0 0.0
    %2741 = vmatprep.subr.mxu0 0.0
    %2742 = vmatpush1.xpose.msra.mxu0 0.0
    %2743 = vmatprep.subr.mxu0 0.0
    %2744 = vmatpush1.xpose.msra.mxu0 0.0
    %2745 = vmatprep.subr.mxu0 0.0
    %2746 = vmatpush1.xpose.msra.mxu0 0.0
    %2747 = vmatprep.subr.mxu0 0.0
    %2748 = vmatpush1.xpose.msra.mxu0 0.0
    %2749 = vmatprep.subr.mxu0 0.0
    %2750 = vmatpush1.xpose.msra.mxu0 0.0
    %2751 = vmatprep.subr.mxu0 0.0
    %2752 = vmatpush1.xpose.msra.mxu0 0.0
    %2753 = vmatprep.subr.mxu0 0.0
    %2754 = vmatpush1.xpose.msra.mxu0 0.0
    %2755 = vmatprep.subr.mxu0 0.0
    %2756 = vmatpush1.xpose.msra.mxu0 0.0
    %2757 = vmatprep.subr.mxu0 0.0
    %2758 = vmatpush1.xpose.msra.mxu0 0.0
    %2759 = vmatprep.subr.mxu0 0.0
    %2760 = vmatpush1.xpose.msra.mxu0 0.0
    %2761 = vmatprep.subr.mxu0 0.0
    %2762 = vmatpush1.xpose.msra.mxu0 0.0
    %2763 = vmatprep.subr.mxu0 0.0
    %2764 = vmatpush1.xpose.msra.mxu0 0.0
    %2765 = vmatprep.subr.mxu0 0.0
    %2766 = vmatpush1.xpose.msra.mxu0 0.0
    %2767 = vmatprep.mubr.f32.mxu0 0.0
    %2768 = vmatmul.mubr.f32.gmra.mrb[0].mxu0 %v2699
    %v2769 = vpop.f32.mrb[0].mxu0
    %v2770 = vadd.f32 0.0, %v2769
    %v2771 = vpop.f32.mrb[0].mxu0
    %2772 = vdwg.mxu0
    %v2773 = vsel %vm60, %v2238, -1e+30
    %v2774 = vsel %vm60, %v2314, -1e+30
    %v2775 = vsel %vm60, %v2390, -1e+30
    %v2776 = vsel %vm60, %v2466, -1e+30
    %v2777 = vsel %vm60, %v2542, -1e+30
    %v2778 = vsel %vm60, %v2618, -1e+30
    %v2779 = vsel %vm60, %v2694, -1e+30
    %v2780 = vsel %vm60, %v2770, -1e+30
    %v2781 = vsel %vm214, %v2773, -inf
    %2782 = vmax.xlane.f32.xlu0 %v2781
    %v2783 = vpop.xlane.xlu0 %2782
    %v2784 = vsel %vm214, %v2774, -inf
    %2785 = vmax.xlane.f32.xlu0 %v2784
    %v2786 = vpop.xlane.xlu0 %2785
    %v2787 = vsel %vm214, %v2775, -inf
    %2788 = vmax.xlane.f32.xlu0 %v2787
    %v2789 = vpop.xlane.xlu0 %2788
    %v2790 = vsel %vm214, %v2776, -inf
    %2791 = vmax.xlane.f32.xlu0 %v2790
    %v2792 = vpop.xlane.xlu0 %2791
    %v2793 = vsel %vm214, %v2777, -inf
    %2794 = vmax.xlane.f32.xlu0 %v2793
    %v2795 = vpop.xlane.xlu0 %2794
    %v2796 = vsel %vm214, %v2778, -inf
    %2797 = vmax.xlane.f32.xlu0 %v2796
    %v2798 = vpop.xlane.xlu0 %2797
    %v2799 = vsel %vm214, %v2779, -inf
    %2800 = vmax.xlane.f32.xlu0 %v2799
    %v2801 = vpop.xlane.xlu0 %2800
    %v2802 = vsel %vm214, %v2780, -inf
    %2803 = vmax.xlane.f32.xlu0 %v2802
    %v2804 = vpop.xlane.xlu0 %2803
    %v2805 = vsub.f32 %v2773, %v2783
    %v2806 = vsub.f32 %v2774, %v2786
    %v2807 = vsub.f32 %v2775, %v2789
    %v2808 = vsub.f32 %v2776, %v2792
    %v2809 = vsub.f32 %v2777, %v2795
    %v2810 = vsub.f32 %v2778, %v2798
    %v2811 = vsub.f32 %v2779, %v2801
    %v2812 = vsub.f32 %v2780, %v2804
    %v2813 = vmul.f32 %v2805, 1.442695
    %v2814 = vpow.pop %v2813
    %v2815 = vmul.f32 %v2806, 1.442695
    %v2816 = vpow.pop %v2815
    %v2817 = vmul.f32 %v2807, 1.442695
    %v2818 = vpow.pop %v2817
    %v2819 = vmul.f32 %v2808, 1.442695
    %v2820 = vpow.pop %v2819
    %v2821 = vmul.f32 %v2809, 1.442695
    %v2822 = vpow.pop %v2821
    %v2823 = vmul.f32 %v2810, 1.442695
    %v2824 = vpow.pop %v2823
    %v2825 = vmul.f32 %v2811, 1.442695
    %v2826 = vpow.pop %v2825
    %v2827 = vmul.f32 %v2812, 1.442695
    %v2828 = vpow.pop %v2827
    %v2829 = vsel %vm214, %v2814, 0.0
    %2830 = vadd.xlane.f32.xlu0 %v2829
    %v2831 = vpop.xlane.xlu0 %2830
    %v2832 = vsel %vm214, %v2816, 0.0
    %2833 = vadd.xlane.f32.xlu0 %v2832
    %v2834 = vpop.xlane.xlu0 %2833
    %v2835 = vsel %vm214, %v2818, 0.0
    %2836 = vadd.xlane.f32.xlu0 %v2835
    %v2837 = vpop.xlane.xlu0 %2836
    %v2838 = vsel %vm214, %v2820, 0.0
    %2839 = vadd.xlane.f32.xlu0 %v2838
    %v2840 = vpop.xlane.xlu0 %2839
    %v2841 = vsel %vm214, %v2822, 0.0
    %2842 = vadd.xlane.f32.xlu0 %v2841
    %v2843 = vpop.xlane.xlu0 %2842
    %v2844 = vsel %vm214, %v2824, 0.0
    %2845 = vadd.xlane.f32.xlu0 %v2844
    %v2846 = vpop.xlane.xlu0 %2845
    %v2847 = vsel %vm214, %v2826, 0.0
    %2848 = vadd.xlane.f32.xlu0 %v2847
    %v2849 = vpop.xlane.xlu0 %2848
    %v2850 = vsel %vm214, %v2828, 0.0
    %2851 = vadd.xlane.f32.xlu0 %v2850
    %v2852 = vpop.xlane.xlu0 %2851
    %v2853 = vrcp.pop %v2831
    %v2854 = vrcp.pop %v2834
    %v2855 = vrcp.pop %v2837
    %v2856 = vrcp.pop %v2840
    %v2857 = vrcp.pop %v2843
    %v2858 = vrcp.pop %v2846
    %v2859 = vrcp.pop %v2849
    %v2860 = vrcp.pop %v2852
    %v2861 = vmul.f32 %v2814, %v2853
    %v2862 = vmul.f32 %v2816, %v2854
    %v2863 = vmul.f32 %v2818, %v2855
    %v2864 = vmul.f32 %v2820, %v2856
    %v2865 = vmul.f32 %v2822, %v2857
    %v2866 = vmul.f32 %v2824, %v2858
    %v2867 = vmul.f32 %v2826, %v2859
    %v2868 = vmul.f32 %v2828, %v2860
    %2869 = vrot.lane.b32.xlu0 %v2111, 64
    %v2870 = vpop.permute.xlu0 %2869
    %v2873 = vsel %vm214, %v2861, 0
    %2875 = vmatprep.subr.mxu0 0.0
    %2876 = vmatpush1.msra.mxu0 %v2870
    %2877 = vmatprep.subr.mxu0 0.0
    %2878 = vmatpush1.msra.mxu0 0.0
    %2879 = vmatprep.subr.mxu0 0.0
    %2880 = vmatpush1.msra.mxu0 0.0
    %2881 = vmatprep.subr.mxu0 0.0
    %2882 = vmatpush1.msra.mxu0 0.0
    %2883 = vmatprep.subr.mxu0 0.0
    %2884 = vmatpush1.msra.mxu0 0.0
    %2885 = vmatprep.subr.mxu0 0.0
    %2886 = vmatpush1.msra.mxu0 0.0
    %2887 = vmatprep.subr.mxu0 0.0
    %2888 = vmatpush1.msra.mxu0 0.0
    %2889 = vmatprep.subr.mxu0 0.0
    %2890 = vmatpush1.msra.mxu0 0.0
    %2891 = vmatprep.subr.mxu0 0.0
    %2892 = vmatpush1.msra.mxu0 0.0
    %2893 = vmatprep.subr.mxu0 0.0
    %2894 = vmatpush1.msra.mxu0 0.0
    %2895 = vmatprep.subr.mxu0 0.0
    %2896 = vmatpush1.msra.mxu0 0.0
    %2897 = vmatprep.subr.mxu0 0.0
    %2898 = vmatpush1.msra.mxu0 0.0
    %2899 = vmatprep.subr.mxu0 0.0
    %2900 = vmatpush1.msra.mxu0 0.0
    %2901 = vmatprep.subr.mxu0 0.0
    %2902 = vmatpush1.msra.mxu0 0.0
    %2903 = vmatprep.subr.mxu0 0.0
    %2904 = vmatpush1.msra.mxu0 0.0
    %2905 = vmatprep.subr.mxu0 0.0
    %2906 = vmatpush1.msra.mxu0 0.0
    %2907 = vmatprep.subr.mxu0 0.0
    %2908 = vmatpush1.msra.mxu0 0.0
    %2909 = vmatprep.subr.mxu0 0.0
    %2910 = vmatpush1.msra.mxu0 0.0
    %2911 = vmatprep.subr.mxu0 0.0
    %2912 = vmatpush1.msra.mxu0 0.0
    %2913 = vmatprep.subr.mxu0 0.0
    %2914 = vmatpush1.msra.mxu0 0.0
    %2915 = vmatprep.subr.mxu0 0.0
    %2916 = vmatpush1.msra.mxu0 0.0
    %2917 = vmatprep.subr.mxu0 0.0
    %2918 = vmatpush1.msra.mxu0 0.0
    %2919 = vmatprep.subr.mxu0 0.0
    %2920 = vmatpush1.msra.mxu0 0.0
    %2921 = vmatprep.subr.mxu0 0.0
    %2922 = vmatpush1.msra.mxu0 0.0
    %2923 = vmatprep.subr.mxu0 0.0
    %2924 = vmatpush1.msra.mxu0 0.0
    %2925 = vmatprep.subr.mxu0 0.0
    %2926 = vmatpush1.msra.mxu0 0.0
    %2927 = vmatprep.subr.mxu0 0.0
    %2928 = vmatpush1.msra.mxu0 0.0
    %2929 = vmatprep.subr.mxu0 0.0
    %2930 = vmatpush1.msra.mxu0 0.0
    %2931 = vmatprep.subr.mxu0 0.0
    %2932 = vmatpush1.msra.mxu0 0.0
    %2933 = vmatprep.subr.mxu0 0.0
    %2934 = vmatpush1.msra.mxu0 0.0
    %2935 = vmatprep.subr.mxu0 0.0
    %2936 = vmatpush1.msra.mxu0 0.0
    %2937 = vmatprep.subr.mxu0 0.0
    %2938 = vmatpush1.msra.mxu0 0.0
    %2939 = vmatprep.mubr.f32.mxu0 0.0
    %2940 = vmatmul.mubr.f32.gmra.mrb[0].mxu0 %v2873
    %v2941 = vpop.f32.mrb[0].mxu0
    %v2942 = vadd.f32 0.0, %v2941
    %v2943 = vpop.f32.mrb[0].mxu0
    %2944 = vdwg.mxu0
    %2945 = vrot.lane.b32.xlu0 %v2116, 64
    %v2946 = vpop.permute.xlu0 %2945
    %v2949 = vsel %vm214, %v2862, 0
    %2951 = vmatprep.subr.mxu0 0.0
    %2952 = vmatpush1.msra.mxu0 %v2946
    %2953 = vmatprep.subr.mxu0 0.0
    %2954 = vmatpush1.msra.mxu0 0.0
    %2955 = vmatprep.subr.mxu0 0.0
    %2956 = vmatpush1.msra.mxu0 0.0
    %2957 = vmatprep.subr.mxu0 0.0
    %2958 = vmatpush1.msra.mxu0 0.0
    %2959 = vmatprep.subr.mxu0 0.0
    %2960 = vmatpush1.msra.mxu0 0.0
    %2961 = vmatprep.subr.mxu0 0.0
    %2962 = vmatpush1.msra.mxu0 0.0
    %2963 = vmatprep.subr.mxu0 0.0
    %2964 = vmatpush1.msra.mxu0 0.0
    %2965 = vmatprep.subr.mxu0 0.0
    %2966 = vmatpush1.msra.mxu0 0.0
    %2967 = vmatprep.subr.mxu0 0.0
    %2968 = vmatpush1.msra.mxu0 0.0
    %2969 = vmatprep.subr.mxu0 0.0
    %2970 = vmatpush1.msra.mxu0 0.0
    %2971 = vmatprep.subr.mxu0 0.0
    %2972 = vmatpush1.msra.mxu0 0.0
    %2973 = vmatprep.subr.mxu0 0.0
    %2974 = vmatpush1.msra.mxu0 0.0
    %2975 = vmatprep.subr.mxu0 0.0
    %2976 = vmatpush1.msra.mxu0 0.0
    %2977 = vmatprep.subr.mxu0 0.0
    %2978 = vmatpush1.msra.mxu0 0.0
    %2979 = vmatprep.subr.mxu0 0.0
    %2980 = vmatpush1.msra.mxu0 0.0
    %2981 = vmatprep.subr.mxu0 0.0
    %2982 = vmatpush1.msra.mxu0 0.0
    %2983 = vmatprep.subr.mxu0 0.0
    %2984 = vmatpush1.msra.mxu0 0.0
    %2985 = vmatprep.subr.mxu0 0.0
    %2986 = vmatpush1.msra.mxu0 0.0
    %2987 = vmatprep.subr.mxu0 0.0
    %2988 = vmatpush1.msra.mxu0 0.0
    %2989 = vmatprep.subr.mxu0 0.0
    %2990 = vmatpush1.msra.mxu0 0.0
    %2991 = vmatprep.subr.mxu0 0.0
    %2992 = vmatpush1.msra.mxu0 0.0
    %2993 = vmatprep.subr.mxu0 0.0
    %2994 = vmatpush1.msra.mxu0 0.0
    %2995 = vmatprep.subr.mxu0 0.0
    %2996 = vmatpush1.msra.mxu0 0.0
    %2997 = vmatprep.subr.mxu0 0.0
    %2998 = vmatpush1.msra.mxu0 0.0
    %2999 = vmatprep.subr.mxu0 0.0
    %3000 = vmatpush1.msra.mxu0 0.0
    %3001 = vmatprep.subr.mxu0 0.0
    %3002 = vmatpush1.msra.mxu0 0.0
    %3003 = vmatprep.subr.mxu0 0.0
    %3004 = vmatpush1.msra.mxu0 0.0
    %3005 = vmatprep.subr.mxu0 0.0
    %3006 = vmatpush1.msra.mxu0 0.0
    %3007 = vmatprep.subr.mxu0 0.0
    %3008 = vmatpush1.msra.mxu0 0.0
    %3009 = vmatprep.subr.mxu0 0.0
    %3010 = vmatpush1.msra.mxu0 0.0
    %3011 = vmatprep.subr.mxu0 0.0
    %3012 = vmatpush1.msra.mxu0 0.0
    %3013 = vmatprep.subr.mxu0 0.0
    %3014 = vmatpush1.msra.mxu0 0.0
    %3015 = vmatprep.mubr.f32.mxu0 0.0
    %3016 = vmatmul.mubr.f32.gmra.mrb[0].mxu0 %v2949
    %v3017 = vpop.f32.mrb[0].mxu0
    %v3018 = vadd.f32 0.0, %v3017
    %v3019 = vpop.f32.mrb[0].mxu0
    %3020 = vdwg.mxu0
    %3021 = vrot.lane.b32.xlu0 %v2162, 64
    %v3022 = vpop.permute.xlu0 %3021
    %v3025 = vsel %vm214, %v2863, 0
    %3027 = vmatprep.subr.mxu0 0.0
    %3028 = vmatpush1.msra.mxu0 %v3022
    %3029 = vmatprep.subr.mxu0 0.0
    %3030 = vmatpush1.msra.mxu0 0.0
    %3031 = vmatprep.subr.mxu0 0.0
    %3032 = vmatpush1.msra.mxu0 0.0
    %3033 = vmatprep.subr.mxu0 0.0
    %3034 = vmatpush1.msra.mxu0 0.0
    %3035 = vmatprep.subr.mxu0 0.0
    %3036 = vmatpush1.msra.mxu0 0.0
    %3037 = vmatprep.subr.mxu0 0.0
    %3038 = vmatpush1.msra.mxu0 0.0
    %3039 = vmatprep.subr.mxu0 0.0
    %3040 = vmatpush1.msra.mxu0 0.0
    %3041 = vmatprep.subr.mxu0 0.0
    %3042 = vmatpush1.msra.mxu0 0.0
    %3043 = vmatprep.subr.mxu0 0.0
    %3044 = vmatpush1.msra.mxu0 0.0
    %3045 = vmatprep.subr.mxu0 0.0
    %3046 = vmatpush1.msra.mxu0 0.0
    %3047 = vmatprep.subr.mxu0 0.0
    %3048 = vmatpush1.msra.mxu0 0.0
    %3049 = vmatprep.subr.mxu0 0.0
    %3050 = vmatpush1.msra.mxu0 0.0
    %3051 = vmatprep.subr.mxu0 0.0
    %3052 = vmatpush1.msra.mxu0 0.0
    %3053 = vmatprep.subr.mxu0 0.0
    %3054 = vmatpush1.msra.mxu0 0.0
    %3055 = vmatprep.subr.mxu0 0.0
    %3056 = vmatpush1.msra.mxu0 0.0
    %3057 = vmatprep.subr.mxu0 0.0
    %3058 = vmatpush1.msra.mxu0 0.0
    %3059 = vmatprep.subr.mxu0 0.0
    %3060 = vmatpush1.msra.mxu0 0.0
    %3061 = vmatprep.subr.mxu0 0.0
    %3062 = vmatpush1.msra.mxu0 0.0
    %3063 = vmatprep.subr.mxu0 0.0
    %3064 = vmatpush1.msra.mxu0 0.0
    %3065 = vmatprep.subr.mxu0 0.0
    %3066 = vmatpush1.msra.mxu0 0.0
    %3067 = vmatprep.subr.mxu0 0.0
    %3068 = vmatpush1.msra.mxu0 0.0
    %3069 = vmatprep.subr.mxu0 0.0
    %3070 = vmatpush1.msra.mxu0 0.0
    %3071 = vmatprep.subr.mxu0 0.0
    %3072 = vmatpush1.msra.mxu0 0.0
    %3073 = vmatprep.subr.mxu0 0.0
    %3074 = vmatpush1.msra.mxu0 0.0
    %3075 = vmatprep.subr.mxu0 0.0
    %3076 = vmatpush1.msra.mxu0 0.0
    %3077 = vmatprep.subr.mxu0 0.0
    %3078 = vmatpush1.msra.mxu0 0.0
    %3079 = vmatprep.subr.mxu0 0.0
    %3080 = vmatpush1.msra.mxu0 0.0
    %3081 = vmatprep.subr.mxu0 0.0
    %3082 = vmatpush1.msra.mxu0 0.0
    %3083 = vmatprep.subr.mxu0 0.0
    %3084 = vmatpush1.msra.mxu0 0.0
    %3085 = vmatprep.subr.mxu0 0.0
    %3086 = vmatpush1.msra.mxu0 0.0
    %3087 = vmatprep.subr.mxu0 0.0
    %3088 = vmatpush1.msra.mxu0 0.0
    %3089 = vmatprep.subr.mxu0 0.0
    %3090 = vmatpush1.msra.mxu0 0.0
    %3091 = vmatprep.mubr.f32.mxu0 0.0
    %3092 = vmatmul.mubr.f32.gmra.mrb[0].mxu0 %v3025
    %v3093 = vpop.f32.mrb[0].mxu0
    %v3094 = vadd.f32 0.0, %v3093
    %v3095 = vpop.f32.mrb[0].mxu0
    %3096 = vdwg.mxu0
    %3097 = vrot.lane.b32.xlu0 %v2164, 64
    %v3098 = vpop.permute.xlu0 %3097
    %v3101 = vsel %vm214, %v2864, 0
    %3103 = vmatprep.subr.mxu0 0.0
    %3104 = vmatpush1.msra.mxu0 %v3098
    %3105 = vmatprep.subr.mxu0 0.0
    %3106 = vmatpush1.msra.mxu0 0.0
    %3107 = vmatprep.subr.mxu0 0.0
    %3108 = vmatpush1.msra.mxu0 0.0
    %3109 = vmatprep.subr.mxu0 0.0
    %3110 = vmatpush1.msra.mxu0 0.0
    %3111 = vmatprep.subr.mxu0 0.0
    %3112 = vmatpush1.msra.mxu0 0.0
    %3113 = vmatprep.subr.mxu0 0.0
    %3114 = vmatpush1.msra.mxu0 0.0
    %3115 = vmatprep.subr.mxu0 0.0
    %3116 = vmatpush1.msra.mxu0 0.0
    %3117 = vmatprep.subr.mxu0 0.0
    %3118 = vmatpush1.msra.mxu0 0.0
    %3119 = vmatprep.subr.mxu0 0.0
    %3120 = vmatpush1.msra.mxu0 0.0
    %3121 = vmatprep.subr.mxu0 0.0
    %3122 = vmatpush1.msra.mxu0 0.0
    %3123 = vmatprep.subr.mxu0 0.0
    %3124 = vmatpush1.msra.mxu0 0.0
    %3125 = vmatprep.subr.mxu0 0.0
    %3126 = vmatpush1.msra.mxu0 0.0
    %3127 = vmatprep.subr.mxu0 0.0
    %3128 = vmatpush1.msra.mxu0 0.0
    %3129 = vmatprep.subr.mxu0 0.0
    %3130 = vmatpush1.msra.mxu0 0.0
    %3131 = vmatprep.subr.mxu0 0.0
    %3132 = vmatpush1.msra.mxu0 0.0
    %3133 = vmatprep.subr.mxu0 0.0
    %3134 = vmatpush1.msra.mxu0 0.0
    %3135 = vmatprep.subr.mxu0 0.0
    %3136 = vmatpush1.msra.mxu0 0.0
    %3137 = vmatprep.subr.mxu0 0.0
    %3138 = vmatpush1.msra.mxu0 0.0
    %3139 = vmatprep.subr.mxu0 0.0
    %3140 = vmatpush1.msra.mxu0 0.0
    %3141 = vmatprep.subr.mxu0 0.0
    %3142 = vmatpush1.msra.mxu0 0.0
    %3143 = vmatprep.subr.mxu0 0.0
    %3144 = vmatpush1.msra.mxu0 0.0
    %3145 = vmatprep.subr.mxu0 0.0
    %3146 = vmatpush1.msra.mxu0 0.0
    %3147 = vmatprep.subr.mxu0 0.0
    %3148 = vmatpush1.msra.mxu0 0.0
    %3149 = vmatprep.subr.mxu0 0.0
    %3150 = vmatpush1.msra.mxu0 0.0
    %3151 = vmatprep.subr.mxu0 0.0
    %3152 = vmatpush1.msra.mxu0 0.0
    %3153 = vmatprep.subr.mxu0 0.0
    %3154 = vmatpush1.msra.mxu0 0.0
    %3155 = vmatprep.subr.mxu0 0.0
    %3156 = vmatpush1.msra.mxu0 0.0
    %3157 = vmatprep.subr.mxu0 0.0
    %3158 = vmatpush1.msra.mxu0 0.0
    %3159 = vmatprep.subr.mxu0 0.0
    %3160 = vmatpush1.msra.mxu0 0.0
    %3161 = vmatprep.subr.mxu0 0.0
    %3162 = vmatpush1.msra.mxu0 0.0
    %3163 = vmatprep.subr.mxu0 0.0
    %3164 = vmatpush1.msra.mxu0 0.0
    %3165 = vmatprep.subr.mxu0 0.0
    %3166 = vmatpush1.msra.mxu0 0.0
    %3167 = vmatprep.mubr.f32.mxu0 0.0
    %3168 = vmatmul.mubr.f32.gmra.mrb[0].mxu0 %v3101
    %v3169 = vpop.f32.mrb[0].mxu0
    %v3170 = vadd.f32 0.0, %v3169
    %v3171 = vpop.f32.mrb[0].mxu0
    %3172 = vdwg.mxu0
    %v3174 = vsel %vm214, %v2865, 0
    %3176 = vmatprep.subr.mxu0 0.0
    %3177 = vmatpush1.msra.mxu0 %v2870
    %3178 = vmatprep.subr.mxu0 0.0
    %3179 = vmatpush1.msra.mxu0 0.0
    %3180 = vmatprep.subr.mxu0 0.0
    %3181 = vmatpush1.msra.mxu0 0.0
    %3182 = vmatprep.subr.mxu0 0.0
    %3183 = vmatpush1.msra.mxu0 0.0
    %3184 = vmatprep.subr.mxu0 0.0
    %3185 = vmatpush1.msra.mxu0 0.0
    %3186 = vmatprep.subr.mxu0 0.0
    %3187 = vmatpush1.msra.mxu0 0.0
    %3188 = vmatprep.subr.mxu0 0.0
    %3189 = vmatpush1.msra.mxu0 0.0
    %3190 = vmatprep.subr.mxu0 0.0
    %3191 = vmatpush1.msra.mxu0 0.0
    %3192 = vmatprep.subr.mxu0 0.0
    %3193 = vmatpush1.msra.mxu0 0.0
    %3194 = vmatprep.subr.mxu0 0.0
    %3195 = vmatpush1.msra.mxu0 0.0
    %3196 = vmatprep.subr.mxu0 0.0
    %3197 = vmatpush1.msra.mxu0 0.0
    %3198 = vmatprep.subr.mxu0 0.0
    %3199 = vmatpush1.msra.mxu0 0.0
    %3200 = vmatprep.subr.mxu0 0.0
    %3201 = vmatpush1.msra.mxu0 0.0
    %3202 = vmatprep.subr.mxu0 0.0
    %3203 = vmatpush1.msra.mxu0 0.0
    %3204 = vmatprep.subr.mxu0 0.0
    %3205 = vmatpush1.msra.mxu0 0.0
    %3206 = vmatprep.subr.mxu0 0.0
    %3207 = vmatpush1.msra.mxu0 0.0
    %3208 = vmatprep.subr.mxu0 0.0
    %3209 = vmatpush1.msra.mxu0 0.0
    %3210 = vmatprep.subr.mxu0 0.0
    %3211 = vmatpush1.msra.mxu0 0.0
    %3212 = vmatprep.subr.mxu0 0.0
    %3213 = vmatpush1.msra.mxu0 0.0
    %3214 = vmatprep.subr.mxu0 0.0
    %3215 = vmatpush1.msra.mxu0 0.0
    %3216 = vmatprep.subr.mxu0 0.0
    %3217 = vmatpush1.msra.mxu0 0.0
    %3218 = vmatprep.subr.mxu0 0.0
    %3219 = vmatpush1.msra.mxu0 0.0
    %3220 = vmatprep.subr.mxu0 0.0
    %3221 = vmatpush1.msra.mxu0 0.0
    %3222 = vmatprep.subr.mxu0 0.0
    %3223 = vmatpush1.msra.mxu0 0.0
    %3224 = vmatprep.subr.mxu0 0.0
    %3225 = vmatpush1.msra.mxu0 0.0
    %3226 = vmatprep.subr.mxu0 0.0
    %3227 = vmatpush1.msra.mxu0 0.0
    %3228 = vmatprep.subr.mxu0 0.0
    %3229 = vmatpush1.msra.mxu0 0.0
    %3230 = vmatprep.subr.mxu0 0.0
    %3231 = vmatpush1.msra.mxu0 0.0
    %3232 = vmatprep.subr.mxu0 0.0
    %3233 = vmatpush1.msra.mxu0 0.0
    %3234 = vmatprep.subr.mxu0 0.0
    %3235 = vmatpush1.msra.mxu0 0.0
    %3236 = vmatprep.subr.mxu0 0.0
    %3237 = vmatpush1.msra.mxu0 0.0
    %3238 = vmatprep.subr.mxu0 0.0
    %3239 = vmatpush1.msra.mxu0 0.0
    %3240 = vmatprep.mubr.f32.mxu0 0.0
    %3241 = vmatmul.mubr.f32.gmra.mrb[0].mxu0 %v3174
    %v3242 = vpop.f32.mrb[0].mxu0
    %v3243 = vadd.f32 0.0, %v3242
    %v3244 = vpop.f32.mrb[0].mxu0
    %3245 = vdwg.mxu0
    %v3247 = vsel %vm214, %v2866, 0
    %3249 = vmatprep.subr.mxu0 0.0
    %3250 = vmatpush1.msra.mxu0 %v2946
    %3251 = vmatprep.subr.mxu0 0.0
    %3252 = vmatpush1.msra.mxu0 0.0
    %3253 = vmatprep.subr.mxu0 0.0
    %3254 = vmatpush1.msra.mxu0 0.0
    %3255 = vmatprep.subr.mxu0 0.0
    %3256 = vmatpush1.msra.mxu0 0.0
    %3257 = vmatprep.subr.mxu0 0.0
    %3258 = vmatpush1.msra.mxu0 0.0
    %3259 = vmatprep.subr.mxu0 0.0
    %3260 = vmatpush1.msra.mxu0 0.0
    %3261 = vmatprep.subr.mxu0 0.0
    %3262 = vmatpush1.msra.mxu0 0.0
    %3263 = vmatprep.subr.mxu0 0.0
    %3264 = vmatpush1.msra.mxu0 0.0
    %3265 = vmatprep.subr.mxu0 0.0
    %3266 = vmatpush1.msra.mxu0 0.0
    %3267 = vmatprep.subr.mxu0 0.0
    %3268 = vmatpush1.msra.mxu0 0.0
    %3269 = vmatprep.subr.mxu0 0.0
    %3270 = vmatpush1.msra.mxu0 0.0
    %3271 = vmatprep.subr.mxu0 0.0
    %3272 = vmatpush1.msra.mxu0 0.0
    %3273 = vmatprep.subr.mxu0 0.0
    %3274 = vmatpush1.msra.mxu0 0.0
    %3275 = vmatprep.subr.mxu0 0.0
    %3276 = vmatpush1.msra.mxu0 0.0
    %3277 = vmatprep.subr.mxu0 0.0
    %3278 = vmatpush1.msra.mxu0 0.0
    %3279 = vmatprep.subr.mxu0 0.0
    %3280 = vmatpush1.msra.mxu0 0.0
    %3281 = vmatprep.subr.mxu0 0.0
    %3282 = vmatpush1.msra.mxu0 0.0
    %3283 = vmatprep.subr.mxu0 0.0
    %3284 = vmatpush1.msra.mxu0 0.0
    %3285 = vmatprep.subr.mxu0 0.0
    %3286 = vmatpush1.msra.mxu0 0.0
    %3287 = vmatprep.subr.mxu0 0.0
    %3288 = vmatpush1.msra.mxu0 0.0
    %3289 = vmatprep.subr.mxu0 0.0
    %3290 = vmatpush1.msra.mxu0 0.0
    %3291 = vmatprep.subr.mxu0 0.0
    %3292 = vmatpush1.msra.mxu0 0.0
    %3293 = vmatprep.subr.mxu0 0.0
    %3294 = vmatpush1.msra.mxu0 0.0
    %3295 = vmatprep.subr.mxu0 0.0
    %3296 = vmatpush1.msra.mxu0 0.0
    %3297 = vmatprep.subr.mxu0 0.0
    %3298 = vmatpush1.msra.mxu0 0.0
    %3299 = vmatprep.subr.mxu0 0.0
    %3300 = vmatpush1.msra.mxu0 0.0
    %3301 = vmatprep.subr.mxu0 0.0
    %3302 = vmatpush1.msra.mxu0 0.0
    %3303 = vmatprep.subr.mxu0 0.0
    %3304 = vmatpush1.msra.mxu0 0.0
    %3305 = vmatprep.subr.mxu0 0.0
    %3306 = vmatpush1.msra.mxu0 0.0
    %3307 = vmatprep.subr.mxu0 0.0
    %3308 = vmatpush1.msra.mxu0 0.0
    %3309 = vmatprep.subr.mxu0 0.0
    %3310 = vmatpush1.msra.mxu0 0.0
    %3311 = vmatprep.subr.mxu0 0.0
    %3312 = vmatpush1.msra.mxu0 0.0
    %3313 = vmatprep.mubr.f32.mxu0 0.0
    %3314 = vmatmul.mubr.f32.gmra.mrb[0].mxu0 %v3247
    %v3315 = vpop.f32.mrb[0].mxu0
    %v3316 = vadd.f32 0.0, %v3315
    %v3317 = vpop.f32.mrb[0].mxu0
    %3318 = vdwg.mxu0
    %v3320 = vsel %vm214, %v2867, 0
    %3322 = vmatprep.subr.mxu0 0.0
    %3323 = vmatpush1.msra.mxu0 %v3022
    %3324 = vmatprep.subr.mxu0 0.0
    %3325 = vmatpush1.msra.mxu0 0.0
    %3326 = vmatprep.subr.mxu0 0.0
    %3327 = vmatpush1.msra.mxu0 0.0
    %3328 = vmatprep.subr.mxu0 0.0
    %3329 = vmatpush1.msra.mxu0 0.0
    %3330 = vmatprep.subr.mxu0 0.0
    %3331 = vmatpush1.msra.mxu0 0.0
    %3332 = vmatprep.subr.mxu0 0.0
    %3333 = vmatpush1.msra.mxu0 0.0
    %3334 = vmatprep.subr.mxu0 0.0
    %3335 = vmatpush1.msra.mxu0 0.0
    %3336 = vmatprep.subr.mxu0 0.0
    %3337 = vmatpush1.msra.mxu0 0.0
    %3338 = vmatprep.subr.mxu0 0.0
    %3339 = vmatpush1.msra.mxu0 0.0
    %3340 = vmatprep.subr.mxu0 0.0
    %3341 = vmatpush1.msra.mxu0 0.0
    %3342 = vmatprep.subr.mxu0 0.0
    %3343 = vmatpush1.msra.mxu0 0.0
    %3344 = vmatprep.subr.mxu0 0.0
    %3345 = vmatpush1.msra.mxu0 0.0
    %3346 = vmatprep.subr.mxu0 0.0
    %3347 = vmatpush1.msra.mxu0 0.0
    %3348 = vmatprep.subr.mxu0 0.0
    %3349 = vmatpush1.msra.mxu0 0.0
    %3350 = vmatprep.subr.mxu0 0.0
    %3351 = vmatpush1.msra.mxu0 0.0
    %3352 = vmatprep.subr.mxu0 0.0
    %3353 = vmatpush1.msra.mxu0 0.0
    %3354 = vmatprep.subr.mxu0 0.0
    %3355 = vmatpush1.msra.mxu0 0.0
    %3356 = vmatprep.subr.mxu0 0.0
    %3357 = vmatpush1.msra.mxu0 0.0
    %3358 = vmatprep.subr.mxu0 0.0
    %3359 = vmatpush1.msra.mxu0 0.0
    %3360 = vmatprep.subr.mxu0 0.0
    %3361 = vmatpush1.msra.mxu0 0.0
    %3362 = vmatprep.subr.mxu0 0.0
    %3363 = vmatpush1.msra.mxu0 0.0
    %3364 = vmatprep.subr.mxu0 0.0
    %3365 = vmatpush1.msra.mxu0 0.0
    %3366 = vmatprep.subr.mxu0 0.0
    %3367 = vmatpush1.msra.mxu0 0.0
    %3368 = vmatprep.subr.mxu0 0.0
    %3369 = vmatpush1.msra.mxu0 0.0
    %3370 = vmatprep.subr.mxu0 0.0
    %3371 = vmatpush1.msra.mxu0 0.0
    %3372 = vmatprep.subr.mxu0 0.0
    %3373 = vmatpush1.msra.mxu0 0.0
    %3374 = vmatprep.subr.mxu0 0.0
    %3375 = vmatpush1.msra.mxu0 0.0
    %3376 = vmatprep.subr.mxu0 0.0
    %3377 = vmatpush1.msra.mxu0 0.0
    %3378 = vmatprep.subr.mxu0 0.0
    %3379 = vmatpush1.msra.mxu0 0.0
    %3380 = vmatprep.subr.mxu0 0.0
    %3381 = vmatpush1.msra.mxu0 0.0
    %3382 = vmatprep.subr.mxu0 0.0
    %3383 = vmatpush1.msra.mxu0 0.0
    %3384 = vmatprep.subr.mxu0 0.0
    %3385 = vmatpush1.msra.mxu0 0.0
    %3386 = vmatprep.mubr.f32.mxu0 0.0
    %3387 = vmatmul.mubr.f32.gmra.mrb[0].mxu0 %v3320
    %v3388 = vpop.f32.mrb[0].mxu0
    %v3389 = vadd.f32 0.0, %v3388
    %v3390 = vpop.f32.mrb[0].mxu0
    %3391 = vdwg.mxu0
    %v3393 = vsel %vm214, %v2868, 0
    %3395 = vmatprep.subr.mxu0 0.0
    %3396 = vmatpush1.msra.mxu0 %v3098
    %3397 = vmatprep.subr.mxu0 0.0
    %3398 = vmatpush1.msra.mxu0 0.0
    %3399 = vmatprep.subr.mxu0 0.0
    %3400 = vmatpush1.msra.mxu0 0.0
    %3401 = vmatprep.subr.mxu0 0.0
    %3402 = vmatpush1.msra.mxu0 0.0
    %3403 = vmatprep.subr.mxu0 0.0
    %3404 = vmatpush1.msra.mxu0 0.0
    %3405 = vmatprep.subr.mxu0 0.0
    %3406 = vmatpush1.msra.mxu0 0.0
    %3407 = vmatprep.subr.mxu0 0.0
    %3408 = vmatpush1.msra.mxu0 0.0
    %3409 = vmatprep.subr.mxu0 0.0
    %3410 = vmatpush1.msra.mxu0 0.0
    %3411 = vmatprep.subr.mxu0 0.0
    %3412 = vmatpush1.msra.mxu0 0.0
    %3413 = vmatprep.subr.mxu0 0.0
    %3414 = vmatpush1.msra.mxu0 0.0
    %3415 = vmatprep.subr.mxu0 0.0
    %3416 = vmatpush1.msra.mxu0 0.0
    %3417 = vmatprep.subr.mxu0 0.0
    %3418 = vmatpush1.msra.mxu0 0.0
    %3419 = vmatprep.subr.mxu0 0.0
    %3420 = vmatpush1.msra.mxu0 0.0
    %3421 = vmatprep.subr.mxu0 0.0
    %3422 = vmatpush1.msra.mxu0 0.0
    %3423 = vmatprep.subr.mxu0 0.0
    %3424 = vmatpush1.msra.mxu0 0.0
    %3425 = vmatprep.subr.mxu0 0.0
    %3426 = vmatpush1.msra.mxu0 0.0
    %3427 = vmatprep.subr.mxu0 0.0
    %3428 = vmatpush1.msra.mxu0 0.0
    %3429 = vmatprep.subr.mxu0 0.0
    %3430 = vmatpush1.msra.mxu0 0.0
    %3431 = vmatprep.subr.mxu0 0.0
    %3432 = vmatpush1.msra.mxu0 0.0
    %3433 = vmatprep.subr.mxu0 0.0
    %3434 = vmatpush1.msra.mxu0 0.0
    %3435 = vmatprep.subr.mxu0 0.0
    %3436 = vmatpush1.msra.mxu0 0.0
    %3437 = vmatprep.subr.mxu0 0.0
    %3438 = vmatpush1.msra.mxu0 0.0
    %3439 = vmatprep.subr.mxu0 0.0
    %3440 = vmatpush1.msra.mxu0 0.0
    %3441 = vmatprep.subr.mxu0 0.0
    %3442 = vmatpush1.msra.mxu0 0.0
    %3443 = vmatprep.subr.mxu0 0.0
    %3444 = vmatpush1.msra.mxu0 0.0
    %3445 = vmatprep.subr.mxu0 0.0
    %3446 = vmatpush1.msra.mxu0 0.0
    %3447 = vmatprep.subr.mxu0 0.0
    %3448 = vmatpush1.msra.mxu0 0.0
    %3449 = vmatprep.subr.mxu0 0.0
    %3450 = vmatpush1.msra.mxu0 0.0
    %3451 = vmatprep.subr.mxu0 0.0
    %3452 = vmatpush1.msra.mxu0 0.0
    %3453 = vmatprep.subr.mxu0 0.0
    %3454 = vmatpush1.msra.mxu0 0.0
    %3455 = vmatprep.subr.mxu0 0.0
    %3456 = vmatpush1.msra.mxu0 0.0
    %3457 = vmatprep.subr.mxu0 0.0
    %3458 = vmatpush1.msra.mxu0 0.0
    %3459 = vmatprep.mubr.f32.mxu0 0.0
    %3460 = vmatmul.mubr.f32.gmra.mrb[0].mxu0 %v3393
    %v3461 = vpop.f32.mrb[0].mxu0
    %v3462 = vadd.f32 0.0, %v3461
    %v3463 = vpop.f32.mrb[0].mxu0
    %3464 = vdwg.mxu0
    %v3465 = vstv %s2016
    %v3466 = vmul.f32 %v3465, %v3243
    %v3467 = vmul.f32 %v3465, %v3316
    %v3468 = vmul.f32 %v3465, %v3389
    %v3469 = vmul.f32 %v3465, %v3462
    %v3470 = vsub.f32 %v2942, %v3466
    %v3471 = vsub.f32 %v3018, %v3467
    %v3472 = vsub.f32 %v3094, %v3468
    %v3473 = vsub.f32 %v3170, %v3469
    %v3474 = vmul.f32 %v3470, %v3470
    %v3475 = vmul.f32 %v3471, %v3471
    %v3476 = vmul.f32 %v3472, %v3472
    %v3477 = vmul.f32 %v3473, %v3473
    %v3478 = vsel %vm1526, %v3474, 0.0
    %3479 = vadd.xlane.f32.xlu0 %v3478
    %v3480 = vpop.xlane.xlu0 %3479
    %v3481 = vsel %vm1526, %v3475, 0.0
    %3482 = vadd.xlane.f32.xlu0 %v3481
    %v3483 = vpop.xlane.xlu0 %3482
    %v3484 = vsel %vm1526, %v3476, 0.0
    %3485 = vadd.xlane.f32.xlu0 %v3484
    %v3486 = vpop.xlane.xlu0 %3485
    %v3487 = vsel %vm1526, %v3477, 0.0
    %3488 = vadd.xlane.f32.xlu0 %v3487
    %v3489 = vpop.xlane.xlu0 %3488
    %v3490 = vmul.f32 %v3480, 0.0625
    %v3491 = vmul.f32 %v3483, 0.0625
    %v3492 = vmul.f32 %v3486, 0.0625
    %v3493 = vmul.f32 %v3489, 0.0625
    %v3494 = vadd.f32 %v3490, 1e-05
    %v3495 = vadd.f32 %v3491, 1e-05
    %v3496 = vadd.f32 %v3492, 1e-05
    %v3497 = vadd.f32 %v3493, 1e-05
    %v3498 = vrsqrt.pop %v3494
    %v3499 = vrsqrt.pop %v3495
    %v3500 = vrsqrt.pop %v3496
    %v3501 = vrsqrt.pop %v3497
    %v3502 = vmul.f32 %v3470, %v3498
    %v3503 = vmul.f32 %v3471, %v3499
    %v3504 = vmul.f32 %v3472, %v3500
    %v3505 = vmul.f32 %v3473, %v3501
    %v3506 = vmul.f32 %v3502, 0.64449096
    %v3507 = vmul.f32 %v3503, 0.64449096
    %v3508 = vmul.f32 %v3504, 0.64449096
    %v3509 = vmul.f32 %v3505, 0.64449096
    %s3510 = scalar_lea.vmem %s6, 32
    %v3511 = vld [vmem:[%s3510] sm:$0xff]
    %v3512 = vld [vmem:[%s3510 + $0x8] sm:$0xff]
    %v3513 = vld [vmem:[%s3510 + $0x10] sm:$0xff]
    %v3514 = vld [vmem:[%s3510 + $0x18] sm:$0xff]
    %v3516 = vsel %vm1526, %v3508, 0
    %v3519 = vsel %vm1526, %v3509, 0
    %3521 = vmatprep.subr.mxu0 0.0
    %3522 = vmatpush1.msra.mxu0 %v3513
    %3523 = vmatprep.subr.mxu0 0.0
    %3524 = vmatpush1.msra.mxu0 %v3514
    %3525 = vmatprep.subr.mxu0 0.0
    %3526 = vmatpush1.msra.mxu0 0.0
    %3527 = vmatprep.subr.mxu0 0.0
    %3528 = vmatpush1.msra.mxu0 0.0
    %3529 = vmatprep.subr.mxu0 0.0
    %3530 = vmatpush1.msra.mxu0 0.0
    %3531 = vmatprep.subr.mxu0 0.0
    %3532 = vmatpush1.msra.mxu0 0.0
    %3533 = vmatprep.subr.mxu0 0.0
    %3534 = vmatpush1.msra.mxu0 0.0
    %3535 = vmatprep.subr.mxu0 0.0
    %3536 = vmatpush1.msra.mxu0 0.0
    %3537 = vmatprep.subr.mxu0 0.0
    %3538 = vmatpush1.msra.mxu0 0.0
    %3539 = vmatprep.subr.mxu0 0.0
    %3540 = vmatpush1.msra.mxu0 0.0
    %3541 = vmatprep.subr.mxu0 0.0
    %3542 = vmatpush1.msra.mxu0 0.0
    %3543 = vmatprep.subr.mxu0 0.0
    %3544 = vmatpush1.msra.mxu0 0.0
    %3545 = vmatprep.subr.mxu0 0.0
    %3546 = vmatpush1.msra.mxu0 0.0
    %3547 = vmatprep.subr.mxu0 0.0
    %3548 = vmatpush1.msra.mxu0 0.0
    %3549 = vmatprep.subr.mxu0 0.0
    %3550 = vmatpush1.msra.mxu0 0.0
    %3551 = vmatprep.subr.mxu0 0.0
    %3552 = vmatpush1.msra.mxu0 0.0
    %3553 = vmatprep.subr.mxu0 0.0
    %3554 = vmatpush1.msra.mxu0 0.0
    %3555 = vmatprep.subr.mxu0 0.0
    %3556 = vmatpush1.msra.mxu0 0.0
    %3557 = vmatprep.subr.mxu0 0.0
    %3558 = vmatpush1.msra.mxu0 0.0
    %3559 = vmatprep.subr.mxu0 0.0
    %3560 = vmatpush1.msra.mxu0 0.0
    %3561 = vmatprep.subr.mxu0 0.0
    %3562 = vmatpush1.msra.mxu0 0.0
    %3563 = vmatprep.subr.mxu0 0.0
    %3564 = vmatpush1.msra.mxu0 0.0
    %3565 = vmatprep.subr.mxu0 0.0
    %3566 = vmatpush1.msra.mxu0 0.0
    %3567 = vmatprep.subr.mxu0 0.0
    %3568 = vmatpush1.msra.mxu0 0.0
    %3569 = vmatprep.subr.mxu0 0.0
    %3570 = vmatpush1.msra.mxu0 0.0
    %3571 = vmatprep.subr.mxu0 0.0
    %3572 = vmatpush1.msra.mxu0 0.0
    %3573 = vmatprep.subr.mxu0 0.0
    %3574 = vmatpush1.msra.mxu0 0.0
    %3575 = vmatprep.subr.mxu0 0.0
    %3576 = vmatpush1.msra.mxu0 0.0
    %3577 = vmatprep.subr.mxu0 0.0
    %3578 = vmatpush1.msra.mxu0 0.0
    %3579 = vmatprep.subr.mxu0 0.0
    %3580 = vmatpush1.msra.mxu0 0.0
    %3581 = vmatprep.subr.mxu0 0.0
    %3582 = vmatpush1.msra.mxu0 0.0
    %3583 = vmatprep.subr.mxu0 0.0
    %3584 = vmatpush1.msra.mxu0 0.0
    %3585 = vmatprep.mubr.f32.mxu0 0.0
    %3586 = vmatmul.mubr.f32.gmra.mrb[0].mxu0 %v3516
    %v3587 = vpop.f32.mrb[0].mxu0
    %v3588 = vadd.f32 0.0, %v3587
    %v3589 = vpop.f32.mrb[0].mxu0
    %3590 = vmatprep.mubr.f32.mxu0 0.0
    %3591 = vmatmul.mubr.f32.gmra.mrb[0].mxu0 %v3519
    %v3592 = vpop.f32.mrb[0].mxu0
    %v3593 = vadd.f32 0.0, %v3592
    %v3594 = vpop.f32.mrb[0].mxu0
    %3595 = vdwg.mxu0
    %v3597 = vsel %vm1526, %v3506, 0
    %v3600 = vsel %vm1526, %v3507, 0
    %3602 = vmatprep.subr.mxu0 0.0
    %3603 = vmatpush1.msra.mxu0 %v3511
    %3604 = vmatprep.subr.mxu0 0.0
    %3605 = vmatpush1.msra.mxu0 %v3512
    %3606 = vmatprep.subr.mxu0 0.0
    %3607 = vmatpush1.msra.mxu0 0.0
    %3608 = vmatprep.subr.mxu0 0.0
    %3609 = vmatpush1.msra.mxu0 0.0
    %3610 = vmatprep.subr.mxu0 0.0
    %3611 = vmatpush1.msra.mxu0 0.0
    %3612 = vmatprep.subr.mxu0 0.0
    %3613 = vmatpush1.msra.mxu0 0.0
    %3614 = vmatprep.subr.mxu0 0.0
    %3615 = vmatpush1.msra.mxu0 0.0
    %3616 = vmatprep.subr.mxu0 0.0
    %3617 = vmatpush1.msra.mxu0 0.0
    %3618 = vmatprep.subr.mxu0 0.0
    %3619 = vmatpush1.msra.mxu0 0.0
    %3620 = vmatprep.subr.mxu0 0.0
    %3621 = vmatpush1.msra.mxu0 0.0
    %3622 = vmatprep.subr.mxu0 0.0
    %3623 = vmatpush1.msra.mxu0 0.0
    %3624 = vmatprep.subr.mxu0 0.0
    %3625 = vmatpush1.msra.mxu0 0.0
    %3626 = vmatprep.subr.mxu0 0.0
    %3627 = vmatpush1.msra.mxu0 0.0
    %3628 = vmatprep.subr.mxu0 0.0
    %3629 = vmatpush1.msra.mxu0 0.0
    %3630 = vmatprep.subr.mxu0 0.0
    %3631 = vmatpush1.msra.mxu0 0.0
    %3632 = vmatprep.subr.mxu0 0.0
    %3633 = vmatpush1.msra.mxu0 0.0
    %3634 = vmatprep.subr.mxu0 0.0
    %3635 = vmatpush1.msra.mxu0 0.0
    %3636 = vmatprep.subr.mxu0 0.0
    %3637 = vmatpush1.msra.mxu0 0.0
    %3638 = vmatprep.subr.mxu0 0.0
    %3639 = vmatpush1.msra.mxu0 0.0
    %3640 = vmatprep.subr.mxu0 0.0
    %3641 = vmatpush1.msra.mxu0 0.0
    %3642 = vmatprep.subr.mxu0 0.0
    %3643 = vmatpush1.msra.mxu0 0.0
    %3644 = vmatprep.subr.mxu0 0.0
    %3645 = vmatpush1.msra.mxu0 0.0
    %3646 = vmatprep.subr.mxu0 0.0
    %3647 = vmatpush1.msra.mxu0 0.0
    %3648 = vmatprep.subr.mxu0 0.0
    %3649 = vmatpush1.msra.mxu0 0.0
    %3650 = vmatprep.subr.mxu0 0.0
    %3651 = vmatpush1.msra.mxu0 0.0
    %3652 = vmatprep.subr.mxu0 0.0
    %3653 = vmatpush1.msra.mxu0 0.0
    %3654 = vmatprep.subr.mxu0 0.0
    %3655 = vmatpush1.msra.mxu0 0.0
    %3656 = vmatprep.subr.mxu0 0.0
    %3657 = vmatpush1.msra.mxu0 0.0
    %3658 = vmatprep.subr.mxu0 0.0
    %3659 = vmatpush1.msra.mxu0 0.0
    %3660 = vmatprep.subr.mxu0 0.0
    %3661 = vmatpush1.msra.mxu0 0.0
    %3662 = vmatprep.subr.mxu0 0.0
    %3663 = vmatpush1.msra.mxu0 0.0
    %3664 = vmatprep.subr.mxu0 0.0
    %3665 = vmatpush1.msra.mxu0 0.0
    %3666 = vmatprep.mubr.f32.mxu0 0.0
    %3667 = vmatmul.mubr.f32.gmra.mrb[0].mxu0 %v3597
    %v3668 = vpop.f32.mrb[0].mxu0
    %v3669 = vadd.f32 %v3588, %v3668
    %v3670 = vpop.f32.mrb[0].mxu0
    %3671 = vmatprep.mubr.f32.mxu0 0.0
    %3672 = vmatmul.mubr.f32.gmra.mrb[0].mxu0 %v3600
    %v3673 = vpop.f32.mrb[0].mxu0
    %v3674 = vadd.f32 %v3593, %v3673
    %v3675 = vpop.f32.mrb[0].mxu0
    %3676 = vdwg.mxu0
    %v3677 = vadd.f32 %v2014, %v3669
    %v3678 = vadd.f32 %v2015, %v3674
    %v3679 = vmul.f32 %v3677, %v3677
    %v3680 = vmul.f32 %v3678, %v3678
    %v3681 = vsel %vm64, %v3679, 0.0
    %3682 = vadd.xlane.f32.xlu0 %v3681
    %v3683 = vpop.xlane.xlu0 %3682
    %v3684 = vsel %vm64, %v3680, 0.0
    %3685 = vadd.xlane.f32.xlu0 %v3684
    %v3686 = vpop.xlane.xlu0 %3685
    %v3687 = vmul.f32 %v3683, 0.03125
    %v3688 = vmul.f32 %v3686, 0.03125
    %v3689 = vadd.f32 %v3687, 1e-05
    %v3690 = vadd.f32 %v3688, 1e-05
    %v3691 = vrsqrt.pop %v3689
    %v3692 = vrsqrt.pop %v3690
    %v3693 = vmul.f32 %v3677, %v3691
    %v3694 = vmul.f32 %v3678, %v3692
    %s3695 = scalar_lea.vmem %s7, 32
    %v3696 = vld [vmem:[%s3695] sm:$0xff]
    %v3697 = vld [vmem:[%s3695 + $0x8] sm:$0xff]
    %v3698 = vld [vmem:[%s3695 + $0x10] sm:$0xff]
    %v3699 = vld [vmem:[%s3695 + $0x18] sm:$0xff]
    %v3701 = vsel %vm64, %v3693, 0
    %v3704 = vsel %vm64, %v3694, 0
    %3706 = vmatprep.subr.mxu0 0.0
    %3707 = vmatpush1.msra.mxu0 %v3696
    %3708 = vmatprep.subr.mxu0 0.0
    %3709 = vmatpush1.msra.mxu0 %v3697
    %3710 = vmatprep.subr.mxu0 0.0
    %3711 = vmatpush1.msra.mxu0 %v3698
    %3712 = vmatprep.subr.mxu0 0.0
    %3713 = vmatpush1.msra.mxu0 %v3699
    %3714 = vmatprep.subr.mxu0 0.0
    %3715 = vmatpush1.msra.mxu0 0.0
    %3716 = vmatprep.subr.mxu0 0.0
    %3717 = vmatpush1.msra.mxu0 0.0
    %3718 = vmatprep.subr.mxu0 0.0
    %3719 = vmatpush1.msra.mxu0 0.0
    %3720 = vmatprep.subr.mxu0 0.0
    %3721 = vmatpush1.msra.mxu0 0.0
    %3722 = vmatprep.subr.mxu0 0.0
    %3723 = vmatpush1.msra.mxu0 0.0
    %3724 = vmatprep.subr.mxu0 0.0
    %3725 = vmatpush1.msra.mxu0 0.0
    %3726 = vmatprep.subr.mxu0 0.0
    %3727 = vmatpush1.msra.mxu0 0.0
    %3728 = vmatprep.subr.mxu0 0.0
    %3729 = vmatpush1.msra.mxu0 0.0
    %3730 = vmatprep.subr.mxu0 0.0
    %3731 = vmatpush1.msra.mxu0 0.0
    %3732 = vmatprep.subr.mxu0 0.0
    %3733 = vmatpush1.msra.mxu0 0.0
    %3734 = vmatprep.subr.mxu0 0.0
    %3735 = vmatpush1.msra.mxu0 0.0
    %3736 = vmatprep.subr.mxu0 0.0
    %3737 = vmatpush1.msra.mxu0 0.0
    %3738 = vmatprep.subr.mxu0 0.0
    %3739 = vmatpush1.msra.mxu0 0.0
    %3740 = vmatprep.subr.mxu0 0.0
    %3741 = vmatpush1.msra.mxu0 0.0
    %3742 = vmatprep.subr.mxu0 0.0
    %3743 = vmatpush1.msra.mxu0 0.0
    %3744 = vmatprep.subr.mxu0 0.0
    %3745 = vmatpush1.msra.mxu0 0.0
    %3746 = vmatprep.subr.mxu0 0.0
    %3747 = vmatpush1.msra.mxu0 0.0
    %3748 = vmatprep.subr.mxu0 0.0
    %3749 = vmatpush1.msra.mxu0 0.0
    %3750 = vmatprep.subr.mxu0 0.0
    %3751 = vmatpush1.msra.mxu0 0.0
    %3752 = vmatprep.subr.mxu0 0.0
    %3753 = vmatpush1.msra.mxu0 0.0
    %3754 = vmatprep.subr.mxu0 0.0
    %3755 = vmatpush1.msra.mxu0 0.0
    %3756 = vmatprep.subr.mxu0 0.0
    %3757 = vmatpush1.msra.mxu0 0.0
    %3758 = vmatprep.subr.mxu0 0.0
    %3759 = vmatpush1.msra.mxu0 0.0
    %3760 = vmatprep.subr.mxu0 0.0
    %3761 = vmatpush1.msra.mxu0 0.0
    %3762 = vmatprep.subr.mxu0 0.0
    %3763 = vmatpush1.msra.mxu0 0.0
    %3764 = vmatprep.subr.mxu0 0.0
    %3765 = vmatpush1.msra.mxu0 0.0
    %3766 = vmatprep.subr.mxu0 0.0
    %3767 = vmatpush1.msra.mxu0 0.0
    %3768 = vmatprep.subr.mxu0 0.0
    %3769 = vmatpush1.msra.mxu0 0.0
    %3770 = vmatprep.mubr.f32.mxu0 0.0
    %3771 = vmatmul.mubr.f32.gmra.mrb[0].mxu0 %v3701
    %v3772 = vpop.f32.mrb[0].mxu0
    %v3773 = vadd.f32 0.0, %v3772
    %v3774 = vpop.f32.mrb[0].mxu0
    %3775 = vmatprep.mubr.f32.mxu0 0.0
    %3776 = vmatmul.mubr.f32.gmra.mrb[0].mxu0 %v3704
    %v3777 = vpop.f32.mrb[0].mxu0
    %v3778 = vadd.f32 0.0, %v3777
    %v3779 = vpop.f32.mrb[0].mxu0
    %3780 = vdwg.mxu0
    %s3781 = scalar_lea.vmem %s8, 32
    %v3782 = vld [vmem:[%s3781] sm:$0xff]
    %v3783 = vld [vmem:[%s3781 + $0x8] sm:$0xff]
    %v3784 = vld [vmem:[%s3781 + $0x10] sm:$0xff]
    %v3785 = vld [vmem:[%s3781 + $0x18] sm:$0xff]
    %3786 = vmatprep.subr.mxu0 0.0
    %3787 = vmatpush1.msra.mxu0 %v3782
    %3788 = vmatprep.subr.mxu0 0.0
    %3789 = vmatpush1.msra.mxu0 %v3783
    %3790 = vmatprep.subr.mxu0 0.0
    %3791 = vmatpush1.msra.mxu0 %v3784
    %3792 = vmatprep.subr.mxu0 0.0
    %3793 = vmatpush1.msra.mxu0 %v3785
    %3794 = vmatprep.subr.mxu0 0.0
    %3795 = vmatpush1.msra.mxu0 0.0
    %3796 = vmatprep.subr.mxu0 0.0
    %3797 = vmatpush1.msra.mxu0 0.0
    %3798 = vmatprep.subr.mxu0 0.0
    %3799 = vmatpush1.msra.mxu0 0.0
    %3800 = vmatprep.subr.mxu0 0.0
    %3801 = vmatpush1.msra.mxu0 0.0
    %3802 = vmatprep.subr.mxu0 0.0
    %3803 = vmatpush1.msra.mxu0 0.0
    %3804 = vmatprep.subr.mxu0 0.0
    %3805 = vmatpush1.msra.mxu0 0.0
    %3806 = vmatprep.subr.mxu0 0.0
    %3807 = vmatpush1.msra.mxu0 0.0
    %3808 = vmatprep.subr.mxu0 0.0
    %3809 = vmatpush1.msra.mxu0 0.0
    %3810 = vmatprep.subr.mxu0 0.0
    %3811 = vmatpush1.msra.mxu0 0.0
    %3812 = vmatprep.subr.mxu0 0.0
    %3813 = vmatpush1.msra.mxu0 0.0
    %3814 = vmatprep.subr.mxu0 0.0
    %3815 = vmatpush1.msra.mxu0 0.0
    %3816 = vmatprep.subr.mxu0 0.0
    %3817 = vmatpush1.msra.mxu0 0.0
    %3818 = vmatprep.subr.mxu0 0.0
    %3819 = vmatpush1.msra.mxu0 0.0
    %3820 = vmatprep.subr.mxu0 0.0
    %3821 = vmatpush1.msra.mxu0 0.0
    %3822 = vmatprep.subr.mxu0 0.0
    %3823 = vmatpush1.msra.mxu0 0.0
    %3824 = vmatprep.subr.mxu0 0.0
    %3825 = vmatpush1.msra.mxu0 0.0
    %3826 = vmatprep.subr.mxu0 0.0
    %3827 = vmatpush1.msra.mxu0 0.0
    %3828 = vmatprep.subr.mxu0 0.0
    %3829 = vmatpush1.msra.mxu0 0.0
    %3830 = vmatprep.subr.mxu0 0.0
    %3831 = vmatpush1.msra.mxu0 0.0
    %3832 = vmatprep.subr.mxu0 0.0
    %3833 = vmatpush1.msra.mxu0 0.0
    %3834 = vmatprep.subr.mxu0 0.0
    %3835 = vmatpush1.msra.mxu0 0.0
    %3836 = vmatprep.subr.mxu0 0.0
    %3837 = vmatpush1.msra.mxu0 0.0
    %3838 = vmatprep.subr.mxu0 0.0
    %3839 = vmatpush1.msra.mxu0 0.0
    %3840 = vmatprep.subr.mxu0 0.0
    %3841 = vmatpush1.msra.mxu0 0.0
    %3842 = vmatprep.subr.mxu0 0.0
    %3843 = vmatpush1.msra.mxu0 0.0
    %3844 = vmatprep.subr.mxu0 0.0
    %3845 = vmatpush1.msra.mxu0 0.0
    %3846 = vmatprep.subr.mxu0 0.0
    %3847 = vmatpush1.msra.mxu0 0.0
    %3848 = vmatprep.subr.mxu0 0.0
    %3849 = vmatpush1.msra.mxu0 0.0
    %3850 = vmatprep.mubr.f32.mxu0 0.0
    %3851 = vmatmul.mubr.f32.gmra.mrb[0].mxu0 %v3701
    %v3852 = vpop.f32.mrb[0].mxu0
    %v3853 = vadd.f32 0.0, %v3852
    %v3854 = vpop.f32.mrb[0].mxu0
    %3855 = vmatprep.mubr.f32.mxu0 0.0
    %3856 = vmatmul.mubr.f32.gmra.mrb[0].mxu0 %v3704
    %v3857 = vpop.f32.mrb[0].mxu0
    %v3858 = vadd.f32 0.0, %v3857
    %v3859 = vpop.f32.mrb[0].mxu0
    %3860 = vdwg.mxu0
    %v3861 = vxor.u32 %v3853, 2147483648
    %v3862 = vxor.u32 %v3858, 2147483648
    %v3863 = vmul.f32 %v3861, 1.442695
    %v3864 = vpow.pop %v3863
    %v3865 = vmul.f32 %v3862, 1.442695
    %v3866 = vpow.pop %v3865
    %v3867 = vadd.f32 %v3864, 1.0
    %v3868 = vadd.f32 %v3866, 1.0
    %v3869 = vrcp.pop %v3867
    %v3870 = vmul.f32 1.0, %v3869
    %v3871 = vrcp.pop %v3868
    %v3872 = vmul.f32 1.0, %v3871
    %v3873 = vmul.f32 %v3853, %v3870
    %v3874 = vmul.f32 %v3858, %v3872
    %v3875 = vmul.f32 %v3773, %v3873
    %v3876 = vmul.f32 %v3778, %v3874
    %s3877 = scalar_lea.vmem %s9, 128
    %v3878 = vld [vmem:[%s3877] sm:$0xff]
    %v3879 = vld [vmem:[%s3877 + $0x8] sm:$0xff]
    %v3880 = vld [vmem:[%s3877 + $0x10] sm:$0xff]
    %v3881 = vld [vmem:[%s3877 + $0x18] sm:$0xff]
    %v3882 = vld [vmem:[%s3877 + $0x20] sm:$0xff]
    %v3883 = vld [vmem:[%s3877 + $0x28] sm:$0xff]
    %v3884 = vld [vmem:[%s3877 + $0x30] sm:$0xff]
    %v3885 = vld [vmem:[%s3877 + $0x38] sm:$0xff]
    %v3886 = vld [vmem:[%s3877 + $0x40] sm:$0xff]
    %v3887 = vld [vmem:[%s3877 + $0x48] sm:$0xff]
    %v3888 = vld [vmem:[%s3877 + $0x50] sm:$0xff]
    %v3889 = vld [vmem:[%s3877 + $0x58] sm:$0xff]
    %v3890 = vld [vmem:[%s3877 + $0x60] sm:$0xff]
    %v3891 = vld [vmem:[%s3877 + $0x68] sm:$0xff]
    %v3892 = vld [vmem:[%s3877 + $0x70] sm:$0xff]
    %v3893 = vld [vmem:[%s3877 + $0x78] sm:$0xff]
    %3894 = vmatprep.subr.mxu0 0.0
    %3895 = vmatpush1.msra.mxu0 %v3878
    %3896 = vmatprep.subr.mxu0 0.0
    %3897 = vmatpush1.msra.mxu0 %v3879
    %3898 = vmatprep.subr.mxu0 0.0
    %3899 = vmatpush1.msra.mxu0 %v3880
    %3900 = vmatprep.subr.mxu0 0.0
    %3901 = vmatpush1.msra.mxu0 %v3881
    %3902 = vmatprep.subr.mxu0 0.0
    %3903 = vmatpush1.msra.mxu0 %v3882
    %3904 = vmatprep.subr.mxu0 0.0
    %3905 = vmatpush1.msra.mxu0 %v3883
    %3906 = vmatprep.subr.mxu0 0.0
    %3907 = vmatpush1.msra.mxu0 %v3884
    %3908 = vmatprep.subr.mxu0 0.0
    %3909 = vmatpush1.msra.mxu0 %v3885
    %3910 = vmatprep.subr.mxu0 0.0
    %3911 = vmatpush1.msra.mxu0 %v3886
    %3912 = vmatprep.subr.mxu0 0.0
    %3913 = vmatpush1.msra.mxu0 %v3887
    %3914 = vmatprep.subr.mxu0 0.0
    %3915 = vmatpush1.msra.mxu0 %v3888
    %3916 = vmatprep.subr.mxu0 0.0
    %3917 = vmatpush1.msra.mxu0 %v3889
    %3918 = vmatprep.subr.mxu0 0.0
    %3919 = vmatpush1.msra.mxu0 %v3890
    %3920 = vmatprep.subr.mxu0 0.0
    %3921 = vmatpush1.msra.mxu0 %v3891
    %3922 = vmatprep.subr.mxu0 0.0
    %3923 = vmatpush1.msra.mxu0 %v3892
    %3924 = vmatprep.subr.mxu0 0.0
    %3925 = vmatpush1.msra.mxu0 %v3893
    %3926 = vmatprep.subr.mxu0 0.0
    %3927 = vmatpush1.msra.mxu0 0.0
    %3928 = vmatprep.subr.mxu0 0.0
    %3929 = vmatpush1.msra.mxu0 0.0
    %3930 = vmatprep.subr.mxu0 0.0
    %3931 = vmatpush1.msra.mxu0 0.0
    %3932 = vmatprep.subr.mxu0 0.0
    %3933 = vmatpush1.msra.mxu0 0.0
    %3934 = vmatprep.subr.mxu0 0.0
    %3935 = vmatpush1.msra.mxu0 0.0
    %3936 = vmatprep.subr.mxu0 0.0
    %3937 = vmatpush1.msra.mxu0 0.0
    %3938 = vmatprep.subr.mxu0 0.0
    %3939 = vmatpush1.msra.mxu0 0.0
    %3940 = vmatprep.subr.mxu0 0.0
    %3941 = vmatpush1.msra.mxu0 0.0
    %3942 = vmatprep.subr.mxu0 0.0
    %3943 = vmatpush1.msra.mxu0 0.0
    %3944 = vmatprep.subr.mxu0 0.0
    %3945 = vmatpush1.msra.mxu0 0.0
    %3946 = vmatprep.subr.mxu0 0.0
    %3947 = vmatpush1.msra.mxu0 0.0
    %3948 = vmatprep.subr.mxu0 0.0
    %3949 = vmatpush1.msra.mxu0 0.0
    %3950 = vmatprep.subr.mxu0 0.0
    %3951 = vmatpush1.msra.mxu0 0.0
    %3952 = vmatprep.subr.mxu0 0.0
    %3953 = vmatpush1.msra.mxu0 0.0
    %3954 = vmatprep.subr.mxu0 0.0
    %3955 = vmatpush1.msra.mxu0 0.0
    %3956 = vmatprep.subr.mxu0 0.0
    %3957 = vmatpush1.msra.mxu0 0.0
    %3958 = vmatprep.mubr.f32.mxu0 0.0
    %3959 = vmatmul.mubr.f32.gmra.mrb[0].mxu0 %v3875
    %v3960 = vpop.f32.mrb[0].mxu0
    %v3961 = vadd.f32 0.0, %v3960
    %v3962 = vpop.f32.mrb[0].mxu0
    %3963 = vmatprep.mubr.f32.mxu0 0.0
    %3964 = vmatmul.mubr.f32.gmra.mrb[0].mxu0 %v3876
    %v3965 = vpop.f32.mrb[0].mxu0
    %v3966 = vadd.f32 0.0, %v3965
    %v3967 = vpop.f32.mrb[0].mxu0
    %3968 = vdwg.mxu0
    %v3969 = vadd.f32 %v3677, %v3961
    %v3970 = vadd.f32 %v3678, %v3966
    %v3971 = vld [vmem:[%s10] sm:$0xff]
    %v3972 = vld [vmem:[%s10 + $0x8] sm:$0xff]
    %v3973 = vld [vmem:[%s10 + $0x10] sm:$0xff]
    %v3974 = vld [vmem:[%s10 + $0x18] sm:$0xff]
    %v3976 = vsel %vm64, %v3969, 0
    %v3979 = vsel %vm64, %v3970, 0
    %3981 = vmatprep.subr.mxu0 0.0
    %3982 = vmatpush1.msra.mxu0 %v3971
    %3983 = vmatprep.subr.mxu0 0.0
    %3984 = vmatpush1.msra.mxu0 %v3972
    %3985 = vmatprep.subr.mxu0 0.0
    %3986 = vmatpush1.msra.mxu0 %v3973
    %3987 = vmatprep.subr.mxu0 0.0
    %3988 = vmatpush1.msra.mxu0 %v3974
    %3989 = vmatprep.subr.mxu0 0.0
    %3990 = vmatpush1.msra.mxu0 0.0
    %3991 = vmatprep.subr.mxu0 0.0
    %3992 = vmatpush1.msra.mxu0 0.0
    %3993 = vmatprep.subr.mxu0 0.0
    %3994 = vmatpush1.msra.mxu0 0.0
    %3995 = vmatprep.subr.mxu0 0.0
    %3996 = vmatpush1.msra.mxu0 0.0
    %3997 = vmatprep.subr.mxu0 0.0
    %3998 = vmatpush1.msra.mxu0 0.0
    %3999 = vmatprep.subr.mxu0 0.0
    %4000 = vmatpush1.msra.mxu0 0.0
    %4001 = vmatprep.subr.mxu0 0.0
    %4002 = vmatpush1.msra.mxu0 0.0
    %4003 = vmatprep.subr.mxu0 0.0
    %4004 = vmatpush1.msra.mxu0 0.0
    %4005 = vmatprep.subr.mxu0 0.0
    %4006 = vmatpush1.msra.mxu0 0.0
    %4007 = vmatprep.subr.mxu0 0.0
    %4008 = vmatpush1.msra.mxu0 0.0
    %4009 = vmatprep.subr.mxu0 0.0
    %4010 = vmatpush1.msra.mxu0 0.0
    %4011 = vmatprep.subr.mxu0 0.0
    %4012 = vmatpush1.msra.mxu0 0.0
    %4013 = vmatprep.subr.mxu0 0.0
    %4014 = vmatpush1.msra.mxu0 0.0
    %4015 = vmatprep.subr.mxu0 0.0
    %4016 = vmatpush1.msra.mxu0 0.0
    %4017 = vmatprep.subr.mxu0 0.0
    %4018 = vmatpush1.msra.mxu0 0.0
    %4019 = vmatprep.subr.mxu0 0.0
    %4020 = vmatpush1.msra.mxu0 0.0
    %4021 = vmatprep.subr.mxu0 0.0
    %4022 = vmatpush1.msra.mxu0 0.0
    %4023 = vmatprep.subr.mxu0 0.0
    %4024 = vmatpush1.msra.mxu0 0.0
    %4025 = vmatprep.subr.mxu0 0.0
    %4026 = vmatpush1.msra.mxu0 0.0
    %4027 = vmatprep.subr.mxu0 0.0
    %4028 = vmatpush1.msra.mxu0 0.0
    %4029 = vmatprep.subr.mxu0 0.0
    %4030 = vmatpush1.msra.mxu0 0.0
    %4031 = vmatprep.subr.mxu0 0.0
    %4032 = vmatpush1.msra.mxu0 0.0
    %4033 = vmatprep.subr.mxu0 0.0
    %4034 = vmatpush1.msra.mxu0 0.0
    %4035 = vmatprep.subr.mxu0 0.0
    %4036 = vmatpush1.msra.mxu0 0.0
    %4037 = vmatprep.subr.mxu0 0.0
    %4038 = vmatpush1.msra.mxu0 0.0
    %4039 = vmatprep.subr.mxu0 0.0
    %4040 = vmatpush1.msra.mxu0 0.0
    %4041 = vmatprep.subr.mxu0 0.0
    %4042 = vmatpush1.msra.mxu0 0.0
    %4043 = vmatprep.subr.mxu0 0.0
    %4044 = vmatpush1.msra.mxu0 0.0
    %4045 = vmatprep.mubr.f32.mxu0 0.0
    %4046 = vmatmul.mubr.f32.gmra.mrb[0].mxu0 %v3976
    %v4047 = vpop.f32.mrb[0].mxu0
    %v4048 = vadd.f32 0.0, %v4047
    %v4049 = vpop.f32.mrb[0].mxu0
    %4050 = vmatprep.mubr.f32.mxu0 0.0
    %4051 = vmatmul.mubr.f32.gmra.mrb[0].mxu0 %v3979
    %v4052 = vpop.f32.mrb[0].mxu0
    %v4053 = vadd.f32 0.0, %v4052
    %v4054 = vpop.f32.mrb[0].mxu0
    %4055 = vdwg.mxu0
    %4056 = vst [vmem:[%s11] sm:$0xff] %v4048
    %4057 = vst [vmem:[%s11 + $0x8] sm:$0xff] %v4053
    // Predicated region
    $region50: #{_lambda_.1} parent=1 // pred_check
      _
    $region51: #{_lambda_.1} parent=1 // pred_check_branch
      %4059 = sbr.rel (0) target = $region53
    $region52: #{_lambda_.1} parent=1 // pred_region
      _
    $region53: #{_lambda_.1} parent=1 // pred_fallthru
      _
    // Predicated region
    $region54: #{_lambda_.1} parent=1 // pred_check
      _
    $region55: #{_lambda_.1} parent=1 // pred_check_branch
      %4061 = sbr.rel (0) target = $region57
    $region56: #{_lambda_.1} parent=1 // pred_region
      _
    $region57: #{_lambda_.1} parent=1 // pred_fallthru
      _
    %4062 = vsyncpa [#allocation3], 1

</llo_original>
